<compile_context>
chip_gen: v7x
topology: tpu7x:2x2x1
jax: 0.10.0
libtpu: 0.0.40
codegen_flags: <defaults>
</compile_context>

<pallas_src>
import functools

import numpy as np
import jax
import jax.numpy as jnp
from jax.experimental import pallas as pl
from jax.experimental.pallas import tpu as pltpu


# ----------------------------- Pallas kernels ------------------------------

def _mm_kernel(w_ref, p_ref, b_ref, o_ref, *, relu):
    # w_ref: (Cout, K) bf16; p_ref: (K, M) bf16; b_ref: (Cout, 1) f32
    acc = jnp.dot(w_ref[...], p_ref[...], preferred_element_type=jnp.float32)
    acc = acc + b_ref[...]
    if relu:
        acc = jnp.maximum(acc, 0.0)
    o_ref[...] = acc                                  # (Cout, M): lane-dense store


def _mm_res_kernel(w_ref, p_ref, b_ref, r_ref, o_ref, *, relu):
    # Same as _mm_kernel, plus a fused residual add (r_ref: (Cout, M) f32).
    acc = jnp.dot(w_ref[...], p_ref[...], preferred_element_type=jnp.float32)
    acc = acc + b_ref[...] + r_ref[...]
    if relu:
        acc = jnp.maximum(acc, 0.0)
    o_ref[...] = acc


def _maxpool_kernel(x_ref, o_ref, *, taps):
    # x_ref: (taps, C, M) f32 -> max over the tap axis, lane-dense (C, M) store.
    m = x_ref[0]
    for t in range(1, taps):
        m = jnp.maximum(m, x_ref[t])
    o_ref[...] = m


def _proj_kernel(x_ref, a_ref, o_ref):
    # x_ref: (1, B*C, H*W) bf16; a_ref: (1, H*W, Hg*Wg) bf16 (pre-transposed op)
    o_ref[0] = jnp.dot(x_ref[0], a_ref[0], preferred_element_type=jnp.float32)


# ------------------------- conv / pool wrappers -----------------------------
# Activation layout between kernels: "CBHW" = (channels, batch, H, W).  The conv
# kernels consume/produce the flattened (C, B*H*W) view so the minor (lane) dim is
# the large flattened spatial*batch extent.

def im2col(x, KH, KW, stride, dilation, padding):
    """x: (Cin, B, H, W) f32 -> patches (Cin*KH*KW, B*Ho*Wo) bf16 (PyTorch weight order)."""
    C, B, H, W = x.shape
    d, s, p = dilation, stride, padding
    Ho = (H + 2 * p - d * (KH - 1) - 1) // s + 1
    Wo = (W + 2 * p - d * (KW - 1) - 1) // s + 1
    xp = jnp.pad(x, ((0, 0), (0, 0), (p, p), (p, p))) if p > 0 else x
    taps = []
    for kh in range(KH):
        for kw in range(KW):
            taps.append(xp[:, :, kh * d: kh * d + (Ho - 1) * s + 1: s,
                              kw * d: kw * d + (Wo - 1) * s + 1: s])
    pat = jnp.stack(taps, axis=1)                      # (C, KH*KW, B, Ho, Wo)
    pat = pat.reshape(C * KH * KW, B * Ho * Wo).astype(jnp.bfloat16)
    return pat, (Ho, Wo)


def conv2d(x, w, b=None, *, stride=1, padding=0, dilation=1, relu=False, residual=None):
    """PyTorch nn.Conv2d (+ fused bias / residual / ReLU epilogue).
    x: (Cin, B, H, W) f32; w: (Cout, Cin, KH, KW) f32; residual: (Cout, B*Ho*Wo) f32."""
    Cout, Cin, KH, KW = w.shape
    _, B, H, W = x.shape
    pat, (Ho, Wo) = im2col(x, KH, KW, stride, dilation, padding)
    wm = w.reshape(Cout, Cin * KH * KW).astype(jnp.bfloat16)
    bias = (jnp.zeros((Cout,), jnp.float32) if b is None else b).reshape(Cout, 1)
    M = B * Ho * Wo
    if residual is None:
        out = pl.pallas_call(
            functools.partial(_mm_kernel, relu=relu),
            out_shape=jax.ShapeDtypeStruct((Cout, M), jnp.float32),
        )(wm, pat, bias)
    else:
        out = pl.pallas_call(
            functools.partial(_mm_res_kernel, relu=relu),
            out_shape=jax.ShapeDtypeStruct((Cout, M), jnp.float32),
        )(wm, pat, bias, residual)
    return out.reshape(Cout, B, Ho, Wo)


def maxpool2d(x, *, kernel=3, stride=2, padding=1):
    """PyTorch nn.MaxPool2d; taps gathered by XLA, max-reduce in a Pallas kernel."""
    C, B, H, W = x.shape
    Ho = (H + 2 * padding - kernel) // stride + 1
    Wo = (W + 2 * padding - kernel) // stride + 1
    xp = jnp.pad(x, ((0, 0), (0, 0), (padding, padding), (padding, padding)),
                 constant_values=-1e30)
    taps = [xp[:, :, kh: kh + (Ho - 1) * stride + 1: stride,
                   kw: kw + (Wo - 1) * stride + 1: stride]
            for kh in range(kernel) for kw in range(kernel)]
    stk = jnp.stack(taps, axis=0).reshape(kernel * kernel, C, B * Ho * Wo)
    out = pl.pallas_call(
        functools.partial(_maxpool_kernel, taps=kernel * kernel),
        out_shape=jax.ShapeDtypeStruct((C, B * Ho * Wo), jnp.float32),
    )(stk)
    return out.reshape(C, B, Ho, Wo)


# --------------------- geometry / linear-operator glue ----------------------

def resize_matrix_1d(n_in, n_out):
    """1-D bilinear resize matrix, PyTorch F.interpolate align_corners=False."""
    i = np.arange(n_out, dtype=np.float64)
    src = np.clip((i + 0.5) * (n_in / n_out) - 0.5, 0.0, n_in - 1)
    x0 = np.floor(src).astype(np.int64)
    x1 = np.minimum(x0 + 1, n_in - 1)
    w1 = src - x0
    M = np.zeros((n_out, n_in), np.float64)
    M[np.arange(n_out), x0] += 1.0 - w1
    M[np.arange(n_out), x1] += w1
    return M


def bilinear_resize_matrix(in_hw, out_hw):
    My = resize_matrix_1d(in_hw[0], out_hw[0])
    Mx = resize_matrix_1d(in_hw[1], out_hw[1])
    return np.kron(My, Mx)                       # (Ho*Wo, Hi*Wi), row-major


def warp_matrix(M, src_hw, dst_hw):
    """warp_perspective(src, M, dst) as a dense (Hd*Wd, Hs*Ws) bilinear operator."""
    Hs, Ws = src_hw
    Hd, Wd = dst_hw
    Minv = np.linalg.inv(M)
    ys, xs = np.meshgrid(np.arange(Hd), np.arange(Wd), indexing='ij')
    pts = np.stack([xs.ravel(), ys.ravel(), np.ones(Hd * Wd)], 0)
    sp = Minv @ pts
    sx, sy = sp[0] / sp[2], sp[1] / sp[2]
    x0 = np.floor(sx).astype(np.int64)
    y0 = np.floor(sy).astype(np.int64)
    A = np.zeros((Hd * Wd, Hs * Ws), np.float64)
    rows = np.arange(Hd * Wd)
    for dy in (0, 1):
        for dx in (0, 1):
            xi, yi = x0 + dx, y0 + dy
            w = (1.0 - np.abs(sx - xi)) * (1.0 - np.abs(sy - yi))
            valid = (xi >= 0) & (xi < Ws) & (yi >= 0) & (yi < Hs)
            np.add.at(A, (rows[valid], (yi * Ws + xi)[valid]), w[valid])
    return A


def get_imgcoord2worldgrid_matrices(intrinsics, extrinsics, wg2wc, num_cam):
    mats = {}
    perm = np.array([[0, 1, 0], [1, 0, 0], [0, 0, 1]], dtype=np.float64)
    for cam in range(num_cam):
        worldcoord2imgcoord = intrinsics[cam] @ np.delete(extrinsics[cam], 2, 1)
        worldgrid2imgcoord = worldcoord2imgcoord @ wg2wc
        mats[cam] = perm @ np.linalg.inv(worldgrid2imgcoord)
    return mats


def create_coord_map(H, W):
    grid_x, grid_y = np.meshgrid(np.arange(W), np.arange(H))
    grid_x = grid_x / (W - 1) * 2 - 1
    grid_y = grid_y / (H - 1) * 2 - 1
    return jnp.asarray(np.stack([grid_x, grid_y], 0), jnp.float32)    # (2, H, W)


# ----------------------------- model definition -----------------------------

def init_params(key, in_ch, widths=(8, 8, 16, 24, 32), hidden=32):
    kit = iter(jax.random.split(key, 64))

    def cw(cout, cin, kh, kw):                   # PyTorch conv weight layout
        std = float(np.sqrt(2.0 / (cin * kh * kw)))
        return jax.random.normal(next(kit), (cout, cin, kh, kw), jnp.float32) * std

    def zeros(c):
        return jnp.zeros((c,), jnp.float32)

    c1, l1, l2, l3, l4 = widths
    p = {'conv1_w': cw(c1, in_ch, 7, 7), 'conv1_b': zeros(c1)}

    def block(cin, cout, downsample):
        bp = {'w1': cw(cout, cin, 3, 3), 'b1': zeros(cout),
              'w2': cw(cout, cout, 3, 3), 'b2': zeros(cout)}
        if downsample:
            bp['wd'] = cw(cout, cin, 1, 1)
            bp['bd'] = zeros(cout)
        return bp

    p['layer1'] = [block(c1, l1, c1 != l1), block(l1, l1, False)]
    p['layer2'] = [block(l1, l2, True), block(l2, l2, False)]
    p['layer3'] = [block(l2, l3, True), block(l3, l3, False)]
    p['layer4'] = [block(l3, l4, True), block(l4, l4, False)]
    p['cls_w1'] = cw(hidden, l4, 3, 3); p['cls_b1'] = zeros(hidden)
    p['cls_w2'] = cw(hidden, hidden, 3, 3); p['cls_b2'] = zeros(hidden)
    p['cls_w3'] = cw(1, hidden, 3, 3)            # final conv: bias=False
    return p


def basic_block(x, p, stride, dilation):
    """resnet BasicBlock (BatchNorm = identity); residual add + ReLU fused into
    the second conv's Pallas kernel epilogue."""
    Cin, B, H, W = x.shape
    if 'wd' in p:
        ds = conv2d(x, p['wd'], p['bd'], stride=stride, padding=0, relu=False)
        res = ds.reshape(ds.shape[0], -1)
    else:
        res = x.reshape(Cin, B * H * W)
    y = conv2d(x, p['w1'], p['b1'], stride=stride, padding=dilation,
               dilation=dilation, relu=True)
    y = conv2d(y, p['w2'], p['b2'], stride=1, padding=dilation,
               dilation=dilation, relu=True, residual=res)
    return y


def forward(imgs, params, proj_A, coord_map):
    """imgs: (B, N, 3, H, W) f32; proj_A: (N, H*W, Hg*Wg) bf16 pre-transposed
    (bilinear upsample -> warp_perspective) operator per camera."""
    B, N, C, H, W = imgs.shape
    _, Hg, Wg = coord_map.shape
    G = Hg * Wg

    imgs_result = [jnp.zeros((B, 2, H, W), jnp.float32) for _ in range(N)]

    # ---- per-camera projection: one batched, lane-dense MXU matmul kernel ----
    x_stack = jnp.transpose(imgs, (1, 0, 2, 3, 4)).reshape(N, B * C, H * W)
    x_stack = x_stack.astype(jnp.bfloat16)
    proj = pl.pallas_call(
        _proj_kernel,
        out_shape=jax.ShapeDtypeStruct((N, B * C, G), jnp.float32),
        grid=(N,),
        in_specs=[pl.BlockSpec((1, B * C, H * W), lambda n: (n, 0, 0)),
                  pl.BlockSpec((1, H * W, G), lambda n: (n, 0, 0))],
        out_specs=pl.BlockSpec((1, B * C, G), lambda n: (n, 0, 0)),
        compiler_params=pltpu.CompilerParams(dimension_semantics=("parallel",)),
    )(x_stack, proj_A)
    projected = proj.reshape(N, B, C, Hg, Wg).transpose(0, 2, 1, 3, 4)
    projected = projected.reshape(N * C, B, Hg, Wg)                    # cam-major channels
    cm = jnp.broadcast_to(coord_map[:, None, :, :], (2, B, Hg, Wg))
    feat = jnp.concatenate([projected, cm], axis=0)                    # (3N+2, B, Hg, Wg)

    # ---- resnet18-style backbone (base_pt1 = conv1/maxpool + layer1..3, base_pt2 = layer4) ----
    x = conv2d(feat, params['conv1_w'], params['conv1_b'],
               stride=2, padding=3, relu=True)
    x = maxpool2d(x, kernel=3, stride=2, padding=1)
    layer_cfg = {'layer1': ((1, 1), (1, 1)),
                 'layer2': ((2, 1), (1, 1)),
                 'layer3': ((1, 1), (1, 2)),      # replace_stride_with_dilation
                 'layer4': ((1, 1), (2, 4))}
    for name in ('layer1', 'layer2', 'layer3', 'layer4'):
        strides, dils = layer_cfg[name]
        for bp, s, d in zip(params[name], strides, dils):
            x = basic_block(x, bp, s, d)

    # ---- map_classifier: conv/relu, dilated conv/relu, dilated conv (no bias) ----
    x = conv2d(x, params['cls_w1'], params['cls_b1'], padding=1, relu=True)
    x = conv2d(x, params['cls_w2'], params['cls_b2'], padding=2, dilation=2, relu=True)
    x = conv2d(x, params['cls_w3'], None, padding=4, dilation=4, relu=False)   # (1,B,hf,wf)

    # ---- final F.interpolate(..., reducedgrid, 'bilinear') as a lane-dense matmul ----
    hf, wf = int(x.shape[2]), int(x.shape[3])
    RT = jnp.asarray(bilinear_resize_matrix((hf, wf), (Hg, Wg)).T, jnp.bfloat16)  # (hf*wf, G)
    xf = x.reshape(B, hf * wf).astype(jnp.bfloat16)
    map_flat = pl.pallas_call(
        functools.partial(_mm_kernel, relu=False),
        out_shape=jax.ShapeDtypeStruct((B, G), jnp.float32),
    )(xf, RT, jnp.zeros((B, 1), jnp.float32))
    map_result = map_flat.reshape(B, 1, Hg, Wg)
    return map_result, imgs_result


# ---------------------------------- main ------------------------------------

if __name__ == "__main__":
    key = jax.random.PRNGKey(0)

    # synthetic "dataset" geometry (deterministic, small)
    num_cam = 2
    img_shape = [16, 16]                  # camera image (H, W)
    reducedgrid_shape = [32, 32]          # BEV world grid (H, W)
    img_reduce_factor, grid_reduce = 2.0, 4.0
    upsample_shape = [int(s / img_reduce_factor) for s in img_shape]   # [8, 8]

    intrinsics = [np.array([[8.0, 0.0, 4.0], [0.0, 8.0, 4.0], [0.0, 0.0, 1.0]])
                  for _ in range(num_cam)]
    extrinsics = []
    for cam in range(num_cam):
        t = np.array([-0.2 - 0.1 * cam, -0.2 + 0.05 * cam, 1.0])
        extrinsics.append(np.hstack([np.eye(3), t[:, None]]))
    worldgrid2worldcoord_mat = np.diag([0.04, 0.04, 1.0])

    ic2wg = get_imgcoord2worldgrid_matrices(intrinsics, extrinsics,
                                            worldgrid2worldcoord_mat, num_cam)
    img_reduce = np.array(img_shape) / np.array(upsample_shape)
    img_zoom_mat = np.diag(np.append(img_reduce, [1]))
    map_zoom_mat = np.diag(np.append(np.ones(2) / grid_reduce, [1]))
    proj_mats = [map_zoom_mat @ ic2wg[cam] @ img_zoom_mat for cam in range(num_cam)]

    # pre-compose (bilinear resize -> perspective warp) into one dense op per
    # camera, stacked & pre-transposed for the batched projection kernel.
    A_resize = bilinear_resize_matrix(tuple(img_shape), tuple(upsample_shape))
    ops = []
    for cam in range(num_cam):
        A_warp = warp_matrix(proj_mats[cam], tuple(upsample_shape), tuple(reducedgrid_shape))
        ops.append((A_warp @ A_resize).T)                       # (H*W, Hg*Wg)
    proj_A = jnp.asarray(np.stack(ops, 0), jnp.bfloat16)        # (N, H*W, Hg*Wg)

    coord_map = create_coord_map(*reducedgrid_shape)            # (2, Hg, Wg)

    # parameters (deterministic synthetic init; reduced widths)
    in_ch = 3 * num_cam + 2
    key, kp, kx = jax.random.split(key, 3)
    params = init_params(kp, in_ch)

    # inputs & run
    B = 2
    imgs = jax.random.uniform(kx, (B, num_cam, 3, img_shape[0], img_shape[1]), jnp.float32)
    fwd = jax.jit(forward)
    map_result, imgs_result = fwd(imgs, params, proj_A, coord_map)
    jax.block_until_ready(map_result)
    for r in imgs_result:
        jax.block_until_ready(r)
    assert map_result.shape == (B, 1, reducedgrid_shape[0], reducedgrid_shape[1])
    print("KERNEL_OK")
</pallas_src>

<mosaic_0001>
module attributes {stable_mosaic.version = 11 : i64} {
  func.func @_proj_kernel(%arg0: i32, %arg1: memref<1x6x256xbf16, #tpu.memory_space<vmem>>, %arg2: memref<1x256x1024xbf16, #tpu.memory_space<vmem>>, %arg3: memref<1x6x1024xf32, #tpu.memory_space<vmem>>) attributes {dimension_semantics = [#tpu.dimension_semantics<parallel>], iteration_bounds = array<i64: 2>, scalar_prefetch = 0 : i64, scratch_operands = 0 : i64, tpu.core_type = #tpu.core_type<tc>, window_params = [{transform_indices = @transform_0, window_bounds = array<i64: 1, 6, 256>}, {transform_indices = @transform_1, window_bounds = array<i64: 1, 256, 1024>}, {transform_indices = @transform_2, window_bounds = array<i64: 1, 6, 1024>}]} {
    %c0 = arith.constant 0 : index
    %c0_0 = arith.constant 0 : index
    %c0_1 = arith.constant 0 : index
    %0 = vector.load %arg1[%c0, %c0_0, %c0_1] : memref<1x6x256xbf16, #tpu.memory_space<vmem>>, vector<1x6x256xbf16>
    %1 = vector.shape_cast %0 : vector<1x6x256xbf16> to vector<6x256xbf16>
    %c0_2 = arith.constant 0 : index
    %c0_3 = arith.constant 0 : index
    %c0_4 = arith.constant 0 : index
    %2 = vector.load %arg2[%c0_2, %c0_3, %c0_4] : memref<1x256x1024xbf16, #tpu.memory_space<vmem>>, vector<1x256x1024xbf16>
    %3 = vector.shape_cast %2 : vector<1x256x1024xbf16> to vector<256x1024xbf16>
    %cst = arith.constant dense<0.000000e+00> : vector<6x1024xf32>
    %4 = tpu.matmul %1, %3, %cst {dimension_numbers = #tpu.dot_dimension_numbers<[1], [0], [0], [1], [0, 0, 1, 1], [], []>} : vector<6x256xbf16>, vector<256x1024xbf16>, vector<6x1024xf32> -> vector<6x1024xf32>
    %c0_5 = arith.constant 0 : index
    %c0_6 = arith.constant 0 : index
    %c0_7 = arith.constant 0 : index
    %5 = vector.load %arg3[%c0_5, %c0_6, %c0_7] : memref<1x6x1024xf32, #tpu.memory_space<vmem>>, vector<1x6x1024xf32>
    %6 = vector.shape_cast %5 : vector<1x6x1024xf32> to vector<6x1024xf32>
    %7 = vector.shape_cast %4 : vector<6x1024xf32> to vector<1x6x1024xf32>
    tpu.vector_store %arg3[%c0_5, %c0_6, %c0_7], %7 {strides = array<i32>} : memref<1x6x1024xf32, #tpu.memory_space<vmem>>, vector<1x6x1024xf32>,
    return
  }
  func.func @transform_0(%arg0: i32) -> (i32, i32, i32) {
    %c0_i32 = arith.constant 0 : i32
    %c0_i32_0 = arith.constant 0 : i32
    %c0_i32_1 = arith.constant 0 : i32
    return %arg0, %c0_i32, %c0_i32_0 : i32, i32, i32
  }
  func.func @transform_1(%arg0: i32) -> (i32, i32, i32) {
    %c0_i32 = arith.constant 0 : i32
    %c0_i32_0 = arith.constant 0 : i32
    %c0_i32_1 = arith.constant 0 : i32
    return %arg0, %c0_i32, %c0_i32_0 : i32, i32, i32
  }
  func.func @transform_2(%arg0: i32) -> (i32, i32, i32) {
    %c0_i32 = arith.constant 0 : i32
    %c0_i32_0 = arith.constant 0 : i32
    %c0_i32_1 = arith.constant 0 : i32
    return %arg0, %c0_i32, %c0_i32_0 : i32, i32, i32
  }
}

module attributes {stable_mosaic.version = 11 : i64} {
  func.func @_mm_kernel(%arg0: memref<8x392xbf16, #tpu.memory_space<vmem>>, %arg1: memref<392x512xbf16, #tpu.memory_space<vmem>>, %arg2: memref<8x1xf32, #tpu.memory_space<vmem>>, %arg3: memref<8x512xf32, #tpu.memory_space<vmem>>) attributes {dimension_semantics = [], scalar_prefetch = 0 : i64, scratch_operands = 0 : i64, tpu.core_type = #tpu.core_type<tc>} {
    %c0 = arith.constant 0 : index
    %c0_0 = arith.constant 0 : index
    %0 = vector.load %arg0[%c0, %c0_0] : memref<8x392xbf16, #tpu.memory_space<vmem>>, vector<8x392xbf16>
    %c0_1 = arith.constant 0 : index
    %c0_2 = arith.constant 0 : index
    %1 = vector.load %arg1[%c0_1, %c0_2] : memref<392x512xbf16, #tpu.memory_space<vmem>>, vector<392x512xbf16>
    %cst = arith.constant dense<0.000000e+00> : vector<8x512xf32>
    %2 = tpu.matmul %0, %1, %cst {dimension_numbers = #tpu.dot_dimension_numbers<[1], [0], [0], [1], [0, 0, 1, 1], [], []>} : vector<8x392xbf16>, vector<392x512xbf16>, vector<8x512xf32> -> vector<8x512xf32>
    %c0_3 = arith.constant 0 : index
    %c0_4 = arith.constant 0 : index
    %3 = vector.load %arg2[%c0_3, %c0_4] : memref<8x1xf32, #tpu.memory_space<vmem>>, vector<8x1xf32>
    %4 = vector.broadcast %3 : vector<8x1xf32> to vector<8x512xf32>
    %5 = arith.addf %2, %4 : vector<8x512xf32>
    %cst_5 = arith.constant 0.000000e+00 : f32
    %6 = vector.broadcast %cst_5 : f32 to vector<8x512xf32>
    %7 = arith.maximumf %5, %6 : vector<8x512xf32>
    %c0_6 = arith.constant 0 : index
    %c0_7 = arith.constant 0 : index
    %8 = vector.load %arg3[%c0_6, %c0_7] : memref<8x512xf32, #tpu.memory_space<vmem>>, vector<8x512xf32>
    tpu.vector_store %arg3[%c0_6, %c0_7], %7 {strides = array<i32>} : memref<8x512xf32, #tpu.memory_space<vmem>>, vector<8x512xf32>,
    return
  }
}

module attributes {stable_mosaic.version = 11 : i64} {
  func.func @_maxpool_kernel(%arg0: memref<9x8x128xf32, #tpu.memory_space<vmem>>, %arg1: memref<8x128xf32, #tpu.memory_space<vmem>>) attributes {dimension_semantics = [], scalar_prefetch = 0 : i64, scratch_operands = 0 : i64, tpu.core_type = #tpu.core_type<tc>} {
    %c0 = arith.constant 0 : index
    %c0_0 = arith.constant 0 : index
    %c0_1 = arith.constant 0 : index
    %0 = vector.load %arg0[%c0, %c0_0, %c0_1] : memref<9x8x128xf32, #tpu.memory_space<vmem>>, vector<1x8x128xf32>
    %1 = vector.shape_cast %0 : vector<1x8x128xf32> to vector<8x128xf32>
    %c1 = arith.constant 1 : index
    %c0_2 = arith.constant 0 : index
    %c0_3 = arith.constant 0 : index
    %2 = vector.load %arg0[%c1, %c0_2, %c0_3] : memref<9x8x128xf32, #tpu.memory_space<vmem>>, vector<1x8x128xf32>
    %3 = vector.shape_cast %2 : vector<1x8x128xf32> to vector<8x128xf32>
    %4 = arith.maximumf %1, %3 : vector<8x128xf32>
    %c2 = arith.constant 2 : index
    %c0_4 = arith.constant 0 : index
    %c0_5 = arith.constant 0 : index
    %5 = vector.load %arg0[%c2, %c0_4, %c0_5] : memref<9x8x128xf32, #tpu.memory_space<vmem>>, vector<1x8x128xf32>
    %6 = vector.shape_cast %5 : vector<1x8x128xf32> to vector<8x128xf32>
    %7 = arith.maximumf %4, %6 : vector<8x128xf32>
    %c3 = arith.constant 3 : index
    %c0_6 = arith.constant 0 : index
    %c0_7 = arith.constant 0 : index
    %8 = vector.load %arg0[%c3, %c0_6, %c0_7] : memref<9x8x128xf32, #tpu.memory_space<vmem>>, vector<1x8x128xf32>
    %9 = vector.shape_cast %8 : vector<1x8x128xf32> to vector<8x128xf32>
    %10 = arith.maximumf %7, %9 : vector<8x128xf32>
    %c4 = arith.constant 4 : index
    %c0_8 = arith.constant 0 : index
    %c0_9 = arith.constant 0 : index
    %11 = vector.load %arg0[%c4, %c0_8, %c0_9] : memref<9x8x128xf32, #tpu.memory_space<vmem>>, vector<1x8x128xf32>
    %12 = vector.shape_cast %11 : vector<1x8x128xf32> to vector<8x128xf32>
    %13 = arith.maximumf %10, %12 : vector<8x128xf32>
    %c5 = arith.constant 5 : index
    %c0_10 = arith.constant 0 : index
    %c0_11 = arith.constant 0 : index
    %14 = vector.load %arg0[%c5, %c0_10, %c0_11] : memref<9x8x128xf32, #tpu.memory_space<vmem>>, vector<1x8x128xf32>
    %15 = vector.shape_cast %14 : vector<1x8x128xf32> to vector<8x128xf32>
    %16 = arith.maximumf %13, %15 : vector<8x128xf32>
    %c6 = arith.constant 6 : index
    %c0_12 = arith.constant 0 : index
    %c0_13 = arith.constant 0 : index
    %17 = vector.load %arg0[%c6, %c0_12, %c0_13] : memref<9x8x128xf32, #tpu.memory_space<vmem>>, vector<1x8x128xf32>
    %18 = vector.shape_cast %17 : vector<1x8x128xf32> to vector<8x128xf32>
    %19 = arith.maximumf %16, %18 : vector<8x128xf32>
    %c7 = arith.constant 7 : index
    %c0_14 = arith.constant 0 : index
    %c0_15 = arith.constant 0 : index
    %20 = vector.load %arg0[%c7, %c0_14, %c0_15] : memref<9x8x128xf32, #tpu.memory_space<vmem>>, vector<1x8x128xf32>
    %21 = vector.shape_cast %20 : vector<1x8x128xf32> to vector<8x128xf32>
    %22 = arith.maximumf %19, %21 : vector<8x128xf32>
    %c8 = arith.constant 8 : index
    %c0_16 = arith.constant 0 : index
    %c0_17 = arith.constant 0 : index
    %23 = vector.load %arg0[%c8, %c0_16, %c0_17] : memref<9x8x128xf32, #tpu.memory_space<vmem>>, vector<1x8x128xf32>
    %24 = vector.shape_cast %23 : vector<1x8x128xf32> to vector<8x128xf32>
    %25 = arith.maximumf %22, %24 : vector<8x128xf32>
    %c0_18 = arith.constant 0 : index
    %c0_19 = arith.constant 0 : index
    %26 = vector.load %arg1[%c0_18, %c0_19] : memref<8x128xf32, #tpu.memory_space<vmem>>, vector<8x128xf32>
    tpu.vector_store %arg1[%c0_18, %c0_19], %25 {strides = array<i32>} : memref<8x128xf32, #tpu.memory_space<vmem>>, vector<8x128xf32>,
    return
  }
}

module attributes {stable_mosaic.version = 11 : i64} {
  func.func @_mm_kernel(%arg0: memref<8x72xbf16, #tpu.memory_space<vmem>>, %arg1: memref<72x128xbf16, #tpu.memory_space<vmem>>, %arg2: memref<8x1xf32, #tpu.memory_space<vmem>>, %arg3: memref<8x128xf32, #tpu.memory_space<vmem>>) attributes {dimension_semantics = [], scalar_prefetch = 0 : i64, scratch_operands = 0 : i64, tpu.core_type = #tpu.core_type<tc>} {
    %c0 = arith.constant 0 : index
    %c0_0 = arith.constant 0 : index
    %0 = vector.load %arg0[%c0, %c0_0] : memref<8x72xbf16, #tpu.memory_space<vmem>>, vector<8x72xbf16>
    %c0_1 = arith.constant 0 : index
    %c0_2 = arith.constant 0 : index
    %1 = vector.load %arg1[%c0_1, %c0_2] : memref<72x128xbf16, #tpu.memory_space<vmem>>, vector<72x128xbf16>
    %cst = arith.constant dense<0.000000e+00> : vector<8x128xf32>
    %2 = tpu.matmul %0, %1, %cst {dimension_numbers = #tpu.dot_dimension_numbers<[1], [0], [0], [1], [0, 0, 1, 1], [], []>} : vector<8x72xbf16>, vector<72x128xbf16>, vector<8x128xf32> -> vector<8x128xf32>
    %c0_3 = arith.constant 0 : index
    %c0_4 = arith.constant 0 : index
    %3 = vector.load %arg2[%c0_3, %c0_4] : memref<8x1xf32, #tpu.memory_space<vmem>>, vector<8x1xf32>
    %4 = vector.broadcast %3 : vector<8x1xf32> to vector<8x128xf32>
    %5 = arith.addf %2, %4 : vector<8x128xf32>
    %cst_5 = arith.constant 0.000000e+00 : f32
    %6 = vector.broadcast %cst_5 : f32 to vector<8x128xf32>
    %7 = arith.maximumf %5, %6 : vector<8x128xf32>
    %c0_6 = arith.constant 0 : index
    %c0_7 = arith.constant 0 : index
    %8 = vector.load %arg3[%c0_6, %c0_7] : memref<8x128xf32, #tpu.memory_space<vmem>>, vector<8x128xf32>
    tpu.vector_store %arg3[%c0_6, %c0_7], %7 {strides = array<i32>} : memref<8x128xf32, #tpu.memory_space<vmem>>, vector<8x128xf32>,
    return
  }
}

module attributes {stable_mosaic.version = 11 : i64} {
  func.func @_mm_res_kernel(%arg0: memref<8x72xbf16, #tpu.memory_space<vmem>>, %arg1: memref<72x128xbf16, #tpu.memory_space<vmem>>, %arg2: memref<8x1xf32, #tpu.memory_space<vmem>>, %arg3: memref<8x128xf32, #tpu.memory_space<vmem>>, %arg4: memref<8x128xf32, #tpu.memory_space<vmem>>) attributes {dimension_semantics = [], scalar_prefetch = 0 : i64, scratch_operands = 0 : i64, tpu.core_type = #tpu.core_type<tc>} {
    %c0 = arith.constant 0 : index
    %c0_0 = arith.constant 0 : index
    %0 = vector.load %arg0[%c0, %c0_0] : memref<8x72xbf16, #tpu.memory_space<vmem>>, vector<8x72xbf16>
    %c0_1 = arith.constant 0 : index
    %c0_2 = arith.constant 0 : index
    %1 = vector.load %arg1[%c0_1, %c0_2] : memref<72x128xbf16, #tpu.memory_space<vmem>>, vector<72x128xbf16>
    %cst = arith.constant dense<0.000000e+00> : vector<8x128xf32>
    %2 = tpu.matmul %0, %1, %cst {dimension_numbers = #tpu.dot_dimension_numbers<[1], [0], [0], [1], [0, 0, 1, 1], [], []>} : vector<8x72xbf16>, vector<72x128xbf16>, vector<8x128xf32> -> vector<8x128xf32>
    %c0_3 = arith.constant 0 : index
    %c0_4 = arith.constant 0 : index
    %3 = vector.load %arg2[%c0_3, %c0_4] : memref<8x1xf32, #tpu.memory_space<vmem>>, vector<8x1xf32>
    %4 = vector.broadcast %3 : vector<8x1xf32> to vector<8x128xf32>
    %5 = arith.addf %2, %4 : vector<8x128xf32>
    %c0_5 = arith.constant 0 : index
    %c0_6 = arith.constant 0 : index
    %6 = vector.load %arg3[%c0_5, %c0_6] : memref<8x128xf32, #tpu.memory_space<vmem>>, vector<8x128xf32>
    %7 = arith.addf %5, %6 : vector<8x128xf32>
    %cst_7 = arith.constant 0.000000e+00 : f32
    %8 = vector.broadcast %cst_7 : f32 to vector<8x128xf32>
    %9 = arith.maximumf %7, %8 : vector<8x128xf32>
    %c0_8 = arith.constant 0 : index
    %c0_9 = arith.constant 0 : index
    %10 = vector.load %arg4[%c0_8, %c0_9] : memref<8x128xf32, #tpu.memory_space<vmem>>, vector<8x128xf32>
    tpu.vector_store %arg4[%c0_8, %c0_9], %9 {strides = array<i32>} : memref<8x128xf32, #tpu.memory_space<vmem>>, vector<8x128xf32>,
    return
  }
}

module attributes {stable_mosaic.version = 11 : i64} {
  func.func @_mm_kernel(%arg0: memref<16x72xbf16, #tpu.memory_space<vmem>>, %arg1: memref<72x32xbf16, #tpu.memory_space<vmem>>, %arg2: memref<16x1xf32, #tpu.memory_space<vmem>>, %arg3: memref<16x32xf32, #tpu.memory_space<vmem>>) attributes {dimension_semantics = [], scalar_prefetch = 0 : i64, scratch_operands = 0 : i64, tpu.core_type = #tpu.core_type<tc>} {
    %c0 = arith.constant 0 : index
    %c0_0 = arith.constant 0 : index
    %0 = vector.load %arg0[%c0, %c0_0] : memref<16x72xbf16, #tpu.memory_space<vmem>>, vector<16x72xbf16>
    %c0_1 = arith.constant 0 : index
    %c0_2 = arith.constant 0 : index
    %1 = vector.load %arg1[%c0_1, %c0_2] : memref<72x32xbf16, #tpu.memory_space<vmem>>, vector<72x32xbf16>
    %cst = arith.constant dense<0.000000e+00> : vector<16x32xf32>
    %2 = tpu.matmul %0, %1, %cst {dimension_numbers = #tpu.dot_dimension_numbers<[1], [0], [0], [1], [0, 0, 1, 1], [], []>} : vector<16x72xbf16>, vector<72x32xbf16>, vector<16x32xf32> -> vector<16x32xf32>
    %c0_3 = arith.constant 0 : index
    %c0_4 = arith.constant 0 : index
    %3 = vector.load %arg2[%c0_3, %c0_4] : memref<16x1xf32, #tpu.memory_space<vmem>>, vector<16x1xf32>
    %4 = vector.broadcast %3 : vector<16x1xf32> to vector<16x32xf32>
    %5 = arith.addf %2, %4 : vector<16x32xf32>
    %cst_5 = arith.constant 0.000000e+00 : f32
    %6 = vector.broadcast %cst_5 : f32 to vector<16x32xf32>
    %7 = arith.maximumf %5, %6 : vector<16x32xf32>
    %c0_6 = arith.constant 0 : index
    %c0_7 = arith.constant 0 : index
    %8 = vector.load %arg3[%c0_6, %c0_7] : memref<16x32xf32, #tpu.memory_space<vmem>>, vector<16x32xf32>
    tpu.vector_store %arg3[%c0_6, %c0_7], %7 {strides = array<i32>} : memref<16x32xf32, #tpu.memory_space<vmem>>, vector<16x32xf32>,
    return
  }
}

module attributes {stable_mosaic.version = 11 : i64} {
  func.func @_mm_kernel(%arg0: memref<16x8xbf16, #tpu.memory_space<vmem>>, %arg1: memref<8x32xbf16, #tpu.memory_space<vmem>>, %arg2: memref<16x1xf32, #tpu.memory_space<vmem>>, %arg3: memref<16x32xf32, #tpu.memory_space<vmem>>) attributes {dimension_semantics = [], scalar_prefetch = 0 : i64, scratch_operands = 0 : i64, tpu.core_type = #tpu.core_type<tc>} {
    %c0 = arith.constant 0 : index
    %c0_0 = arith.constant 0 : index
    %0 = vector.load %arg0[%c0, %c0_0] : memref<16x8xbf16, #tpu.memory_space<vmem>>, vector<16x8xbf16>
    %c0_1 = arith.constant 0 : index
    %c0_2 = arith.constant 0 : index
    %1 = vector.load %arg1[%c0_1, %c0_2] : memref<8x32xbf16, #tpu.memory_space<vmem>>, vector<8x32xbf16>
    %cst = arith.constant dense<0.000000e+00> : vector<16x32xf32>
    %2 = tpu.matmul %0, %1, %cst {dimension_numbers = #tpu.dot_dimension_numbers<[1], [0], [0], [1], [0, 0, 1, 1], [], []>} : vector<16x8xbf16>, vector<8x32xbf16>, vector<16x32xf32> -> vector<16x32xf32>
    %c0_3 = arith.constant 0 : index
    %c0_4 = arith.constant 0 : index
    %3 = vector.load %arg2[%c0_3, %c0_4] : memref<16x1xf32, #tpu.memory_space<vmem>>, vector<16x1xf32>
    %4 = vector.broadcast %3 : vector<16x1xf32> to vector<16x32xf32>
    %5 = arith.addf %2, %4 : vector<16x32xf32>
    %c0_5 = arith.constant 0 : index
    %c0_6 = arith.constant 0 : index
    %6 = vector.load %arg3[%c0_5, %c0_6] : memref<16x32xf32, #tpu.memory_space<vmem>>, vector<16x32xf32>
    tpu.vector_store %arg3[%c0_5, %c0_6], %5 {strides = array<i32>} : memref<16x32xf32, #tpu.memory_space<vmem>>, vector<16x32xf32>,
    return
  }
}

module attributes {stable_mosaic.version = 11 : i64} {
  func.func @_mm_res_kernel(%arg0: memref<16x144xbf16, #tpu.memory_space<vmem>>, %arg1: memref<144x32xbf16, #tpu.memory_space<vmem>>, %arg2: memref<16x1xf32, #tpu.memory_space<vmem>>, %arg3: memref<16x32xf32, #tpu.memory_space<vmem>>, %arg4: memref<16x32xf32, #tpu.memory_space<vmem>>) attributes {dimension_semantics = [], scalar_prefetch = 0 : i64, scratch_operands = 0 : i64, tpu.core_type = #tpu.core_type<tc>} {
    %c0 = arith.constant 0 : index
    %c0_0 = arith.constant 0 : index
    %0 = vector.load %arg0[%c0, %c0_0] : memref<16x144xbf16, #tpu.memory_space<vmem>>, vector<16x144xbf16>
    %c0_1 = arith.constant 0 : index
    %c0_2 = arith.constant 0 : index
    %1 = vector.load %arg1[%c0_1, %c0_2] : memref<144x32xbf16, #tpu.memory_space<vmem>>, vector<144x32xbf16>
    %cst = arith.constant dense<0.000000e+00> : vector<16x32xf32>
    %2 = tpu.matmul %0, %1, %cst {dimension_numbers = #tpu.dot_dimension_numbers<[1], [0], [0], [1], [0, 0, 1, 1], [], []>} : vector<16x144xbf16>, vector<144x32xbf16>, vector<16x32xf32> -> vector<16x32xf32>
    %c0_3 = arith.constant 0 : index
    %c0_4 = arith.constant 0 : index
    %3 = vector.load %arg2[%c0_3, %c0_4] : memref<16x1xf32, #tpu.memory_space<vmem>>, vector<16x1xf32>
    %4 = vector.broadcast %3 : vector<16x1xf32> to vector<16x32xf32>
    %5 = arith.addf %2, %4 : vector<16x32xf32>
    %c0_5 = arith.constant 0 : index
    %c0_6 = arith.constant 0 : index
    %6 = vector.load %arg3[%c0_5, %c0_6] : memref<16x32xf32, #tpu.memory_space<vmem>>, vector<16x32xf32>
    %7 = arith.addf %5, %6 : vector<16x32xf32>
    %cst_7 = arith.constant 0.000000e+00 : f32
    %8 = vector.broadcast %cst_7 : f32 to vector<16x32xf32>
    %9 = arith.maximumf %7, %8 : vector<16x32xf32>
    %c0_8 = arith.constant 0 : index
    %c0_9 = arith.constant 0 : index
    %10 = vector.load %arg4[%c0_8, %c0_9] : memref<16x32xf32, #tpu.memory_space<vmem>>, vector<16x32xf32>
    tpu.vector_store %arg4[%c0_8, %c0_9], %9 {strides = array<i32>} : memref<16x32xf32, #tpu.memory_space<vmem>>, vector<16x32xf32>,
    return
  }
}

module attributes {stable_mosaic.version = 11 : i64} {
  func.func @_mm_kernel(%arg0: memref<16x144xbf16, #tpu.memory_space<vmem>>, %arg1: memref<144x32xbf16, #tpu.memory_space<vmem>>, %arg2: memref<16x1xf32, #tpu.memory_space<vmem>>, %arg3: memref<16x32xf32, #tpu.memory_space<vmem>>) attributes {dimension_semantics = [], scalar_prefetch = 0 : i64, scratch_operands = 0 : i64, tpu.core_type = #tpu.core_type<tc>} {
    %c0 = arith.constant 0 : index
    %c0_0 = arith.constant 0 : index
    %0 = vector.load %arg0[%c0, %c0_0] : memref<16x144xbf16, #tpu.memory_space<vmem>>, vector<16x144xbf16>
    %c0_1 = arith.constant 0 : index
    %c0_2 = arith.constant 0 : index
    %1 = vector.load %arg1[%c0_1, %c0_2] : memref<144x32xbf16, #tpu.memory_space<vmem>>, vector<144x32xbf16>
    %cst = arith.constant dense<0.000000e+00> : vector<16x32xf32>
    %2 = tpu.matmul %0, %1, %cst {dimension_numbers = #tpu.dot_dimension_numbers<[1], [0], [0], [1], [0, 0, 1, 1], [], []>} : vector<16x144xbf16>, vector<144x32xbf16>, vector<16x32xf32> -> vector<16x32xf32>
    %c0_3 = arith.constant 0 : index
    %c0_4 = arith.constant 0 : index
    %3 = vector.load %arg2[%c0_3, %c0_4] : memref<16x1xf32, #tpu.memory_space<vmem>>, vector<16x1xf32>
    %4 = vector.broadcast %3 : vector<16x1xf32> to vector<16x32xf32>
    %5 = arith.addf %2, %4 : vector<16x32xf32>
    %cst_5 = arith.constant 0.000000e+00 : f32
    %6 = vector.broadcast %cst_5 : f32 to vector<16x32xf32>
    %7 = arith.maximumf %5, %6 : vector<16x32xf32>
    %c0_6 = arith.constant 0 : index
    %c0_7 = arith.constant 0 : index
    %8 = vector.load %arg3[%c0_6, %c0_7] : memref<16x32xf32, #tpu.memory_space<vmem>>, vector<16x32xf32>
    tpu.vector_store %arg3[%c0_6, %c0_7], %7 {strides = array<i32>} : memref<16x32xf32, #tpu.memory_space<vmem>>, vector<16x32xf32>,
    return
  }
}

module attributes {stable_mosaic.version = 11 : i64} {
  func.func @_mm_kernel(%arg0: memref<24x144xbf16, #tpu.memory_space<vmem>>, %arg1: memref<144x32xbf16, #tpu.memory_space<vmem>>, %arg2: memref<24x1xf32, #tpu.memory_space<vmem>>, %arg3: memref<24x32xf32, #tpu.memory_space<vmem>>) attributes {dimension_semantics = [], scalar_prefetch = 0 : i64, scratch_operands = 0 : i64, tpu.core_type = #tpu.core_type<tc>} {
    %c0 = arith.constant 0 : index
    %c0_0 = arith.constant 0 : index
    %0 = vector.load %arg0[%c0, %c0_0] : memref<24x144xbf16, #tpu.memory_space<vmem>>, vector<24x144xbf16>
    %c0_1 = arith.constant 0 : index
    %c0_2 = arith.constant 0 : index
    %1 = vector.load %arg1[%c0_1, %c0_2] : memref<144x32xbf16, #tpu.memory_space<vmem>>, vector<144x32xbf16>
    %cst = arith.constant dense<0.000000e+00> : vector<24x32xf32>
    %2 = tpu.matmul %0, %1, %cst {dimension_numbers = #tpu.dot_dimension_numbers<[1], [0], [0], [1], [0, 0, 1, 1], [], []>} : vector<24x144xbf16>, vector<144x32xbf16>, vector<24x32xf32> -> vector<24x32xf32>
    %c0_3 = arith.constant 0 : index
    %c0_4 = arith.constant 0 : index
    %3 = vector.load %arg2[%c0_3, %c0_4] : memref<24x1xf32, #tpu.memory_space<vmem>>, vector<24x1xf32>
    %4 = vector.broadcast %3 : vector<24x1xf32> to vector<24x32xf32>
    %5 = arith.addf %2, %4 : vector<24x32xf32>
    %cst_5 = arith.constant 0.000000e+00 : f32
    %6 = vector.broadcast %cst_5 : f32 to vector<24x32xf32>
    %7 = arith.maximumf %5, %6 : vector<24x32xf32>
    %c0_6 = arith.constant 0 : index
    %c0_7 = arith.constant 0 : index
    %8 = vector.load %arg3[%c0_6, %c0_7] : memref<24x32xf32, #tpu.memory_space<vmem>>, vector<24x32xf32>
    tpu.vector_store %arg3[%c0_6, %c0_7], %7 {strides = array<i32>} : memref<24x32xf32, #tpu.memory_space<vmem>>, vector<24x32xf32>,
    return
  }
}

module attributes {stable_mosaic.version = 11 : i64} {
  func.func @_mm_kernel(%arg0: memref<24x16xbf16, #tpu.memory_space<vmem>>, %arg1: memref<16x32xbf16, #tpu.memory_space<vmem>>, %arg2: memref<24x1xf32, #tpu.memory_space<vmem>>, %arg3: memref<24x32xf32, #tpu.memory_space<vmem>>) attributes {dimension_semantics = [], scalar_prefetch = 0 : i64, scratch_operands = 0 : i64, tpu.core_type = #tpu.core_type<tc>} {
    %c0 = arith.constant 0 : index
    %c0_0 = arith.constant 0 : index
    %0 = vector.load %arg0[%c0, %c0_0] : memref<24x16xbf16, #tpu.memory_space<vmem>>, vector<24x16xbf16>
    %c0_1 = arith.constant 0 : index
    %c0_2 = arith.constant 0 : index
    %1 = vector.load %arg1[%c0_1, %c0_2] : memref<16x32xbf16, #tpu.memory_space<vmem>>, vector<16x32xbf16>
    %cst = arith.constant dense<0.000000e+00> : vector<24x32xf32>
    %2 = tpu.matmul %0, %1, %cst {dimension_numbers = #tpu.dot_dimension_numbers<[1], [0], [0], [1], [0, 0, 1, 1], [], []>} : vector<24x16xbf16>, vector<16x32xbf16>, vector<24x32xf32> -> vector<24x32xf32>
    %c0_3 = arith.constant 0 : index
    %c0_4 = arith.constant 0 : index
    %3 = vector.load %arg2[%c0_3, %c0_4] : memref<24x1xf32, #tpu.memory_space<vmem>>, vector<24x1xf32>
    %4 = vector.broadcast %3 : vector<24x1xf32> to vector<24x32xf32>
    %5 = arith.addf %2, %4 : vector<24x32xf32>
    %c0_5 = arith.constant 0 : index
    %c0_6 = arith.constant 0 : index
    %6 = vector.load %arg3[%c0_5, %c0_6] : memref<24x32xf32, #tpu.memory_space<vmem>>, vector<24x32xf32>
    tpu.vector_store %arg3[%c0_5, %c0_6], %5 {strides = array<i32>} : memref<24x32xf32, #tpu.memory_space<vmem>>, vector<24x32xf32>,
    return
  }
}

module attributes {stable_mosaic.version = 11 : i64} {
  func.func @_mm_res_kernel(%arg0: memref<24x216xbf16, #tpu.memory_space<vmem>>, %arg1: memref<216x32xbf16, #tpu.memory_space<vmem>>, %arg2: memref<24x1xf32, #tpu.memory_space<vmem>>, %arg3: memref<24x32xf32, #tpu.memory_space<vmem>>, %arg4: memref<24x32xf32, #tpu.memory_space<vmem>>) attributes {dimension_semantics = [], scalar_prefetch = 0 : i64, scratch_operands = 0 : i64, tpu.core_type = #tpu.core_type<tc>} {
    %c0 = arith.constant 0 : index
    %c0_0 = arith.constant 0 : index
    %0 = vector.load %arg0[%c0, %c0_0] : memref<24x216xbf16, #tpu.memory_space<vmem>>, vector<24x216xbf16>
    %c0_1 = arith.constant 0 : index
    %c0_2 = arith.constant 0 : index
    %1 = vector.load %arg1[%c0_1, %c0_2] : memref<216x32xbf16, #tpu.memory_space<vmem>>, vector<216x32xbf16>
    %cst = arith.constant dense<0.000000e+00> : vector<24x32xf32>
    %2 = tpu.matmul %0, %1, %cst {dimension_numbers = #tpu.dot_dimension_numbers<[1], [0], [0], [1], [0, 0, 1, 1], [], []>} : vector<24x216xbf16>, vector<216x32xbf16>, vector<24x32xf32> -> vector<24x32xf32>
    %c0_3 = arith.constant 0 : index
    %c0_4 = arith.constant 0 : index
    %3 = vector.load %arg2[%c0_3, %c0_4] : memref<24x1xf32, #tpu.memory_space<vmem>>, vector<24x1xf32>
    %4 = vector.broadcast %3 : vector<24x1xf32> to vector<24x32xf32>
    %5 = arith.addf %2, %4 : vector<24x32xf32>
    %c0_5 = arith.constant 0 : index
    %c0_6 = arith.constant 0 : index
    %6 = vector.load %arg3[%c0_5, %c0_6] : memref<24x32xf32, #tpu.memory_space<vmem>>, vector<24x32xf32>
    %7 = arith.addf %5, %6 : vector<24x32xf32>
    %cst_7 = arith.constant 0.000000e+00 : f32
    %8 = vector.broadcast %cst_7 : f32 to vector<24x32xf32>
    %9 = arith.maximumf %7, %8 : vector<24x32xf32>
    %c0_8 = arith.constant 0 : index
    %c0_9 = arith.constant 0 : index
    %10 = vector.load %arg4[%c0_8, %c0_9] : memref<24x32xf32, #tpu.memory_space<vmem>>, vector<24x32xf32>
    tpu.vector_store %arg4[%c0_8, %c0_9], %9 {strides = array<i32>} : memref<24x32xf32, #tpu.memory_space<vmem>>, vector<24x32xf32>,
    return
  }
}

module attributes {stable_mosaic.version = 11 : i64} {
  func.func @_mm_kernel(%arg0: memref<24x216xbf16, #tpu.memory_space<vmem>>, %arg1: memref<216x32xbf16, #tpu.memory_space<vmem>>, %arg2: memref<24x1xf32, #tpu.memory_space<vmem>>, %arg3: memref<24x32xf32, #tpu.memory_space<vmem>>) attributes {dimension_semantics = [], scalar_prefetch = 0 : i64, scratch_operands = 0 : i64, tpu.core_type = #tpu.core_type<tc>} {
    %c0 = arith.constant 0 : index
    %c0_0 = arith.constant 0 : index
    %0 = vector.load %arg0[%c0, %c0_0] : memref<24x216xbf16, #tpu.memory_space<vmem>>, vector<24x216xbf16>
    %c0_1 = arith.constant 0 : index
    %c0_2 = arith.constant 0 : index
    %1 = vector.load %arg1[%c0_1, %c0_2] : memref<216x32xbf16, #tpu.memory_space<vmem>>, vector<216x32xbf16>
    %cst = arith.constant dense<0.000000e+00> : vector<24x32xf32>
    %2 = tpu.matmul %0, %1, %cst {dimension_numbers = #tpu.dot_dimension_numbers<[1], [0], [0], [1], [0, 0, 1, 1], [], []>} : vector<24x216xbf16>, vector<216x32xbf16>, vector<24x32xf32> -> vector<24x32xf32>
    %c0_3 = arith.constant 0 : index
    %c0_4 = arith.constant 0 : index
    %3 = vector.load %arg2[%c0_3, %c0_4] : memref<24x1xf32, #tpu.memory_space<vmem>>, vector<24x1xf32>
    %4 = vector.broadcast %3 : vector<24x1xf32> to vector<24x32xf32>
    %5 = arith.addf %2, %4 : vector<24x32xf32>
    %cst_5 = arith.constant 0.000000e+00 : f32
    %6 = vector.broadcast %cst_5 : f32 to vector<24x32xf32>
    %7 = arith.maximumf %5, %6 : vector<24x32xf32>
    %c0_6 = arith.constant 0 : index
    %c0_7 = arith.constant 0 : index
    %8 = vector.load %arg3[%c0_6, %c0_7] : memref<24x32xf32, #tpu.memory_space<vmem>>, vector<24x32xf32>
    tpu.vector_store %arg3[%c0_6, %c0_7], %7 {strides = array<i32>} : memref<24x32xf32, #tpu.memory_space<vmem>>, vector<24x32xf32>,
    return
  }
}

module attributes {stable_mosaic.version = 11 : i64} {
  func.func @_mm_kernel(%arg0: memref<32x216xbf16, #tpu.memory_space<vmem>>, %arg1: memref<216x32xbf16, #tpu.memory_space<vmem>>, %arg2: memref<32x1xf32, #tpu.memory_space<vmem>>, %arg3: memref<32x32xf32, #tpu.memory_space<vmem>>) attributes {dimension_semantics = [], scalar_prefetch = 0 : i64, scratch_operands = 0 : i64, tpu.core_type = #tpu.core_type<tc>} {
    %c0 = arith.constant 0 : index
    %c0_0 = arith.constant 0 : index
    %0 = vector.load %arg0[%c0, %c0_0] : memref<32x216xbf16, #tpu.memory_space<vmem>>, vector<32x216xbf16>
    %c0_1 = arith.constant 0 : index
    %c0_2 = arith.constant 0 : index
    %1 = vector.load %arg1[%c0_1, %c0_2] : memref<216x32xbf16, #tpu.memory_space<vmem>>, vector<216x32xbf16>
    %cst = arith.constant dense<0.000000e+00> : vector<32x32xf32>
    %2 = tpu.matmul %0, %1, %cst {dimension_numbers = #tpu.dot_dimension_numbers<[1], [0], [0], [1], [0, 0, 1, 1], [], []>} : vector<32x216xbf16>, vector<216x32xbf16>, vector<32x32xf32> -> vector<32x32xf32>
    %c0_3 = arith.constant 0 : index
    %c0_4 = arith.constant 0 : index
    %3 = vector.load %arg2[%c0_3, %c0_4] : memref<32x1xf32, #tpu.memory_space<vmem>>, vector<32x1xf32>
    %4 = vector.broadcast %3 : vector<32x1xf32> to vector<32x32xf32>
    %5 = arith.addf %2, %4 : vector<32x32xf32>
    %cst_5 = arith.constant 0.000000e+00 : f32
    %6 = vector.broadcast %cst_5 : f32 to vector<32x32xf32>
    %7 = arith.maximumf %5, %6 : vector<32x32xf32>
    %c0_6 = arith.constant 0 : index
    %c0_7 = arith.constant 0 : index
    %8 = vector.load %arg3[%c0_6, %c0_7] : memref<32x32xf32, #tpu.memory_space<vmem>>, vector<32x32xf32>
    tpu.vector_store %arg3[%c0_6, %c0_7], %7 {strides = array<i32>} : memref<32x32xf32, #tpu.memory_space<vmem>>, vector<32x32xf32>,
    return
  }
}

module attributes {stable_mosaic.version = 11 : i64} {
  func.func @_mm_kernel(%arg0: memref<32x24xbf16, #tpu.memory_space<vmem>>, %arg1: memref<24x32xbf16, #tpu.memory_space<vmem>>, %arg2: memref<32x1xf32, #tpu.memory_space<vmem>>, %arg3: memref<32x32xf32, #tpu.memory_space<vmem>>) attributes {dimension_semantics = [], scalar_prefetch = 0 : i64, scratch_operands = 0 : i64, tpu.core_type = #tpu.core_type<tc>} {
    %c0 = arith.constant 0 : index
    %c0_0 = arith.constant 0 : index
    %0 = vector.load %arg0[%c0, %c0_0] : memref<32x24xbf16, #tpu.memory_space<vmem>>, vector<32x24xbf16>
    %c0_1 = arith.constant 0 : index
    %c0_2 = arith.constant 0 : index
    %1 = vector.load %arg1[%c0_1, %c0_2] : memref<24x32xbf16, #tpu.memory_space<vmem>>, vector<24x32xbf16>
    %cst = arith.constant dense<0.000000e+00> : vector<32x32xf32>
    %2 = tpu.matmul %0, %1, %cst {dimension_numbers = #tpu.dot_dimension_numbers<[1], [0], [0], [1], [0, 0, 1, 1], [], []>} : vector<32x24xbf16>, vector<24x32xbf16>, vector<32x32xf32> -> vector<32x32xf32>
    %c0_3 = arith.constant 0 : index
    %c0_4 = arith.constant 0 : index
    %3 = vector.load %arg2[%c0_3, %c0_4] : memref<32x1xf32, #tpu.memory_space<vmem>>, vector<32x1xf32>
    %4 = vector.broadcast %3 : vector<32x1xf32> to vector<32x32xf32>
    %5 = arith.addf %2, %4 : vector<32x32xf32>
    %c0_5 = arith.constant 0 : index
    %c0_6 = arith.constant 0 : index
    %6 = vector.load %arg3[%c0_5, %c0_6] : memref<32x32xf32, #tpu.memory_space<vmem>>, vector<32x32xf32>
    tpu.vector_store %arg3[%c0_5, %c0_6], %5 {strides = array<i32>} : memref<32x32xf32, #tpu.memory_space<vmem>>, vector<32x32xf32>,
    return
  }
}

module attributes {stable_mosaic.version = 11 : i64} {
  func.func @_mm_res_kernel(%arg0: memref<32x288xbf16, #tpu.memory_space<vmem>>, %arg1: memref<288x32xbf16, #tpu.memory_space<vmem>>, %arg2: memref<32x1xf32, #tpu.memory_space<vmem>>, %arg3: memref<32x32xf32, #tpu.memory_space<vmem>>, %arg4: memref<32x32xf32, #tpu.memory_space<vmem>>) attributes {dimension_semantics = [], scalar_prefetch = 0 : i64, scratch_operands = 0 : i64, tpu.core_type = #tpu.core_type<tc>} {
    %c0 = arith.constant 0 : index
    %c0_0 = arith.constant 0 : index
    %0 = vector.load %arg0[%c0, %c0_0] : memref<32x288xbf16, #tpu.memory_space<vmem>>, vector<32x288xbf16>
    %c0_1 = arith.constant 0 : index
    %c0_2 = arith.constant 0 : index
    %1 = vector.load %arg1[%c0_1, %c0_2] : memref<288x32xbf16, #tpu.memory_space<vmem>>, vector<288x32xbf16>
    %cst = arith.constant dense<0.000000e+00> : vector<32x32xf32>
    %2 = tpu.matmul %0, %1, %cst {dimension_numbers = #tpu.dot_dimension_numbers<[1], [0], [0], [1], [0, 0, 1, 1], [], []>} : vector<32x288xbf16>, vector<288x32xbf16>, vector<32x32xf32> -> vector<32x32xf32>
    %c0_3 = arith.constant 0 : index
    %c0_4 = arith.constant 0 : index
    %3 = vector.load %arg2[%c0_3, %c0_4] : memref<32x1xf32, #tpu.memory_space<vmem>>, vector<32x1xf32>
    %4 = vector.broadcast %3 : vector<32x1xf32> to vector<32x32xf32>
    %5 = arith.addf %2, %4 : vector<32x32xf32>
    %c0_5 = arith.constant 0 : index
    %c0_6 = arith.constant 0 : index
    %6 = vector.load %arg3[%c0_5, %c0_6] : memref<32x32xf32, #tpu.memory_space<vmem>>, vector<32x32xf32>
    %7 = arith.addf %5, %6 : vector<32x32xf32>
    %cst_7 = arith.constant 0.000000e+00 : f32
    %8 = vector.broadcast %cst_7 : f32 to vector<32x32xf32>
    %9 = arith.maximumf %7, %8 : vector<32x32xf32>
    %c0_8 = arith.constant 0 : index
    %c0_9 = arith.constant 0 : index
    %10 = vector.load %arg4[%c0_8, %c0_9] : memref<32x32xf32, #tpu.memory_space<vmem>>, vector<32x32xf32>
    tpu.vector_store %arg4[%c0_8, %c0_9], %9 {strides = array<i32>} : memref<32x32xf32, #tpu.memory_space<vmem>>, vector<32x32xf32>,
    return
  }
}

module attributes {stable_mosaic.version = 11 : i64} {
  func.func @_mm_kernel(%arg0: memref<32x288xbf16, #tpu.memory_space<vmem>>, %arg1: memref<288x32xbf16, #tpu.memory_space<vmem>>, %arg2: memref<32x1xf32, #tpu.memory_space<vmem>>, %arg3: memref<32x32xf32, #tpu.memory_space<vmem>>) attributes {dimension_semantics = [], scalar_prefetch = 0 : i64, scratch_operands = 0 : i64, tpu.core_type = #tpu.core_type<tc>} {
    %c0 = arith.constant 0 : index
    %c0_0 = arith.constant 0 : index
    %0 = vector.load %arg0[%c0, %c0_0] : memref<32x288xbf16, #tpu.memory_space<vmem>>, vector<32x288xbf16>
    %c0_1 = arith.constant 0 : index
    %c0_2 = arith.constant 0 : index
    %1 = vector.load %arg1[%c0_1, %c0_2] : memref<288x32xbf16, #tpu.memory_space<vmem>>, vector<288x32xbf16>
    %cst = arith.constant dense<0.000000e+00> : vector<32x32xf32>
    %2 = tpu.matmul %0, %1, %cst {dimension_numbers = #tpu.dot_dimension_numbers<[1], [0], [0], [1], [0, 0, 1, 1], [], []>} : vector<32x288xbf16>, vector<288x32xbf16>, vector<32x32xf32> -> vector<32x32xf32>
    %c0_3 = arith.constant 0 : index
    %c0_4 = arith.constant 0 : index
    %3 = vector.load %arg2[%c0_3, %c0_4] : memref<32x1xf32, #tpu.memory_space<vmem>>, vector<32x1xf32>
    %4 = vector.broadcast %3 : vector<32x1xf32> to vector<32x32xf32>
    %5 = arith.addf %2, %4 : vector<32x32xf32>
    %cst_5 = arith.constant 0.000000e+00 : f32
    %6 = vector.broadcast %cst_5 : f32 to vector<32x32xf32>
    %7 = arith.maximumf %5, %6 : vector<32x32xf32>
    %c0_6 = arith.constant 0 : index
    %c0_7 = arith.constant 0 : index
    %8 = vector.load %arg3[%c0_6, %c0_7] : memref<32x32xf32, #tpu.memory_space<vmem>>, vector<32x32xf32>
    tpu.vector_store %arg3[%c0_6, %c0_7], %7 {strides = array<i32>} : memref<32x32xf32, #tpu.memory_space<vmem>>, vector<32x32xf32>,
    return
  }
}

module attributes {stable_mosaic.version = 11 : i64} {
  func.func @_mm_kernel(%arg0: memref<1x288xbf16, #tpu.memory_space<vmem>>, %arg1: memref<288x32xbf16, #tpu.memory_space<vmem>>, %arg2: memref<1x1xf32, #tpu.memory_space<vmem>>, %arg3: memref<1x32xf32, #tpu.memory_space<vmem>>) attributes {dimension_semantics = [], scalar_prefetch = 0 : i64, scratch_operands = 0 : i64, tpu.core_type = #tpu.core_type<tc>} {
    %c0 = arith.constant 0 : index
    %c0_0 = arith.constant 0 : index
    %0 = vector.load %arg0[%c0, %c0_0] : memref<1x288xbf16, #tpu.memory_space<vmem>>, vector<1x288xbf16>
    %c0_1 = arith.constant 0 : index
    %c0_2 = arith.constant 0 : index
    %1 = vector.load %arg1[%c0_1, %c0_2] : memref<288x32xbf16, #tpu.memory_space<vmem>>, vector<288x32xbf16>
    %cst = arith.constant dense<0.000000e+00> : vector<1x32xf32>
    %2 = tpu.matmul %0, %1, %cst {dimension_numbers = #tpu.dot_dimension_numbers<[1], [0], [0], [1], [0, 0, 1, 1], [], []>} : vector<1x288xbf16>, vector<288x32xbf16>, vector<1x32xf32> -> vector<1x32xf32>
    %c0_3 = arith.constant 0 : index
    %c0_4 = arith.constant 0 : index
    %3 = vector.load %arg2[%c0_3, %c0_4] : memref<1x1xf32, #tpu.memory_space<vmem>>, vector<1x1xf32>
    %4 = vector.broadcast %3 : vector<1x1xf32> to vector<1x32xf32>
    %5 = arith.addf %2, %4 : vector<1x32xf32>
    %c0_5 = arith.constant 0 : index
    %c0_6 = arith.constant 0 : index
    %6 = vector.load %arg3[%c0_5, %c0_6] : memref<1x32xf32, #tpu.memory_space<vmem>>, vector<1x32xf32>
    tpu.vector_store %arg3[%c0_5, %c0_6], %5 {strides = array<i32>} : memref<1x32xf32, #tpu.memory_space<vmem>>, vector<1x32xf32>,
    return
  }
}

module attributes {stable_mosaic.version = 11 : i64} {
  func.func @_mm_kernel(%arg0: memref<2x16xbf16, #tpu.memory_space<vmem>>, %arg1: memref<16x1024xbf16, #tpu.memory_space<vmem>>, %arg2: memref<2x1xf32, #tpu.memory_space<vmem>>, %arg3: memref<2x1024xf32, #tpu.memory_space<vmem>>) attributes {dimension_semantics = [], scalar_prefetch = 0 : i64, scratch_operands = 0 : i64, tpu.core_type = #tpu.core_type<tc>} {
    %c0 = arith.constant 0 : index
    %c0_0 = arith.constant 0 : index
    %0 = vector.load %arg0[%c0, %c0_0] : memref<2x16xbf16, #tpu.memory_space<vmem>>, vector<2x16xbf16>
    %c0_1 = arith.constant 0 : index
    %c0_2 = arith.constant 0 : index
    %1 = vector.load %arg1[%c0_1, %c0_2] : memref<16x1024xbf16, #tpu.memory_space<vmem>>, vector<16x1024xbf16>
    %cst = arith.constant dense<0.000000e+00> : vector<2x1024xf32>
    %2 = tpu.matmul %0, %1, %cst {dimension_numbers = #tpu.dot_dimension_numbers<[1], [0], [0], [1], [0, 0, 1, 1], [], []>} : vector<2x16xbf16>, vector<16x1024xbf16>, vector<2x1024xf32> -> vector<2x1024xf32>
    %c0_3 = arith.constant 0 : index
    %c0_4 = arith.constant 0 : index
    %3 = vector.load %arg2[%c0_3, %c0_4] : memref<2x1xf32, #tpu.memory_space<vmem>>, vector<2x1xf32>
    %4 = vector.broadcast %3 : vector<2x1xf32> to vector<2x1024xf32>
    %5 = arith.addf %2, %4 : vector<2x1024xf32>
    %c0_5 = arith.constant 0 : index
    %c0_6 = arith.constant 0 : index
    %6 = vector.load %arg3[%c0_5, %c0_6] : memref<2x1024xf32, #tpu.memory_space<vmem>>, vector<2x1024xf32>
    tpu.vector_store %arg3[%c0_5, %c0_6], %5 {strides = array<i32>} : memref<2x1024xf32, #tpu.memory_space<vmem>>, vector<2x1024xf32>,
    return
  }
}

</mosaic_0001>

<llo_original>
// kernel: forward.26
$region0: #{forward.26}
  #allocation0 [shape = 'u32[]', space=smem, size = 0x4, offset = 0x4, fixed_abs, tag = 'smem constant byte address 0x4 - core index']
  #allocation1 [shape = 'u32[144,128]{1,0:T(1,128)}', space=vmem, size = 0x12000, scoped, tag = 'internal scratch']
  %s0 = inlined_call_operand.vmem [shape: bf16[2,6,256], index: 0, kind: input, shape index: {}]
  %s1 = inlined_call_operand.hbm [shape: bf16[2,256,1024], index: 1, kind: input, shape index: {}]
  %s2 = inlined_call_operand.vmem [shape: f32[2,6,1024], index: 2, kind: output, shape index: {}]
  %s3 = sld [smem:[#allocation0]]
  $region45: #{forward.26} parent=0
    _
  %s5 = ssub.s32 1, %s3
  %s6 = scalar_select 0, %s5, %s3
  $region1: #{forward.26} parent=0
    #allocation2 [shape = 'u8[1048576]{0}', space=vmem, size = 0x100000, scoped, tag = 'input window, operand 1']
    #allocation3 [shape = 's32[2]{0}', space=sflag, size = 0x8, scoped, tag = 'scoped memory for forward.26']
    %7 = vsyncpa [#allocation3], 0
    %s8 = scalar_lea.sflag [#allocation3], 1
    %9 = vsyncpa %s8, 0
    loop: start=0, step=1, limit=4
    $region2: #{forward.26} parent=1 // loop_pre_header
      _
    $region3: #{forward.26} parent=1 // loop_header
      %s11 = sphi 0, %s15
      %p12 = scmp.ge.s32.totalorder %s11, 4
      %s21 = sphi 0, %s23
      %s24 = sphi 0, %s21
      %s25 = sphi 0, %s24
      %s41 = sphi 0, %s25
      %s47 = sphi 0, %s49
      %s50 = sphi 0, %s47
      %s51 = sphi 0, %s50
      %s67 = sphi 0, %s51
      %s73 = sphi 0, %s75
      %s76 = sphi 0, %s73
      %s77 = sphi 0, %s76
      %s93 = sphi 0, %s77
    $region4: #{forward.26} parent=1 // loop_header_branch
      %14 = sbr.rel (%p12) target = $region8
    $region5: #{forward.26} parent=1 // loop_body
      %s16 = ssub.s32 %s11, 1
      %s17 = ssub.s32 %s11, 2
      %s18 = sadd.s32 %s11, 1
      %s19 = ssub.s32 %s11, %s18
      %p20 = scmp.eq.s32.totalorder %s19, 0
      %s22 = sadd.s32 %s21, 1
      %s23 = scalar_select %p20, %s21, %s22
      %p26 = pneg %p20
      %p27 = scmp.eq.s32.totalorder %s11, 1
      %p28 = por %p26, %p27
      %p29 = scmp.ne.s32.totalorder %s21, %s24
      %p30 = scmp.eq.s32.totalorder %s11, 0
      %p31 = por %p29, %p30
      %p32 = scmp.ne.s32.totalorder %s21, %s24
      %p33 = scmp.eq.s32.totalorder %s16, 1
      %p34 = por %p32, %p33
      %p35 = scmp.ne.s32.totalorder %s24, %s25
      %p36 = scmp.eq.s32.totalorder %s16, 0
      %p37 = por %p35, %p36
      %p38 = scmp.ne.s32.totalorder %s24, %s25
      %p39 = scmp.eq.s32.totalorder %s17, 1
      %p40 = por %p38, %p39
      %p42 = scmp.ne.s32.totalorder %s25, %s41
      %p43 = scmp.eq.s32.totalorder %s17, 0
      %p44 = por %p42, %p43
      %s45 = ssub.s32 %s11, %s18
      %p46 = scmp.eq.s32.totalorder %s45, 0
      %s48 = sadd.s32 %s47, 1
      %s49 = scalar_select %p46, %s47, %s48
      %p52 = pneg %p46
      %p53 = scmp.eq.s32.totalorder %s11, 1
      %p54 = por %p52, %p53
      %p55 = scmp.ne.s32.totalorder %s47, %s50
      %p56 = scmp.eq.s32.totalorder %s11, 0
      %p57 = por %p55, %p56
      %p58 = scmp.ne.s32.totalorder %s47, %s50
      %p59 = scmp.eq.s32.totalorder %s16, 1
      %p60 = por %p58, %p59
      %p61 = scmp.ne.s32.totalorder %s50, %s51
      %p62 = scmp.eq.s32.totalorder %s16, 0
      %p63 = por %p61, %p62
      %p64 = scmp.ne.s32.totalorder %s50, %s51
      %p65 = scmp.eq.s32.totalorder %s17, 1
      %p66 = por %p64, %p65
      %p68 = scmp.ne.s32.totalorder %s51, %s67
      %p69 = scmp.eq.s32.totalorder %s17, 0
      %p70 = por %p68, %p69
      %s71 = ssub.s32 %s11, %s18
      %p72 = scmp.eq.s32.totalorder %s71, 0
      %s74 = sadd.s32 %s73, 1
      %s75 = scalar_select %p72, %s73, %s74
      %p78 = pneg %p72
      %p79 = scmp.eq.s32.totalorder %s11, 1
      %p80 = por %p78, %p79
      %p81 = scmp.ne.s32.totalorder %s73, %s76
      %p82 = scmp.eq.s32.totalorder %s11, 0
      %p83 = por %p81, %p82
      %p84 = scmp.ne.s32.totalorder %s73, %s76
      %p85 = scmp.eq.s32.totalorder %s16, 1
      %p86 = por %p84, %p85
      %p87 = scmp.ne.s32.totalorder %s76, %s77
      %p88 = scmp.eq.s32.totalorder %s16, 0
      %p89 = por %p87, %p88
      %p90 = scmp.ne.s32.totalorder %s76, %s77
      %p91 = scmp.eq.s32.totalorder %s17, 1
      %p92 = por %p90, %p91
      %p94 = scmp.ne.s32.totalorder %s77, %s93
      %p95 = scmp.eq.s32.totalorder %s17, 0
      %p96 = por %p94, %p95
      %p97 = scmp.le.s32.totalorder 1, %s11
      %p98 = scmp.lt.s32.totalorder %s11, 3
      %p99 = pnand %p97, %p98
      %p100 = pneg %p99
      // Predicated region
      $region9: #{forward.26} parent=5 // pred_check
        _
      $region10: #{forward.26} parent=5 // pred_check_branch
        %102 = sbr.rel (%p99) target = $region12
      $region11: #{forward.26} parent=5 // pred_region
        %s103 = ssub.s32 %s11, 1
      $region12: #{forward.26} parent=5 // pred_fallthru
        _
      %p104 = scmp.lt.s32.totalorder %s11, 2
      // Predicated region
      $region13: #{forward.26} parent=5 // pred_check
        %p105 = pneg %p104
      $region14: #{forward.26} parent=5 // pred_check_branch
        %107 = sbr.rel (%p105) target = $region16
      $region15: #{forward.26} parent=5 // pred_region
        // Predicated region
        $region17: #{forward.26} parent=15 // pred_check
          %p108 = pneg %p31
        $region18: #{forward.26} parent=15 // pred_check_branch
          %110 = sbr.rel (%p108) target = $region20
        $region19: #{forward.26} parent=15 // pred_region
          %p111 = scmp.lt.s32.totalorder %s11, 1
          %s112 = scalar_select %p111, %s11, 1
          %s113 = smul.addr %s112, 2
          %s114 = smul.addr %s113, 4
          %s115 = scalar_lea.vmem %s0, %s114
        $region20: #{forward.26} parent=15 // pred_fallthru
          _
        // Predicated region
        $region21: #{forward.26} parent=15 // pred_check
          %p116 = pneg %p57
        $region22: #{forward.26} parent=15 // pred_check_branch
          %118 = sbr.rel (%p116) target = $region24
        $region23: #{forward.26} parent=15 // pred_region
          %s119 = sand.u32 %s47, 1
          %s120 = scalar_lea.sflag [#allocation3], %s119
          %s121 = sand.u32 %s47, 1
          %s122 = smul.addr %s121, 1024
          %s123 = scalar_lea.vmem [#allocation2], %s122
          %s125 = ssub.s32 16384, 16384
          %126 = vsyncadd %s120, %s125
          %s127 = smul.addr %s11, 256
          %s128 = smul.addr %s127, 64
          %s129 = scalar_lea.hbm %s1, %s128
          %s130 = sshll.u32 %s123, 4
          %s131 = int_to_ptr.vmem [resolvable:$true] %s130
          %136 = dma.hbm_to_vmem [thread:$0]  %s129, 16384, %s131, %s120, 512, 512, 32
        $region24: #{forward.26} parent=15 // pred_fallthru
          _
      $region16: #{forward.26} parent=5 // pred_fallthru
        _
      %p137 = scmp.le.s32.totalorder 1, %s11
      %p138 = scmp.lt.s32.totalorder %s11, 3
      %p139 = pnand %p137, %p138
      %p140 = pneg %p139
      // Predicated region
      $region25: #{forward.26} parent=5 // pred_check
        _
      $region26: #{forward.26} parent=5 // pred_check_branch
        %142 = sbr.rel (%p139) target = $region28
      $region27: #{forward.26} parent=5 // pred_region
        %s143 = ssub.s32 %s11, 1
        %s144 = sand.u32 %s50, 1
        %s145 = scalar_lea.sflag [#allocation3], %s144
        %s146 = sand.u32 %s50, 1
        %s147 = smul.addr %s146, 1024
        %s148 = scalar_lea.vmem [#allocation2], %s147
        // Predicated region
        $region29: #{forward.26} parent=27 // pred_check
          %p149 = pneg %p63
        $region30: #{forward.26} parent=27 // pred_check_branch
          %151 = sbr.rel (%p149) target = $region32
        $region31: #{forward.26} parent=27 // pred_region
          %152 = dma.done %s145, 16384
        $region32: #{forward.26} parent=27 // pred_fallthru
          _
        %p153 = scmp.lt.s32.totalorder %s16, 1
        %s154 = scalar_select %p153, %s16, 1
        %s155 = smul.addr %s154, 2
        %s156 = smul.addr %s155, 4
        %s157 = scalar_lea.vmem %s0, %s156
        %p158 = pneg %p37
        %p159 = pneg %p34
        %s160 = sand.u32 %s50, 1
        %s161 = scalar_lea.sflag [#allocation3], %s160
        %s162 = sand.u32 %s50, 1
        %s163 = smul.addr %s162, 1024
        %s164 = scalar_lea.vmem [#allocation2], %s163
        %p165 = pneg %p63
        %p166 = pneg %p60
        %p167 = pneg %p89
        %p168 = pneg %p86
        %p169 = scmp.lt.s32.totalorder %s16, 1
        %s170 = scalar_select %p169, %s16, 1
        %s171 = smul.addr %s170, 8
        %s172 = smul.addr %s171, 8
        %s173 = scalar_lea.vmem %s2, %s172
        %p174 = scmp.lt.s32.totalorder %s16, 1
        %s175 = scalar_select %p174, %s16, 1
        %s176 = smul.addr %s175, 2
        %s177 = smul.addr %s176, 4
        %s178 = scalar_lea.vmem %s0, %s177
        %p179 = scmp.lt.s32.totalorder %s16, 1
        %s180 = scalar_select %p179, %s16, 1
        %s181 = smul.addr %s180, 8
        %s182 = smul.addr %s181, 8
        %s183 = scalar_lea.vmem %s2, %s182
        %v184 = vld [vmem:[%s178] sm:$0x77]
        %v185 = vld [vmem:[%s148] sm:$0xff]
        %v186 = vld [vmem:[%s148 + $0x8] sm:$0xff]
        %v187 = vld [vmem:[%s148 + $0x10] sm:$0xff]
        %v188 = vld [vmem:[%s148 + $0x18] sm:$0xff]
        %v189 = vld [vmem:[%s148 + $0x20] sm:$0xff]
        %v190 = vld [vmem:[%s148 + $0x28] sm:$0xff]
        %v191 = vld [vmem:[%s148 + $0x30] sm:$0xff]
        %v192 = vld [vmem:[%s148 + $0x38] sm:$0xff]
        %v193 = vld [vmem:[%s148 + $0x40] sm:$0xff]
        %v194 = vld [vmem:[%s148 + $0x48] sm:$0xff]
        %v195 = vld [vmem:[%s148 + $0x50] sm:$0xff]
        %v196 = vld [vmem:[%s148 + $0x58] sm:$0xff]
        %v197 = vld [vmem:[%s148 + $0x60] sm:$0xff]
        %v198 = vld [vmem:[%s148 + $0x68] sm:$0xff]
        %v199 = vld [vmem:[%s148 + $0x70] sm:$0xff]
        %v200 = vld [vmem:[%s148 + $0x78] sm:$0xff]
        %v201 = vld [vmem:[%s148 + $0x80] sm:$0xff]
        %v202 = vld [vmem:[%s148 + $0x88] sm:$0xff]
        %v203 = vld [vmem:[%s148 + $0x90] sm:$0xff]
        %v204 = vld [vmem:[%s148 + $0x98] sm:$0xff]
        %v205 = vld [vmem:[%s148 + $0xa0] sm:$0xff]
        %v206 = vld [vmem:[%s148 + $0xa8] sm:$0xff]
        %v207 = vld [vmem:[%s148 + $0xb0] sm:$0xff]
        %v208 = vld [vmem:[%s148 + $0xb8] sm:$0xff]
        %v209 = vld [vmem:[%s148 + $0xc0] sm:$0xff]
        %v210 = vld [vmem:[%s148 + $0xc8] sm:$0xff]
        %v211 = vld [vmem:[%s148 + $0xd0] sm:$0xff]
        %v212 = vld [vmem:[%s148 + $0xd8] sm:$0xff]
        %v213 = vld [vmem:[%s148 + $0xe0] sm:$0xff]
        %v214 = vld [vmem:[%s148 + $0xe8] sm:$0xff]
        %v215 = vld [vmem:[%s148 + $0xf0] sm:$0xff]
        %v216 = vld [vmem:[%s148 + $0xf8] sm:$0xff]
        %v217 = vld [vmem:[%s148 + $0x100] sm:$0xff]
        %v218 = vld [vmem:[%s148 + $0x108] sm:$0xff]
        %v219 = vld [vmem:[%s148 + $0x110] sm:$0xff]
        %v220 = vld [vmem:[%s148 + $0x118] sm:$0xff]
        %v221 = vld [vmem:[%s148 + $0x120] sm:$0xff]
        %v222 = vld [vmem:[%s148 + $0x128] sm:$0xff]
        %v223 = vld [vmem:[%s148 + $0x130] sm:$0xff]
        %v224 = vld [vmem:[%s148 + $0x138] sm:$0xff]
        %v225 = vld [vmem:[%s148 + $0x140] sm:$0xff]
        %v226 = vld [vmem:[%s148 + $0x148] sm:$0xff]
        %v227 = vld [vmem:[%s148 + $0x150] sm:$0xff]
        %v228 = vld [vmem:[%s148 + $0x158] sm:$0xff]
        %v229 = vld [vmem:[%s148 + $0x160] sm:$0xff]
        %v230 = vld [vmem:[%s148 + $0x168] sm:$0xff]
        %v231 = vld [vmem:[%s148 + $0x170] sm:$0xff]
        %v232 = vld [vmem:[%s148 + $0x178] sm:$0xff]
        %v233 = vld [vmem:[%s148 + $0x180] sm:$0xff]
        %v234 = vld [vmem:[%s148 + $0x188] sm:$0xff]
        %v235 = vld [vmem:[%s148 + $0x190] sm:$0xff]
        %v236 = vld [vmem:[%s148 + $0x198] sm:$0xff]
        %v237 = vld [vmem:[%s148 + $0x1a0] sm:$0xff]
        %v238 = vld [vmem:[%s148 + $0x1a8] sm:$0xff]
        %v239 = vld [vmem:[%s148 + $0x1b0] sm:$0xff]
        %v240 = vld [vmem:[%s148 + $0x1b8] sm:$0xff]
        %v241 = vld [vmem:[%s148 + $0x1c0] sm:$0xff]
        %v242 = vld [vmem:[%s148 + $0x1c8] sm:$0xff]
        %v243 = vld [vmem:[%s148 + $0x1d0] sm:$0xff]
        %v244 = vld [vmem:[%s148 + $0x1d8] sm:$0xff]
        %v245 = vld [vmem:[%s148 + $0x1e0] sm:$0xff]
        %v246 = vld [vmem:[%s148 + $0x1e8] sm:$0xff]
        %v247 = vld [vmem:[%s148 + $0x1f0] sm:$0xff]
        %v248 = vld [vmem:[%s148 + $0x1f8] sm:$0xff]
        %v249 = vld [vmem:[%s148 + $0x200] sm:$0xff]
        %v250 = vld [vmem:[%s148 + $0x208] sm:$0xff]
        %v251 = vld [vmem:[%s148 + $0x210] sm:$0xff]
        %v252 = vld [vmem:[%s148 + $0x218] sm:$0xff]
        %v253 = vld [vmem:[%s148 + $0x220] sm:$0xff]
        %v254 = vld [vmem:[%s148 + $0x228] sm:$0xff]
        %v255 = vld [vmem:[%s148 + $0x230] sm:$0xff]
        %v256 = vld [vmem:[%s148 + $0x238] sm:$0xff]
        %v257 = vld [vmem:[%s148 + $0x240] sm:$0xff]
        %v258 = vld [vmem:[%s148 + $0x248] sm:$0xff]
        %v259 = vld [vmem:[%s148 + $0x250] sm:$0xff]
        %v260 = vld [vmem:[%s148 + $0x258] sm:$0xff]
        %v261 = vld [vmem:[%s148 + $0x260] sm:$0xff]
        %v262 = vld [vmem:[%s148 + $0x268] sm:$0xff]
        %v263 = vld [vmem:[%s148 + $0x270] sm:$0xff]
        %v264 = vld [vmem:[%s148 + $0x278] sm:$0xff]
        %v265 = vld [vmem:[%s148 + $0x280] sm:$0xff]
        %v266 = vld [vmem:[%s148 + $0x288] sm:$0xff]
        %v267 = vld [vmem:[%s148 + $0x290] sm:$0xff]
        %v268 = vld [vmem:[%s148 + $0x298] sm:$0xff]
        %v269 = vld [vmem:[%s148 + $0x2a0] sm:$0xff]
        %v270 = vld [vmem:[%s148 + $0x2a8] sm:$0xff]
        %v271 = vld [vmem:[%s148 + $0x2b0] sm:$0xff]
        %v272 = vld [vmem:[%s148 + $0x2b8] sm:$0xff]
        %v273 = vld [vmem:[%s148 + $0x2c0] sm:$0xff]
        %v274 = vld [vmem:[%s148 + $0x2c8] sm:$0xff]
        %v275 = vld [vmem:[%s148 + $0x2d0] sm:$0xff]
        %v276 = vld [vmem:[%s148 + $0x2d8] sm:$0xff]
        %v277 = vld [vmem:[%s148 + $0x2e0] sm:$0xff]
        %v278 = vld [vmem:[%s148 + $0x2e8] sm:$0xff]
        %v279 = vld [vmem:[%s148 + $0x2f0] sm:$0xff]
        %v280 = vld [vmem:[%s148 + $0x2f8] sm:$0xff]
        %v281 = vld [vmem:[%s148 + $0x300] sm:$0xff]
        %v282 = vld [vmem:[%s148 + $0x308] sm:$0xff]
        %v283 = vld [vmem:[%s148 + $0x310] sm:$0xff]
        %v284 = vld [vmem:[%s148 + $0x318] sm:$0xff]
        %v285 = vld [vmem:[%s148 + $0x320] sm:$0xff]
        %v286 = vld [vmem:[%s148 + $0x328] sm:$0xff]
        %v287 = vld [vmem:[%s148 + $0x330] sm:$0xff]
        %v288 = vld [vmem:[%s148 + $0x338] sm:$0xff]
        %v289 = vld [vmem:[%s148 + $0x340] sm:$0xff]
        %v290 = vld [vmem:[%s148 + $0x348] sm:$0xff]
        %v291 = vld [vmem:[%s148 + $0x350] sm:$0xff]
        %v292 = vld [vmem:[%s148 + $0x358] sm:$0xff]
        %v293 = vld [vmem:[%s148 + $0x360] sm:$0xff]
        %v294 = vld [vmem:[%s148 + $0x368] sm:$0xff]
        %v295 = vld [vmem:[%s148 + $0x370] sm:$0xff]
        %v296 = vld [vmem:[%s148 + $0x378] sm:$0xff]
        %v297 = vld [vmem:[%s148 + $0x380] sm:$0xff]
        %v298 = vld [vmem:[%s148 + $0x388] sm:$0xff]
        %v299 = vld [vmem:[%s148 + $0x390] sm:$0xff]
        %v300 = vld [vmem:[%s148 + $0x398] sm:$0xff]
        %v301 = vld [vmem:[%s148 + $0x3a0] sm:$0xff]
        %v302 = vld [vmem:[%s148 + $0x3a8] sm:$0xff]
        %v303 = vld [vmem:[%s148 + $0x3b0] sm:$0xff]
        %v304 = vld [vmem:[%s148 + $0x3b8] sm:$0xff]
        %v305 = vld [vmem:[%s148 + $0x3c0] sm:$0xff]
        %v306 = vld [vmem:[%s148 + $0x3c8] sm:$0xff]
        %v307 = vld [vmem:[%s148 + $0x3d0] sm:$0xff]
        %v308 = vld [vmem:[%s148 + $0x3d8] sm:$0xff]
        %v309 = vld [vmem:[%s148 + $0x3e0] sm:$0xff]
        %v310 = vld [vmem:[%s148 + $0x3e8] sm:$0xff]
        %v311 = vld [vmem:[%s148 + $0x3f0] sm:$0xff]
        %v312 = vld [vmem:[%s148 + $0x3f8] sm:$0xff]
        %v314 = vunpack.c.l.b16 %v184
        %v315 = vunpack.c.h.b16 %v184
        %v316 = vpack.c.b16 %v314, %v314
        %v317 = vpack.c.b16 %v315, %v315
        %v448 = vunpack.c.l.b16 %v185
        %v449 = vunpack.c.h.b16 %v185
        %v450 = vunpack.c.l.b16 %v186
        %v451 = vunpack.c.h.b16 %v186
        %v452 = vunpack.c.l.b16 %v187
        %v453 = vunpack.c.h.b16 %v187
        %v454 = vunpack.c.l.b16 %v188
        %v455 = vunpack.c.h.b16 %v188
        %v456 = vunpack.c.l.b16 %v189
        %v457 = vunpack.c.h.b16 %v189
        %v458 = vunpack.c.l.b16 %v190
        %v459 = vunpack.c.h.b16 %v190
        %v460 = vunpack.c.l.b16 %v191
        %v461 = vunpack.c.h.b16 %v191
        %v462 = vunpack.c.l.b16 %v192
        %v463 = vunpack.c.h.b16 %v192
        %v464 = vunpack.c.l.b16 %v193
        %v465 = vunpack.c.h.b16 %v193
        %v466 = vunpack.c.l.b16 %v194
        %v467 = vunpack.c.h.b16 %v194
        %v468 = vunpack.c.l.b16 %v195
        %v469 = vunpack.c.h.b16 %v195
        %v470 = vunpack.c.l.b16 %v196
        %v471 = vunpack.c.h.b16 %v196
        %v472 = vunpack.c.l.b16 %v197
        %v473 = vunpack.c.h.b16 %v197
        %v474 = vunpack.c.l.b16 %v198
        %v475 = vunpack.c.h.b16 %v198
        %v476 = vunpack.c.l.b16 %v199
        %v477 = vunpack.c.h.b16 %v199
        %v478 = vunpack.c.l.b16 %v200
        %v479 = vunpack.c.h.b16 %v200
        %v480 = vunpack.c.l.b16 %v201
        %v481 = vunpack.c.h.b16 %v201
        %v482 = vunpack.c.l.b16 %v202
        %v483 = vunpack.c.h.b16 %v202
        %v484 = vunpack.c.l.b16 %v203
        %v485 = vunpack.c.h.b16 %v203
        %v486 = vunpack.c.l.b16 %v204
        %v487 = vunpack.c.h.b16 %v204
        %v488 = vunpack.c.l.b16 %v205
        %v489 = vunpack.c.h.b16 %v205
        %v490 = vunpack.c.l.b16 %v206
        %v491 = vunpack.c.h.b16 %v206
        %v492 = vunpack.c.l.b16 %v207
        %v493 = vunpack.c.h.b16 %v207
        %v494 = vunpack.c.l.b16 %v208
        %v495 = vunpack.c.h.b16 %v208
        %v496 = vunpack.c.l.b16 %v209
        %v497 = vunpack.c.h.b16 %v209
        %v498 = vunpack.c.l.b16 %v210
        %v499 = vunpack.c.h.b16 %v210
        %v500 = vunpack.c.l.b16 %v211
        %v501 = vunpack.c.h.b16 %v211
        %v502 = vunpack.c.l.b16 %v212
        %v503 = vunpack.c.h.b16 %v212
        %v504 = vunpack.c.l.b16 %v213
        %v505 = vunpack.c.h.b16 %v213
        %v506 = vunpack.c.l.b16 %v214
        %v507 = vunpack.c.h.b16 %v214
        %v508 = vunpack.c.l.b16 %v215
        %v509 = vunpack.c.h.b16 %v215
        %v510 = vunpack.c.l.b16 %v216
        %v511 = vunpack.c.h.b16 %v216
        %v512 = vunpack.c.l.b16 %v217
        %v513 = vunpack.c.h.b16 %v217
        %v514 = vunpack.c.l.b16 %v218
        %v515 = vunpack.c.h.b16 %v218
        %v516 = vunpack.c.l.b16 %v219
        %v517 = vunpack.c.h.b16 %v219
        %v518 = vunpack.c.l.b16 %v220
        %v519 = vunpack.c.h.b16 %v220
        %v520 = vunpack.c.l.b16 %v221
        %v521 = vunpack.c.h.b16 %v221
        %v522 = vunpack.c.l.b16 %v222
        %v523 = vunpack.c.h.b16 %v222
        %v524 = vunpack.c.l.b16 %v223
        %v525 = vunpack.c.h.b16 %v223
        %v526 = vunpack.c.l.b16 %v224
        %v527 = vunpack.c.h.b16 %v224
        %v528 = vunpack.c.l.b16 %v225
        %v529 = vunpack.c.h.b16 %v225
        %v530 = vunpack.c.l.b16 %v226
        %v531 = vunpack.c.h.b16 %v226
        %v532 = vunpack.c.l.b16 %v227
        %v533 = vunpack.c.h.b16 %v227
        %v534 = vunpack.c.l.b16 %v228
        %v535 = vunpack.c.h.b16 %v228
        %v536 = vunpack.c.l.b16 %v229
        %v537 = vunpack.c.h.b16 %v229
        %v538 = vunpack.c.l.b16 %v230
        %v539 = vunpack.c.h.b16 %v230
        %v540 = vunpack.c.l.b16 %v231
        %v541 = vunpack.c.h.b16 %v231
        %v542 = vunpack.c.l.b16 %v232
        %v543 = vunpack.c.h.b16 %v232
        %v544 = vunpack.c.l.b16 %v233
        %v545 = vunpack.c.h.b16 %v233
        %v546 = vunpack.c.l.b16 %v234
        %v547 = vunpack.c.h.b16 %v234
        %v548 = vunpack.c.l.b16 %v235
        %v549 = vunpack.c.h.b16 %v235
        %v550 = vunpack.c.l.b16 %v236
        %v551 = vunpack.c.h.b16 %v236
        %v552 = vunpack.c.l.b16 %v237
        %v553 = vunpack.c.h.b16 %v237
        %v554 = vunpack.c.l.b16 %v238
        %v555 = vunpack.c.h.b16 %v238
        %v556 = vunpack.c.l.b16 %v239
        %v557 = vunpack.c.h.b16 %v239
        %v558 = vunpack.c.l.b16 %v240
        %v559 = vunpack.c.h.b16 %v240
        %v560 = vunpack.c.l.b16 %v241
        %v561 = vunpack.c.h.b16 %v241
        %v562 = vunpack.c.l.b16 %v242
        %v563 = vunpack.c.h.b16 %v242
        %v564 = vunpack.c.l.b16 %v243
        %v565 = vunpack.c.h.b16 %v243
        %v566 = vunpack.c.l.b16 %v244
        %v567 = vunpack.c.h.b16 %v244
        %v568 = vunpack.c.l.b16 %v245
        %v569 = vunpack.c.h.b16 %v245
        %v570 = vunpack.c.l.b16 %v246
        %v571 = vunpack.c.h.b16 %v246
        %v572 = vunpack.c.l.b16 %v247
        %v573 = vunpack.c.h.b16 %v247
        %v574 = vunpack.c.l.b16 %v248
        %v575 = vunpack.c.h.b16 %v248
        %v576 = vunpack.c.l.b16 %v249
        %v577 = vunpack.c.h.b16 %v249
        %v578 = vunpack.c.l.b16 %v250
        %v579 = vunpack.c.h.b16 %v250
        %v580 = vunpack.c.l.b16 %v251
        %v581 = vunpack.c.h.b16 %v251
        %v582 = vunpack.c.l.b16 %v252
        %v583 = vunpack.c.h.b16 %v252
        %v584 = vunpack.c.l.b16 %v253
        %v585 = vunpack.c.h.b16 %v253
        %v586 = vunpack.c.l.b16 %v254
        %v587 = vunpack.c.h.b16 %v254
        %v588 = vunpack.c.l.b16 %v255
        %v589 = vunpack.c.h.b16 %v255
        %v590 = vunpack.c.l.b16 %v256
        %v591 = vunpack.c.h.b16 %v256
        %v592 = vunpack.c.l.b16 %v257
        %v593 = vunpack.c.h.b16 %v257
        %v594 = vunpack.c.l.b16 %v258
        %v595 = vunpack.c.h.b16 %v258
        %v596 = vunpack.c.l.b16 %v259
        %v597 = vunpack.c.h.b16 %v259
        %v598 = vunpack.c.l.b16 %v260
        %v599 = vunpack.c.h.b16 %v260
        %v600 = vunpack.c.l.b16 %v261
        %v601 = vunpack.c.h.b16 %v261
        %v602 = vunpack.c.l.b16 %v262
        %v603 = vunpack.c.h.b16 %v262
        %v604 = vunpack.c.l.b16 %v263
        %v605 = vunpack.c.h.b16 %v263
        %v606 = vunpack.c.l.b16 %v264
        %v607 = vunpack.c.h.b16 %v264
        %v608 = vunpack.c.l.b16 %v265
        %v609 = vunpack.c.h.b16 %v265
        %v610 = vunpack.c.l.b16 %v266
        %v611 = vunpack.c.h.b16 %v266
        %v612 = vunpack.c.l.b16 %v267
        %v613 = vunpack.c.h.b16 %v267
        %v614 = vunpack.c.l.b16 %v268
        %v615 = vunpack.c.h.b16 %v268
        %v616 = vunpack.c.l.b16 %v269
        %v617 = vunpack.c.h.b16 %v269
        %v618 = vunpack.c.l.b16 %v270
        %v619 = vunpack.c.h.b16 %v270
        %v620 = vunpack.c.l.b16 %v271
        %v621 = vunpack.c.h.b16 %v271
        %v622 = vunpack.c.l.b16 %v272
        %v623 = vunpack.c.h.b16 %v272
        %v624 = vunpack.c.l.b16 %v273
        %v625 = vunpack.c.h.b16 %v273
        %v626 = vunpack.c.l.b16 %v274
        %v627 = vunpack.c.h.b16 %v274
        %v628 = vunpack.c.l.b16 %v275
        %v629 = vunpack.c.h.b16 %v275
        %v630 = vunpack.c.l.b16 %v276
        %v631 = vunpack.c.h.b16 %v276
        %v632 = vunpack.c.l.b16 %v277
        %v633 = vunpack.c.h.b16 %v277
        %v634 = vunpack.c.l.b16 %v278
        %v635 = vunpack.c.h.b16 %v278
        %v636 = vunpack.c.l.b16 %v279
        %v637 = vunpack.c.h.b16 %v279
        %v638 = vunpack.c.l.b16 %v280
        %v639 = vunpack.c.h.b16 %v280
        %v640 = vunpack.c.l.b16 %v281
        %v641 = vunpack.c.h.b16 %v281
        %v642 = vunpack.c.l.b16 %v282
        %v643 = vunpack.c.h.b16 %v282
        %v644 = vunpack.c.l.b16 %v283
        %v645 = vunpack.c.h.b16 %v283
        %v646 = vunpack.c.l.b16 %v284
        %v647 = vunpack.c.h.b16 %v284
        %v648 = vunpack.c.l.b16 %v285
        %v649 = vunpack.c.h.b16 %v285
        %v650 = vunpack.c.l.b16 %v286
        %v651 = vunpack.c.h.b16 %v286
        %v652 = vunpack.c.l.b16 %v287
        %v653 = vunpack.c.h.b16 %v287
        %v654 = vunpack.c.l.b16 %v288
        %v655 = vunpack.c.h.b16 %v288
        %v656 = vunpack.c.l.b16 %v289
        %v657 = vunpack.c.h.b16 %v289
        %v658 = vunpack.c.l.b16 %v290
        %v659 = vunpack.c.h.b16 %v290
        %v660 = vunpack.c.l.b16 %v291
        %v661 = vunpack.c.h.b16 %v291
        %v662 = vunpack.c.l.b16 %v292
        %v663 = vunpack.c.h.b16 %v292
        %v664 = vunpack.c.l.b16 %v293
        %v665 = vunpack.c.h.b16 %v293
        %v666 = vunpack.c.l.b16 %v294
        %v667 = vunpack.c.h.b16 %v294
        %v668 = vunpack.c.l.b16 %v295
        %v669 = vunpack.c.h.b16 %v295
        %v670 = vunpack.c.l.b16 %v296
        %v671 = vunpack.c.h.b16 %v296
        %v672 = vunpack.c.l.b16 %v297
        %v673 = vunpack.c.h.b16 %v297
        %v674 = vunpack.c.l.b16 %v298
        %v675 = vunpack.c.h.b16 %v298
        %v676 = vunpack.c.l.b16 %v299
        %v677 = vunpack.c.h.b16 %v299
        %v678 = vunpack.c.l.b16 %v300
        %v679 = vunpack.c.h.b16 %v300
        %v680 = vunpack.c.l.b16 %v301
        %v681 = vunpack.c.h.b16 %v301
        %v682 = vunpack.c.l.b16 %v302
        %v683 = vunpack.c.h.b16 %v302
        %v684 = vunpack.c.l.b16 %v303
        %v685 = vunpack.c.h.b16 %v303
        %v686 = vunpack.c.l.b16 %v304
        %v687 = vunpack.c.h.b16 %v304
        %v688 = vunpack.c.l.b16 %v305
        %v689 = vunpack.c.h.b16 %v305
        %v690 = vunpack.c.l.b16 %v306
        %v691 = vunpack.c.h.b16 %v306
        %v692 = vunpack.c.l.b16 %v307
        %v693 = vunpack.c.h.b16 %v307
        %v694 = vunpack.c.l.b16 %v308
        %v695 = vunpack.c.h.b16 %v308
        %v696 = vunpack.c.l.b16 %v309
        %v697 = vunpack.c.h.b16 %v309
        %v698 = vunpack.c.l.b16 %v310
        %v699 = vunpack.c.h.b16 %v310
        %v700 = vunpack.c.l.b16 %v311
        %v701 = vunpack.c.h.b16 %v311
        %v702 = vunpack.c.l.b16 %v312
        %v703 = vunpack.c.h.b16 %v312
        %v704 = vpack.c.b16 %v456, %v448
        %v705 = vpack.c.b16 %v457, %v449
        %v706 = vpack.c.b16 %v458, %v450
        %v707 = vpack.c.b16 %v459, %v451
        %v708 = vpack.c.b16 %v460, %v452
        %v709 = vpack.c.b16 %v461, %v453
        %v710 = vpack.c.b16 %v462, %v454
        %v711 = vpack.c.b16 %v463, %v455
        %v712 = vpack.c.b16 %v472, %v464
        %v713 = vpack.c.b16 %v473, %v465
        %v714 = vpack.c.b16 %v474, %v466
        %v715 = vpack.c.b16 %v475, %v467
        %v716 = vpack.c.b16 %v476, %v468
        %v717 = vpack.c.b16 %v477, %v469
        %v718 = vpack.c.b16 %v478, %v470
        %v719 = vpack.c.b16 %v479, %v471
        %v720 = vpack.c.b16 %v488, %v480
        %v721 = vpack.c.b16 %v489, %v481
        %v722 = vpack.c.b16 %v490, %v482
        %v723 = vpack.c.b16 %v491, %v483
        %v724 = vpack.c.b16 %v492, %v484
        %v725 = vpack.c.b16 %v493, %v485
        %v726 = vpack.c.b16 %v494, %v486
        %v727 = vpack.c.b16 %v495, %v487
        %v728 = vpack.c.b16 %v504, %v496
        %v729 = vpack.c.b16 %v505, %v497
        %v730 = vpack.c.b16 %v506, %v498
        %v731 = vpack.c.b16 %v507, %v499
        %v732 = vpack.c.b16 %v508, %v500
        %v733 = vpack.c.b16 %v509, %v501
        %v734 = vpack.c.b16 %v510, %v502
        %v735 = vpack.c.b16 %v511, %v503
        %v736 = vpack.c.b16 %v520, %v512
        %v737 = vpack.c.b16 %v521, %v513
        %v738 = vpack.c.b16 %v522, %v514
        %v739 = vpack.c.b16 %v523, %v515
        %v740 = vpack.c.b16 %v524, %v516
        %v741 = vpack.c.b16 %v525, %v517
        %v742 = vpack.c.b16 %v526, %v518
        %v743 = vpack.c.b16 %v527, %v519
        %v744 = vpack.c.b16 %v536, %v528
        %v745 = vpack.c.b16 %v537, %v529
        %v746 = vpack.c.b16 %v538, %v530
        %v747 = vpack.c.b16 %v539, %v531
        %v748 = vpack.c.b16 %v540, %v532
        %v749 = vpack.c.b16 %v541, %v533
        %v750 = vpack.c.b16 %v542, %v534
        %v751 = vpack.c.b16 %v543, %v535
        %v752 = vpack.c.b16 %v552, %v544
        %v753 = vpack.c.b16 %v553, %v545
        %v754 = vpack.c.b16 %v554, %v546
        %v755 = vpack.c.b16 %v555, %v547
        %v756 = vpack.c.b16 %v556, %v548
        %v757 = vpack.c.b16 %v557, %v549
        %v758 = vpack.c.b16 %v558, %v550
        %v759 = vpack.c.b16 %v559, %v551
        %v760 = vpack.c.b16 %v568, %v560
        %v761 = vpack.c.b16 %v569, %v561
        %v762 = vpack.c.b16 %v570, %v562
        %v763 = vpack.c.b16 %v571, %v563
        %v764 = vpack.c.b16 %v572, %v564
        %v765 = vpack.c.b16 %v573, %v565
        %v766 = vpack.c.b16 %v574, %v566
        %v767 = vpack.c.b16 %v575, %v567
        %v768 = vpack.c.b16 %v584, %v576
        %v769 = vpack.c.b16 %v585, %v577
        %v770 = vpack.c.b16 %v586, %v578
        %v771 = vpack.c.b16 %v587, %v579
        %v772 = vpack.c.b16 %v588, %v580
        %v773 = vpack.c.b16 %v589, %v581
        %v774 = vpack.c.b16 %v590, %v582
        %v775 = vpack.c.b16 %v591, %v583
        %v776 = vpack.c.b16 %v600, %v592
        %v777 = vpack.c.b16 %v601, %v593
        %v778 = vpack.c.b16 %v602, %v594
        %v779 = vpack.c.b16 %v603, %v595
        %v780 = vpack.c.b16 %v604, %v596
        %v781 = vpack.c.b16 %v605, %v597
        %v782 = vpack.c.b16 %v606, %v598
        %v783 = vpack.c.b16 %v607, %v599
        %v784 = vpack.c.b16 %v616, %v608
        %v785 = vpack.c.b16 %v617, %v609
        %v786 = vpack.c.b16 %v618, %v610
        %v787 = vpack.c.b16 %v619, %v611
        %v788 = vpack.c.b16 %v620, %v612
        %v789 = vpack.c.b16 %v621, %v613
        %v790 = vpack.c.b16 %v622, %v614
        %v791 = vpack.c.b16 %v623, %v615
        %v792 = vpack.c.b16 %v632, %v624
        %v793 = vpack.c.b16 %v633, %v625
        %v794 = vpack.c.b16 %v634, %v626
        %v795 = vpack.c.b16 %v635, %v627
        %v796 = vpack.c.b16 %v636, %v628
        %v797 = vpack.c.b16 %v637, %v629
        %v798 = vpack.c.b16 %v638, %v630
        %v799 = vpack.c.b16 %v639, %v631
        %v800 = vpack.c.b16 %v648, %v640
        %v801 = vpack.c.b16 %v649, %v641
        %v802 = vpack.c.b16 %v650, %v642
        %v803 = vpack.c.b16 %v651, %v643
        %v804 = vpack.c.b16 %v652, %v644
        %v805 = vpack.c.b16 %v653, %v645
        %v806 = vpack.c.b16 %v654, %v646
        %v807 = vpack.c.b16 %v655, %v647
        %v808 = vpack.c.b16 %v664, %v656
        %v809 = vpack.c.b16 %v665, %v657
        %v810 = vpack.c.b16 %v666, %v658
        %v811 = vpack.c.b16 %v667, %v659
        %v812 = vpack.c.b16 %v668, %v660
        %v813 = vpack.c.b16 %v669, %v661
        %v814 = vpack.c.b16 %v670, %v662
        %v815 = vpack.c.b16 %v671, %v663
        %v816 = vpack.c.b16 %v680, %v672
        %v817 = vpack.c.b16 %v681, %v673
        %v818 = vpack.c.b16 %v682, %v674
        %v819 = vpack.c.b16 %v683, %v675
        %v820 = vpack.c.b16 %v684, %v676
        %v821 = vpack.c.b16 %v685, %v677
        %v822 = vpack.c.b16 %v686, %v678
        %v823 = vpack.c.b16 %v687, %v679
        %v824 = vpack.c.b16 %v696, %v688
        %v825 = vpack.c.b16 %v697, %v689
        %v826 = vpack.c.b16 %v698, %v690
        %v827 = vpack.c.b16 %v699, %v691
        %v828 = vpack.c.b16 %v700, %v692
        %v829 = vpack.c.b16 %v701, %v693
        %v830 = vpack.c.b16 %v702, %v694
        %v831 = vpack.c.b16 %v703, %v695
        %960 = vmatprep.subr.bf16.mxu0 %v705
        %961 = vmatpush1.bf16.msra.mxu0 %v704
        %962 = vmatprep.subr.bf16.mxu0 %v713
        %963 = vmatpush1.bf16.msra.mxu0 %v712
        %964 = vmatprep.subr.bf16.mxu0 %v721
        %965 = vmatpush1.bf16.msra.mxu0 %v720
        %966 = vmatprep.subr.bf16.mxu0 %v729
        %967 = vmatpush1.bf16.msra.mxu0 %v728
        %968 = vmatprep.subr.bf16.mxu0 %v737
        %969 = vmatpush1.bf16.msra.mxu0 %v736
        %970 = vmatprep.subr.bf16.mxu0 %v745
        %971 = vmatpush1.bf16.msra.mxu0 %v744
        %972 = vmatprep.subr.bf16.mxu0 %v753
        %973 = vmatpush1.bf16.msra.mxu0 %v752
        %974 = vmatprep.subr.bf16.mxu0 %v761
        %975 = vmatpush1.bf16.msra.mxu0 %v760
        %976 = vmatprep.subr.bf16.mxu0 %v769
        %977 = vmatpush1.bf16.msra.mxu0 %v768
        %978 = vmatprep.subr.bf16.mxu0 %v777
        %979 = vmatpush1.bf16.msra.mxu0 %v776
        %980 = vmatprep.subr.bf16.mxu0 %v785
        %981 = vmatpush1.bf16.msra.mxu0 %v784
        %982 = vmatprep.subr.bf16.mxu0 %v793
        %983 = vmatpush1.bf16.msra.mxu0 %v792
        %984 = vmatprep.subr.bf16.mxu0 %v801
        %985 = vmatpush1.bf16.msra.mxu0 %v800
        %986 = vmatprep.subr.bf16.mxu0 %v809
        %987 = vmatpush1.bf16.msra.mxu0 %v808
        %988 = vmatprep.subr.bf16.mxu0 %v817
        %989 = vmatpush1.bf16.msra.mxu0 %v816
        %990 = vmatprep.subr.bf16.mxu0 %v825
        %991 = vmatpush1.bf16.msra.mxu0 %v824
        %992 = vmatprep.mubr.bf16.mxu0 %v317
        %993 = vmatmul.mubr.bf16.gmra.mrb[0].mxu0 %v316
        %v994 = vpop.f32.mrb[0].mxu0
        %v995 = vadd.f32 0.0, %v994
        %v996 = vpop.f32.mrb[0].mxu0
        %v997 = vadd.f32 0.0, %v996
        %v998 = vpop.f32.mrb[0].mxu0
        %v999 = vpop.f32.mrb[0].mxu0
        %1000 = vdwg.mxu0
        %1001 = vmatprep.subr.bf16.mxu0 %v707
        %1002 = vmatpush1.bf16.msra.mxu0 %v706
        %1003 = vmatprep.subr.bf16.mxu0 %v715
        %1004 = vmatpush1.bf16.msra.mxu0 %v714
        %1005 = vmatprep.subr.bf16.mxu0 %v723
        %1006 = vmatpush1.bf16.msra.mxu0 %v722
        %1007 = vmatprep.subr.bf16.mxu0 %v731
        %1008 = vmatpush1.bf16.msra.mxu0 %v730
        %1009 = vmatprep.subr.bf16.mxu0 %v739
        %1010 = vmatpush1.bf16.msra.mxu0 %v738
        %1011 = vmatprep.subr.bf16.mxu0 %v747
        %1012 = vmatpush1.bf16.msra.mxu0 %v746
        %1013 = vmatprep.subr.bf16.mxu0 %v755
        %1014 = vmatpush1.bf16.msra.mxu0 %v754
        %1015 = vmatprep.subr.bf16.mxu0 %v763
        %1016 = vmatpush1.bf16.msra.mxu0 %v762
        %1017 = vmatprep.subr.bf16.mxu0 %v771
        %1018 = vmatpush1.bf16.msra.mxu0 %v770
        %1019 = vmatprep.subr.bf16.mxu0 %v779
        %1020 = vmatpush1.bf16.msra.mxu0 %v778
        %1021 = vmatprep.subr.bf16.mxu0 %v787
        %1022 = vmatpush1.bf16.msra.mxu0 %v786
        %1023 = vmatprep.subr.bf16.mxu0 %v795
        %1024 = vmatpush1.bf16.msra.mxu0 %v794
        %1025 = vmatprep.subr.bf16.mxu0 %v803
        %1026 = vmatpush1.bf16.msra.mxu0 %v802
        %1027 = vmatprep.subr.bf16.mxu0 %v811
        %1028 = vmatpush1.bf16.msra.mxu0 %v810
        %1029 = vmatprep.subr.bf16.mxu0 %v819
        %1030 = vmatpush1.bf16.msra.mxu0 %v818
        %1031 = vmatprep.subr.bf16.mxu0 %v827
        %1032 = vmatpush1.bf16.msra.mxu0 %v826
        %1033 = vmatprep.mubr.bf16.mxu0 %v317
        %1034 = vmatmul.mubr.bf16.gmra.mrb[0].mxu0 %v316
        %v1035 = vpop.f32.mrb[0].mxu0
        %v1036 = vadd.f32 0.0, %v1035
        %v1037 = vpop.f32.mrb[0].mxu0
        %v1038 = vadd.f32 0.0, %v1037
        %v1039 = vpop.f32.mrb[0].mxu0
        %v1040 = vpop.f32.mrb[0].mxu0
        %1041 = vdwg.mxu0
        %1042 = vmatprep.subr.bf16.mxu0 %v709
        %1043 = vmatpush1.bf16.msra.mxu0 %v708
        %1044 = vmatprep.subr.bf16.mxu0 %v717
        %1045 = vmatpush1.bf16.msra.mxu0 %v716
        %1046 = vmatprep.subr.bf16.mxu0 %v725
        %1047 = vmatpush1.bf16.msra.mxu0 %v724
        %1048 = vmatprep.subr.bf16.mxu0 %v733
        %1049 = vmatpush1.bf16.msra.mxu0 %v732
        %1050 = vmatprep.subr.bf16.mxu0 %v741
        %1051 = vmatpush1.bf16.msra.mxu0 %v740
        %1052 = vmatprep.subr.bf16.mxu0 %v749
        %1053 = vmatpush1.bf16.msra.mxu0 %v748
        %1054 = vmatprep.subr.bf16.mxu0 %v757
        %1055 = vmatpush1.bf16.msra.mxu0 %v756
        %1056 = vmatprep.subr.bf16.mxu0 %v765
        %1057 = vmatpush1.bf16.msra.mxu0 %v764
        %1058 = vmatprep.subr.bf16.mxu0 %v773
        %1059 = vmatpush1.bf16.msra.mxu0 %v772
        %1060 = vmatprep.subr.bf16.mxu0 %v781
        %1061 = vmatpush1.bf16.msra.mxu0 %v780
        %1062 = vmatprep.subr.bf16.mxu0 %v789
        %1063 = vmatpush1.bf16.msra.mxu0 %v788
        %1064 = vmatprep.subr.bf16.mxu0 %v797
        %1065 = vmatpush1.bf16.msra.mxu0 %v796
        %1066 = vmatprep.subr.bf16.mxu0 %v805
        %1067 = vmatpush1.bf16.msra.mxu0 %v804
        %1068 = vmatprep.subr.bf16.mxu0 %v813
        %1069 = vmatpush1.bf16.msra.mxu0 %v812
        %1070 = vmatprep.subr.bf16.mxu0 %v821
        %1071 = vmatpush1.bf16.msra.mxu0 %v820
        %1072 = vmatprep.subr.bf16.mxu0 %v829
        %1073 = vmatpush1.bf16.msra.mxu0 %v828
        %1074 = vmatprep.mubr.bf16.mxu0 %v317
        %1075 = vmatmul.mubr.bf16.gmra.mrb[0].mxu0 %v316
        %v1076 = vpop.f32.mrb[0].mxu0
        %v1077 = vadd.f32 0.0, %v1076
        %v1078 = vpop.f32.mrb[0].mxu0
        %v1079 = vadd.f32 0.0, %v1078
        %v1080 = vpop.f32.mrb[0].mxu0
        %v1081 = vpop.f32.mrb[0].mxu0
        %1082 = vdwg.mxu0
        %1083 = vmatprep.subr.bf16.mxu0 %v711
        %1084 = vmatpush1.bf16.msra.mxu0 %v710
        %1085 = vmatprep.subr.bf16.mxu0 %v719
        %1086 = vmatpush1.bf16.msra.mxu0 %v718
        %1087 = vmatprep.subr.bf16.mxu0 %v727
        %1088 = vmatpush1.bf16.msra.mxu0 %v726
        %1089 = vmatprep.subr.bf16.mxu0 %v735
        %1090 = vmatpush1.bf16.msra.mxu0 %v734
        %1091 = vmatprep.subr.bf16.mxu0 %v743
        %1092 = vmatpush1.bf16.msra.mxu0 %v742
        %1093 = vmatprep.subr.bf16.mxu0 %v751
        %1094 = vmatpush1.bf16.msra.mxu0 %v750
        %1095 = vmatprep.subr.bf16.mxu0 %v759
        %1096 = vmatpush1.bf16.msra.mxu0 %v758
        %1097 = vmatprep.subr.bf16.mxu0 %v767
        %1098 = vmatpush1.bf16.msra.mxu0 %v766
        %1099 = vmatprep.subr.bf16.mxu0 %v775
        %1100 = vmatpush1.bf16.msra.mxu0 %v774
        %1101 = vmatprep.subr.bf16.mxu0 %v783
        %1102 = vmatpush1.bf16.msra.mxu0 %v782
        %1103 = vmatprep.subr.bf16.mxu0 %v791
        %1104 = vmatpush1.bf16.msra.mxu0 %v790
        %1105 = vmatprep.subr.bf16.mxu0 %v799
        %1106 = vmatpush1.bf16.msra.mxu0 %v798
        %1107 = vmatprep.subr.bf16.mxu0 %v807
        %1108 = vmatpush1.bf16.msra.mxu0 %v806
        %1109 = vmatprep.subr.bf16.mxu0 %v815
        %1110 = vmatpush1.bf16.msra.mxu0 %v814
        %1111 = vmatprep.subr.bf16.mxu0 %v823
        %1112 = vmatpush1.bf16.msra.mxu0 %v822
        %1113 = vmatprep.subr.bf16.mxu0 %v831
        %1114 = vmatpush1.bf16.msra.mxu0 %v830
        %1115 = vmatprep.mubr.bf16.mxu0 %v317
        %1116 = vmatmul.mubr.bf16.gmra.mrb[0].mxu0 %v316
        %v1117 = vpop.f32.mrb[0].mxu0
        %v1118 = vadd.f32 0.0, %v1117
        %v1119 = vpop.f32.mrb[0].mxu0
        %v1120 = vadd.f32 0.0, %v1119
        %v1121 = vpop.f32.mrb[0].mxu0
        %v1122 = vpop.f32.mrb[0].mxu0
        %1123 = vdwg.mxu0
        %1124 = vst [vmem:[%s183] sm:$0x3f] %v995
        %1125 = vst [vmem:[%s183 + $0x8] sm:$0x3f] %v997
        %1126 = vst [vmem:[%s183 + $0x10] sm:$0x3f] %v1036
        %1127 = vst [vmem:[%s183 + $0x18] sm:$0x3f] %v1038
        %1128 = vst [vmem:[%s183 + $0x20] sm:$0x3f] %v1077
        %1129 = vst [vmem:[%s183 + $0x28] sm:$0x3f] %v1079
        %1130 = vst [vmem:[%s183 + $0x30] sm:$0x3f] %v1118
        %1131 = vst [vmem:[%s183 + $0x38] sm:$0x3f] %v1120
        %p1132 = scmp.lt.s32.totalorder %s16, 1
        %s1133 = scalar_select %p1132, %s16, 1
        %s1134 = smul.addr %s1133, 8
        %s1135 = smul.addr %s1134, 8
        %s1136 = scalar_lea.vmem %s2, %s1135
        // Predicated region
        $region33: #{forward.26} parent=27 // pred_check
          %p1137 = pneg %p86
        $region34: #{forward.26} parent=27 // pred_check_branch
          %1139 = sbr.rel (%p1137) target = $region36
        $region35: #{forward.26} parent=27 // pred_region
          _
        $region36: #{forward.26} parent=27 // pred_fallthru
          _
      $region28: #{forward.26} parent=5 // pred_fallthru
        _
      %p1140 = scmp.le.s32.totalorder 2, %s11
      // Predicated region
      $region37: #{forward.26} parent=5 // pred_check
        %p1141 = pneg %p1140
      $region38: #{forward.26} parent=5 // pred_check_branch
        %1143 = sbr.rel (%p1141) target = $region40
      $region39: #{forward.26} parent=5 // pred_region
        %s1144 = ssub.s32 %s11, 2
        // Predicated region
        $region41: #{forward.26} parent=39 // pred_check
          %p1145 = pneg %p92
        $region42: #{forward.26} parent=39 // pred_check_branch
          %1147 = sbr.rel (%p1145) target = $region44
        $region43: #{forward.26} parent=39 // pred_region
          %p1148 = scmp.lt.s32.totalorder %s17, 1
          %s1149 = scalar_select %p1148, %s17, 1
          %s1150 = smul.addr %s1149, 8
          %s1151 = smul.addr %s1150, 8
          %s1152 = scalar_lea.vmem %s2, %s1151
        $region44: #{forward.26} parent=39 // pred_fallthru
          _
      $region40: #{forward.26} parent=5 // pred_fallthru
        _
    $region6: #{forward.26} parent=1 // loop_footer
      %s15 = sadd.s32 1, %s11
    $region7: #{forward.26} parent=1 // loop_footer_branch
      %10 = sbr.rel target = $region3
    $region8: #{forward.26} parent=1 // loop_exit
      _
    %1153 = vsyncpa [#allocation3], 1
    %s1154 = scalar_lea.sflag [#allocation3], 1
    %1155 = vsyncpa %s1154, 1

// kernel: forward.27
$region0: #{forward.27}
  #allocation0 [shape = 'u32[]', space=smem, size = 0x4, offset = 0x4, fixed_abs, tag = 'smem constant byte address 0x4 - core index']
  #allocation1 [shape = 'u32[144,128]{1,0:T(1,128)}', space=vmem, size = 0x12000, scoped, tag = 'internal scratch']
  %s0 = inlined_call_operand.vmem [shape: bf16[8,392], index: 0, kind: input, shape index: {}]
  %s1 = inlined_call_operand.vmem [shape: bf16[392,512], index: 1, kind: input, shape index: {}]
  %s2 = inlined_call_operand.vmem [shape: f32[8,1], index: 2, kind: input, shape index: {}]
  %s3 = inlined_call_operand.vmem [shape: f32[8,512], index: 3, kind: output, shape index: {}]
  %s4 = sld [smem:[#allocation0]]
  $region22: #{forward.27} parent=0
    _
  %s6 = ssub.s32 1, %s4
  %s7 = scalar_select 0, %s6, %s4
  // Predicated region
  $region2: #{forward.27} parent=0 // pred_check
    _
  $region3: #{forward.27} parent=0 // pred_check_branch
    %9 = sbr.rel (0) target = $region5
  $region4: #{forward.27} parent=0 // pred_region
    _
  $region5: #{forward.27} parent=0 // pred_fallthru
    _
  // Predicated region
  $region6: #{forward.27} parent=0 // pred_check
    _
  $region7: #{forward.27} parent=0 // pred_check_branch
    %11 = sbr.rel (0) target = $region9
  $region8: #{forward.27} parent=0 // pred_region
    _
  $region9: #{forward.27} parent=0 // pred_fallthru
    _
  // Predicated region
  $region10: #{forward.27} parent=0 // pred_check
    _
  $region11: #{forward.27} parent=0 // pred_check_branch
    %13 = sbr.rel (0) target = $region13
  $region12: #{forward.27} parent=0 // pred_region
    _
  $region13: #{forward.27} parent=0 // pred_fallthru
    _
  %v15 = vld [vmem:[%s0] sm:$0xff]
  %v16 = vld [vmem:[%s0 + $0x8] sm:$0xff]
  %v17 = vld [vmem:[%s1] sm:$0xff]
  %v18 = vld [vmem:[%s1 + $0x8] sm:$0xff]
  %v19 = vld [vmem:[%s1 + $0x10] sm:$0xff]
  %v20 = vld [vmem:[%s1 + $0x18] sm:$0xff]
  %v21 = vld [vmem:[%s1 + $0x20] sm:$0xff]
  %v22 = vld [vmem:[%s1 + $0x28] sm:$0xff]
  %v23 = vld [vmem:[%s1 + $0x30] sm:$0xff]
  %v24 = vld [vmem:[%s1 + $0x38] sm:$0xff]
  %v25 = vld [vmem:[%s1 + $0x40] sm:$0xff]
  %v26 = vld [vmem:[%s1 + $0x48] sm:$0xff]
  %v27 = vld [vmem:[%s1 + $0x50] sm:$0xff]
  %v28 = vld [vmem:[%s1 + $0x58] sm:$0xff]
  %v29 = vld [vmem:[%s1 + $0x60] sm:$0xff]
  %v30 = vld [vmem:[%s1 + $0x68] sm:$0xff]
  %v31 = vld [vmem:[%s1 + $0x70] sm:$0xff]
  %v32 = vld [vmem:[%s1 + $0x78] sm:$0xff]
  %v33 = vld [vmem:[%s1 + $0x80] sm:$0xff]
  %v34 = vld [vmem:[%s1 + $0x88] sm:$0xff]
  %v35 = vld [vmem:[%s1 + $0x90] sm:$0xff]
  %v36 = vld [vmem:[%s1 + $0x98] sm:$0xff]
  %v37 = vld [vmem:[%s1 + $0xa0] sm:$0xff]
  %v38 = vld [vmem:[%s1 + $0xa8] sm:$0xff]
  %v39 = vld [vmem:[%s1 + $0xb0] sm:$0xff]
  %v40 = vld [vmem:[%s1 + $0xb8] sm:$0xff]
  %v41 = vld [vmem:[%s1 + $0xc0] sm:$0xff]
  %v42 = vld [vmem:[%s1 + $0xc8] sm:$0xff]
  %v43 = vld [vmem:[%s1 + $0xd0] sm:$0xff]
  %v44 = vld [vmem:[%s1 + $0xd8] sm:$0xff]
  %v45 = vld [vmem:[%s1 + $0xe0] sm:$0xff]
  %v46 = vld [vmem:[%s1 + $0xe8] sm:$0xff]
  %v47 = vld [vmem:[%s1 + $0xf0] sm:$0xff]
  %v48 = vld [vmem:[%s1 + $0xf8] sm:$0xff]
  %v49 = vld [vmem:[%s1 + $0x100] sm:$0xff]
  %v50 = vld [vmem:[%s1 + $0x108] sm:$0xff]
  %v51 = vld [vmem:[%s1 + $0x110] sm:$0xff]
  %v52 = vld [vmem:[%s1 + $0x118] sm:$0xff]
  %v53 = vld [vmem:[%s1 + $0x120] sm:$0xff]
  %v54 = vld [vmem:[%s1 + $0x128] sm:$0xff]
  %v55 = vld [vmem:[%s1 + $0x130] sm:$0xff]
  %v56 = vld [vmem:[%s1 + $0x138] sm:$0xff]
  %v57 = vld [vmem:[%s1 + $0x140] sm:$0xff]
  %v58 = vld [vmem:[%s1 + $0x148] sm:$0xff]
  %v59 = vld [vmem:[%s1 + $0x150] sm:$0xff]
  %v60 = vld [vmem:[%s1 + $0x158] sm:$0xff]
  %v61 = vld [vmem:[%s1 + $0x160] sm:$0xff]
  %v62 = vld [vmem:[%s1 + $0x168] sm:$0xff]
  %v63 = vld [vmem:[%s1 + $0x170] sm:$0xff]
  %v64 = vld [vmem:[%s1 + $0x178] sm:$0xff]
  %v65 = vld [vmem:[%s1 + $0x180] sm:$0xff]
  %v66 = vld [vmem:[%s1 + $0x188] sm:$0xff]
  %v67 = vld [vmem:[%s1 + $0x190] sm:$0xff]
  %v68 = vld [vmem:[%s1 + $0x198] sm:$0xff]
  %v69 = vld [vmem:[%s1 + $0x1a0] sm:$0xff]
  %v70 = vld [vmem:[%s1 + $0x1a8] sm:$0xff]
  %v71 = vld [vmem:[%s1 + $0x1b0] sm:$0xff]
  %v72 = vld [vmem:[%s1 + $0x1b8] sm:$0xff]
  %v73 = vld [vmem:[%s1 + $0x1c0] sm:$0xff]
  %v74 = vld [vmem:[%s1 + $0x1c8] sm:$0xff]
  %v75 = vld [vmem:[%s1 + $0x1d0] sm:$0xff]
  %v76 = vld [vmem:[%s1 + $0x1d8] sm:$0xff]
  %v77 = vld [vmem:[%s1 + $0x1e0] sm:$0xff]
  %v78 = vld [vmem:[%s1 + $0x1e8] sm:$0xff]
  %v79 = vld [vmem:[%s1 + $0x1f0] sm:$0xff]
  %v80 = vld [vmem:[%s1 + $0x1f8] sm:$0xff]
  %v81 = vld [vmem:[%s1 + $0x200] sm:$0xff]
  %v82 = vld [vmem:[%s1 + $0x208] sm:$0xff]
  %v83 = vld [vmem:[%s1 + $0x210] sm:$0xff]
  %v84 = vld [vmem:[%s1 + $0x218] sm:$0xff]
  %v85 = vld [vmem:[%s1 + $0x220] sm:$0xff]
  %v86 = vld [vmem:[%s1 + $0x228] sm:$0xff]
  %v87 = vld [vmem:[%s1 + $0x230] sm:$0xff]
  %v88 = vld [vmem:[%s1 + $0x238] sm:$0xff]
  %v89 = vld [vmem:[%s1 + $0x240] sm:$0xff]
  %v90 = vld [vmem:[%s1 + $0x248] sm:$0xff]
  %v91 = vld [vmem:[%s1 + $0x250] sm:$0xff]
  %v92 = vld [vmem:[%s1 + $0x258] sm:$0xff]
  %v93 = vld [vmem:[%s1 + $0x260] sm:$0xff]
  %v94 = vld [vmem:[%s1 + $0x268] sm:$0xff]
  %v95 = vld [vmem:[%s1 + $0x270] sm:$0xff]
  %v96 = vld [vmem:[%s1 + $0x278] sm:$0xff]
  %v97 = vld [vmem:[%s1 + $0x280] sm:$0xff]
  %v98 = vld [vmem:[%s1 + $0x288] sm:$0xff]
  %v99 = vld [vmem:[%s1 + $0x290] sm:$0xff]
  %v100 = vld [vmem:[%s1 + $0x298] sm:$0xff]
  %v101 = vld [vmem:[%s1 + $0x2a0] sm:$0xff]
  %v102 = vld [vmem:[%s1 + $0x2a8] sm:$0xff]
  %v103 = vld [vmem:[%s1 + $0x2b0] sm:$0xff]
  %v104 = vld [vmem:[%s1 + $0x2b8] sm:$0xff]
  %v105 = vld [vmem:[%s1 + $0x2c0] sm:$0xff]
  %v106 = vld [vmem:[%s1 + $0x2c8] sm:$0xff]
  %v107 = vld [vmem:[%s1 + $0x2d0] sm:$0xff]
  %v108 = vld [vmem:[%s1 + $0x2d8] sm:$0xff]
  %v109 = vld [vmem:[%s1 + $0x2e0] sm:$0xff]
  %v110 = vld [vmem:[%s1 + $0x2e8] sm:$0xff]
  %v111 = vld [vmem:[%s1 + $0x2f0] sm:$0xff]
  %v112 = vld [vmem:[%s1 + $0x2f8] sm:$0xff]
  %v113 = vld [vmem:[%s1 + $0x300] sm:$0xff]
  %v114 = vld [vmem:[%s1 + $0x308] sm:$0xff]
  %v115 = vld [vmem:[%s2] sm:$0xff]
  %117 = vset.pattern.permute.xlu0 0
  %118 = vperm.xlu0 %117, %v115
  %v119 = vpop.permute.xlu0 %118
  %v123 = vunpack.c.l.b16 %v15
  %v124 = vunpack.c.h.b16 %v15
  %v125 = vunpack.c.l.b16 %v16
  %v126 = vunpack.c.h.b16 %v16
  %v127 = vpack.c.b16 %v123, %v123
  %v128 = vpack.c.b16 %v124, %v124
  %v129 = vpack.c.b16 %v125, %v125
  %v130 = vpack.c.b16 %v126, %v126
  %v232 = vunpack.c.l.b16 %v17
  %v233 = vunpack.c.h.b16 %v17
  %v234 = vunpack.c.l.b16 %v18
  %v235 = vunpack.c.h.b16 %v18
  %v236 = vunpack.c.l.b16 %v19
  %v237 = vunpack.c.h.b16 %v19
  %v238 = vunpack.c.l.b16 %v20
  %v239 = vunpack.c.h.b16 %v20
  %v240 = vunpack.c.l.b16 %v21
  %v241 = vunpack.c.h.b16 %v21
  %v242 = vunpack.c.l.b16 %v22
  %v243 = vunpack.c.h.b16 %v22
  %v244 = vunpack.c.l.b16 %v23
  %v245 = vunpack.c.h.b16 %v23
  %v246 = vunpack.c.l.b16 %v24
  %v247 = vunpack.c.h.b16 %v24
  %v248 = vunpack.c.l.b16 %v25
  %v249 = vunpack.c.h.b16 %v25
  %v250 = vunpack.c.l.b16 %v26
  %v251 = vunpack.c.h.b16 %v26
  %v252 = vunpack.c.l.b16 %v27
  %v253 = vunpack.c.h.b16 %v27
  %v254 = vunpack.c.l.b16 %v28
  %v255 = vunpack.c.h.b16 %v28
  %v256 = vunpack.c.l.b16 %v29
  %v257 = vunpack.c.h.b16 %v29
  %v258 = vunpack.c.l.b16 %v30
  %v259 = vunpack.c.h.b16 %v30
  %v260 = vunpack.c.l.b16 %v31
  %v261 = vunpack.c.h.b16 %v31
  %v262 = vunpack.c.l.b16 %v32
  %v263 = vunpack.c.h.b16 %v32
  %v264 = vunpack.c.l.b16 %v33
  %v265 = vunpack.c.h.b16 %v33
  %v266 = vunpack.c.l.b16 %v34
  %v267 = vunpack.c.h.b16 %v34
  %v268 = vunpack.c.l.b16 %v35
  %v269 = vunpack.c.h.b16 %v35
  %v270 = vunpack.c.l.b16 %v36
  %v271 = vunpack.c.h.b16 %v36
  %v272 = vunpack.c.l.b16 %v37
  %v273 = vunpack.c.h.b16 %v37
  %v274 = vunpack.c.l.b16 %v38
  %v275 = vunpack.c.h.b16 %v38
  %v276 = vunpack.c.l.b16 %v39
  %v277 = vunpack.c.h.b16 %v39
  %v278 = vunpack.c.l.b16 %v40
  %v279 = vunpack.c.h.b16 %v40
  %v280 = vunpack.c.l.b16 %v41
  %v281 = vunpack.c.h.b16 %v41
  %v282 = vunpack.c.l.b16 %v42
  %v283 = vunpack.c.h.b16 %v42
  %v284 = vunpack.c.l.b16 %v43
  %v285 = vunpack.c.h.b16 %v43
  %v286 = vunpack.c.l.b16 %v44
  %v287 = vunpack.c.h.b16 %v44
  %v288 = vunpack.c.l.b16 %v45
  %v289 = vunpack.c.h.b16 %v45
  %v290 = vunpack.c.l.b16 %v46
  %v291 = vunpack.c.h.b16 %v46
  %v292 = vunpack.c.l.b16 %v47
  %v293 = vunpack.c.h.b16 %v47
  %v294 = vunpack.c.l.b16 %v48
  %v295 = vunpack.c.h.b16 %v48
  %v296 = vunpack.c.l.b16 %v49
  %v297 = vunpack.c.h.b16 %v49
  %v298 = vunpack.c.l.b16 %v50
  %v299 = vunpack.c.h.b16 %v50
  %v300 = vunpack.c.l.b16 %v51
  %v301 = vunpack.c.h.b16 %v51
  %v302 = vunpack.c.l.b16 %v52
  %v303 = vunpack.c.h.b16 %v52
  %v304 = vunpack.c.l.b16 %v53
  %v305 = vunpack.c.h.b16 %v53
  %v306 = vunpack.c.l.b16 %v54
  %v307 = vunpack.c.h.b16 %v54
  %v308 = vunpack.c.l.b16 %v55
  %v309 = vunpack.c.h.b16 %v55
  %v310 = vunpack.c.l.b16 %v56
  %v311 = vunpack.c.h.b16 %v56
  %v312 = vunpack.c.l.b16 %v57
  %v313 = vunpack.c.h.b16 %v57
  %v314 = vunpack.c.l.b16 %v58
  %v315 = vunpack.c.h.b16 %v58
  %v316 = vunpack.c.l.b16 %v59
  %v317 = vunpack.c.h.b16 %v59
  %v318 = vunpack.c.l.b16 %v60
  %v319 = vunpack.c.h.b16 %v60
  %v320 = vunpack.c.l.b16 %v61
  %v321 = vunpack.c.h.b16 %v61
  %v322 = vunpack.c.l.b16 %v62
  %v323 = vunpack.c.h.b16 %v62
  %v324 = vunpack.c.l.b16 %v63
  %v325 = vunpack.c.h.b16 %v63
  %v326 = vunpack.c.l.b16 %v64
  %v327 = vunpack.c.h.b16 %v64
  %v328 = vunpack.c.l.b16 %v65
  %v329 = vunpack.c.h.b16 %v65
  %v330 = vunpack.c.l.b16 %v66
  %v331 = vunpack.c.h.b16 %v66
  %v332 = vunpack.c.l.b16 %v67
  %v333 = vunpack.c.h.b16 %v67
  %v334 = vunpack.c.l.b16 %v68
  %v335 = vunpack.c.h.b16 %v68
  %v336 = vunpack.c.l.b16 %v69
  %v337 = vunpack.c.h.b16 %v69
  %v338 = vunpack.c.l.b16 %v70
  %v339 = vunpack.c.h.b16 %v70
  %v340 = vunpack.c.l.b16 %v71
  %v341 = vunpack.c.h.b16 %v71
  %v342 = vunpack.c.l.b16 %v72
  %v343 = vunpack.c.h.b16 %v72
  %v344 = vunpack.c.l.b16 %v73
  %v345 = vunpack.c.h.b16 %v73
  %v346 = vunpack.c.l.b16 %v74
  %v347 = vunpack.c.h.b16 %v74
  %v348 = vunpack.c.l.b16 %v75
  %v349 = vunpack.c.h.b16 %v75
  %v350 = vunpack.c.l.b16 %v76
  %v351 = vunpack.c.h.b16 %v76
  %v352 = vunpack.c.l.b16 %v77
  %v353 = vunpack.c.h.b16 %v77
  %v354 = vunpack.c.l.b16 %v78
  %v355 = vunpack.c.h.b16 %v78
  %v356 = vunpack.c.l.b16 %v79
  %v357 = vunpack.c.h.b16 %v79
  %v358 = vunpack.c.l.b16 %v80
  %v359 = vunpack.c.h.b16 %v80
  %v360 = vunpack.c.l.b16 %v81
  %v361 = vunpack.c.h.b16 %v81
  %v362 = vunpack.c.l.b16 %v82
  %v363 = vunpack.c.h.b16 %v82
  %v364 = vunpack.c.l.b16 %v83
  %v365 = vunpack.c.h.b16 %v83
  %v366 = vunpack.c.l.b16 %v84
  %v367 = vunpack.c.h.b16 %v84
  %v368 = vunpack.c.l.b16 %v85
  %v369 = vunpack.c.h.b16 %v85
  %v370 = vunpack.c.l.b16 %v86
  %v371 = vunpack.c.h.b16 %v86
  %v372 = vunpack.c.l.b16 %v87
  %v373 = vunpack.c.h.b16 %v87
  %v374 = vunpack.c.l.b16 %v88
  %v375 = vunpack.c.h.b16 %v88
  %v376 = vunpack.c.l.b16 %v89
  %v377 = vunpack.c.h.b16 %v89
  %v378 = vunpack.c.l.b16 %v90
  %v379 = vunpack.c.h.b16 %v90
  %v380 = vunpack.c.l.b16 %v91
  %v381 = vunpack.c.h.b16 %v91
  %v382 = vunpack.c.l.b16 %v92
  %v383 = vunpack.c.h.b16 %v92
  %v384 = vunpack.c.l.b16 %v93
  %v385 = vunpack.c.h.b16 %v93
  %v386 = vunpack.c.l.b16 %v94
  %v387 = vunpack.c.h.b16 %v94
  %v388 = vunpack.c.l.b16 %v95
  %v389 = vunpack.c.h.b16 %v95
  %v390 = vunpack.c.l.b16 %v96
  %v391 = vunpack.c.h.b16 %v96
  %v392 = vunpack.c.l.b16 %v97
  %v393 = vunpack.c.h.b16 %v97
  %v394 = vunpack.c.l.b16 %v98
  %v395 = vunpack.c.h.b16 %v98
  %v396 = vunpack.c.l.b16 %v99
  %v397 = vunpack.c.h.b16 %v99
  %v398 = vunpack.c.l.b16 %v100
  %v399 = vunpack.c.h.b16 %v100
  %v400 = vunpack.c.l.b16 %v101
  %v401 = vunpack.c.h.b16 %v101
  %v402 = vunpack.c.l.b16 %v102
  %v403 = vunpack.c.h.b16 %v102
  %v404 = vunpack.c.l.b16 %v103
  %v405 = vunpack.c.h.b16 %v103
  %v406 = vunpack.c.l.b16 %v104
  %v407 = vunpack.c.h.b16 %v104
  %v408 = vunpack.c.l.b16 %v105
  %v409 = vunpack.c.h.b16 %v105
  %v410 = vunpack.c.l.b16 %v106
  %v411 = vunpack.c.h.b16 %v106
  %v412 = vunpack.c.l.b16 %v107
  %v413 = vunpack.c.h.b16 %v107
  %v414 = vunpack.c.l.b16 %v108
  %v415 = vunpack.c.h.b16 %v108
  %v416 = vunpack.c.l.b16 %v109
  %v417 = vunpack.c.h.b16 %v109
  %v418 = vunpack.c.l.b16 %v110
  %v419 = vunpack.c.h.b16 %v110
  %v420 = vunpack.c.l.b16 %v111
  %v421 = vunpack.c.h.b16 %v111
  %v422 = vunpack.c.l.b16 %v112
  %v423 = vunpack.c.h.b16 %v112
  %v424 = vunpack.c.l.b16 %v113
  %v425 = vunpack.c.h.b16 %v113
  %v426 = vunpack.c.l.b16 %v114
  %v427 = vunpack.c.h.b16 %v114
  %v428 = vpack.c.b16 %v236, %v232
  %v429 = vpack.c.b16 %v237, %v233
  %v430 = vpack.c.b16 %v238, %v234
  %v431 = vpack.c.b16 %v239, %v235
  %v432 = vpack.c.b16 %v244, %v240
  %v433 = vpack.c.b16 %v245, %v241
  %v434 = vpack.c.b16 %v246, %v242
  %v435 = vpack.c.b16 %v247, %v243
  %v436 = vpack.c.b16 %v252, %v248
  %v437 = vpack.c.b16 %v253, %v249
  %v438 = vpack.c.b16 %v254, %v250
  %v439 = vpack.c.b16 %v255, %v251
  %v440 = vpack.c.b16 %v260, %v256
  %v441 = vpack.c.b16 %v261, %v257
  %v442 = vpack.c.b16 %v262, %v258
  %v443 = vpack.c.b16 %v263, %v259
  %v444 = vpack.c.b16 %v268, %v264
  %v445 = vpack.c.b16 %v269, %v265
  %v446 = vpack.c.b16 %v270, %v266
  %v447 = vpack.c.b16 %v271, %v267
  %v448 = vpack.c.b16 %v276, %v272
  %v449 = vpack.c.b16 %v277, %v273
  %v450 = vpack.c.b16 %v278, %v274
  %v451 = vpack.c.b16 %v279, %v275
  %v452 = vpack.c.b16 %v284, %v280
  %v453 = vpack.c.b16 %v285, %v281
  %v454 = vpack.c.b16 %v286, %v282
  %v455 = vpack.c.b16 %v287, %v283
  %v456 = vpack.c.b16 %v292, %v288
  %v457 = vpack.c.b16 %v293, %v289
  %v458 = vpack.c.b16 %v294, %v290
  %v459 = vpack.c.b16 %v295, %v291
  %v460 = vpack.c.b16 %v300, %v296
  %v461 = vpack.c.b16 %v301, %v297
  %v462 = vpack.c.b16 %v302, %v298
  %v463 = vpack.c.b16 %v303, %v299
  %v464 = vpack.c.b16 %v308, %v304
  %v465 = vpack.c.b16 %v309, %v305
  %v466 = vpack.c.b16 %v310, %v306
  %v467 = vpack.c.b16 %v311, %v307
  %v468 = vpack.c.b16 %v316, %v312
  %v469 = vpack.c.b16 %v317, %v313
  %v470 = vpack.c.b16 %v318, %v314
  %v471 = vpack.c.b16 %v319, %v315
  %v472 = vpack.c.b16 %v324, %v320
  %v473 = vpack.c.b16 %v325, %v321
  %v474 = vpack.c.b16 %v326, %v322
  %v475 = vpack.c.b16 %v327, %v323
  %v476 = vpack.c.b16 %v332, %v328
  %v477 = vpack.c.b16 %v333, %v329
  %v478 = vpack.c.b16 %v334, %v330
  %v479 = vpack.c.b16 %v335, %v331
  %v480 = vpack.c.b16 %v340, %v336
  %v481 = vpack.c.b16 %v341, %v337
  %v482 = vpack.c.b16 %v342, %v338
  %v483 = vpack.c.b16 %v343, %v339
  %v484 = vpack.c.b16 %v348, %v344
  %v485 = vpack.c.b16 %v349, %v345
  %v486 = vpack.c.b16 %v350, %v346
  %v487 = vpack.c.b16 %v351, %v347
  %v488 = vpack.c.b16 %v356, %v352
  %v489 = vpack.c.b16 %v357, %v353
  %v490 = vpack.c.b16 %v358, %v354
  %v491 = vpack.c.b16 %v359, %v355
  %v492 = vpack.c.b16 %v364, %v360
  %v493 = vpack.c.b16 %v365, %v361
  %v494 = vpack.c.b16 %v366, %v362
  %v495 = vpack.c.b16 %v367, %v363
  %v496 = vpack.c.b16 %v372, %v368
  %v497 = vpack.c.b16 %v373, %v369
  %v498 = vpack.c.b16 %v374, %v370
  %v499 = vpack.c.b16 %v375, %v371
  %v500 = vpack.c.b16 %v380, %v376
  %v501 = vpack.c.b16 %v381, %v377
  %v502 = vpack.c.b16 %v382, %v378
  %v503 = vpack.c.b16 %v383, %v379
  %v504 = vpack.c.b16 %v388, %v384
  %v505 = vpack.c.b16 %v389, %v385
  %v506 = vpack.c.b16 %v390, %v386
  %v507 = vpack.c.b16 %v391, %v387
  %v508 = vpack.c.b16 %v396, %v392
  %v509 = vpack.c.b16 %v397, %v393
  %v510 = vpack.c.b16 %v398, %v394
  %v511 = vpack.c.b16 %v399, %v395
  %v512 = vpack.c.b16 %v404, %v400
  %v513 = vpack.c.b16 %v405, %v401
  %v514 = vpack.c.b16 %v406, %v402
  %v515 = vpack.c.b16 %v407, %v403
  %v516 = vpack.c.b16 %v412, %v408
  %v517 = vpack.c.b16 %v413, %v409
  %v518 = vpack.c.b16 %v414, %v410
  %v519 = vpack.c.b16 %v415, %v411
  %v520 = vpack.c.b16 %v420, %v416
  %v521 = vpack.c.b16 %v421, %v417
  %v522 = vpack.c.b16 %v422, %v418
  %v523 = vpack.c.b16 %v423, %v419
  %v524 = vpack.c.b16 %v424, %v424
  %v525 = vpack.c.b16 %v425, %v425
  %v526 = vpack.c.b16 %v426, %v426
  %v527 = vpack.c.b16 %v427, %v427
  %vm624 = vcmask 64512
  %v626 = vsel %vm624, %v130, 0
  %vm628 = vcmask 1043456
  %v630 = vsel %vm628, %v524, 0
  %v633 = vsel %vm628, %v525, 0
  %v636 = vsel %vm628, %v526, 0
  %v639 = vsel %vm628, %v527, 0
  %641 = vmatprep.subr.bf16.mxu0 %v429
  %642 = vmatpush1.bf16.msra.mxu0 %v428
  %643 = vmatprep.subr.bf16.mxu0 %v433
  %644 = vmatpush1.bf16.msra.mxu0 %v432
  %645 = vmatprep.subr.bf16.mxu0 %v437
  %646 = vmatpush1.bf16.msra.mxu0 %v436
  %647 = vmatprep.subr.bf16.mxu0 %v441
  %648 = vmatpush1.bf16.msra.mxu0 %v440
  %649 = vmatprep.subr.bf16.mxu0 %v445
  %650 = vmatpush1.bf16.msra.mxu0 %v444
  %651 = vmatprep.subr.bf16.mxu0 %v449
  %652 = vmatpush1.bf16.msra.mxu0 %v448
  %653 = vmatprep.subr.bf16.mxu0 %v453
  %654 = vmatpush1.bf16.msra.mxu0 %v452
  %655 = vmatprep.subr.bf16.mxu0 %v457
  %656 = vmatpush1.bf16.msra.mxu0 %v456
  %657 = vmatprep.subr.bf16.mxu0 %v461
  %658 = vmatpush1.bf16.msra.mxu0 %v460
  %659 = vmatprep.subr.bf16.mxu0 %v465
  %660 = vmatpush1.bf16.msra.mxu0 %v464
  %661 = vmatprep.subr.bf16.mxu0 %v469
  %662 = vmatpush1.bf16.msra.mxu0 %v468
  %663 = vmatprep.subr.bf16.mxu0 %v473
  %664 = vmatpush1.bf16.msra.mxu0 %v472
  %665 = vmatprep.subr.bf16.mxu0 %v477
  %666 = vmatpush1.bf16.msra.mxu0 %v476
  %667 = vmatprep.subr.bf16.mxu0 %v481
  %668 = vmatpush1.bf16.msra.mxu0 %v480
  %669 = vmatprep.subr.bf16.mxu0 %v485
  %670 = vmatpush1.bf16.msra.mxu0 %v484
  %671 = vmatprep.subr.bf16.mxu0 %v489
  %672 = vmatpush1.bf16.msra.mxu0 %v488
  %673 = vmatprep.mubr.bf16.mxu0 %v128
  %674 = vmatmul.mubr.bf16.gmra.mrb[0].mxu0 %v127
  %v675 = vpop.f32.mrb[0].mxu0
  %v676 = vadd.f32 %v119, %v675
  %v677 = vpop.f32.mrb[0].mxu0
  %v678 = vadd.f32 %v119, %v677
  %v679 = vpop.f32.mrb[0].mxu0
  %v680 = vpop.f32.mrb[0].mxu0
  %681 = vdwg.mxu0
  %682 = vmatprep.subr.bf16.mxu0 %v493
  %683 = vmatpush1.bf16.msra.mxu0 %v492
  %684 = vmatprep.subr.bf16.mxu0 %v497
  %685 = vmatpush1.bf16.msra.mxu0 %v496
  %686 = vmatprep.subr.bf16.mxu0 %v501
  %687 = vmatpush1.bf16.msra.mxu0 %v500
  %688 = vmatprep.subr.bf16.mxu0 %v505
  %689 = vmatpush1.bf16.msra.mxu0 %v504
  %690 = vmatprep.subr.bf16.mxu0 %v509
  %691 = vmatpush1.bf16.msra.mxu0 %v508
  %692 = vmatprep.subr.bf16.mxu0 %v513
  %693 = vmatpush1.bf16.msra.mxu0 %v512
  %694 = vmatprep.subr.bf16.mxu0 %v517
  %695 = vmatpush1.bf16.msra.mxu0 %v516
  %696 = vmatprep.subr.bf16.mxu0 %v521
  %697 = vmatpush1.bf16.msra.mxu0 %v520
  %698 = vmatprep.subr.bf16.mxu0 %v633
  %699 = vmatpush1.bf16.msra.mxu0 %v630
  %700 = vmatprep.subr.bf16.mxu0 0
  %701 = vmatpush1.bf16.msra.mxu0 0
  %702 = vmatprep.subr.bf16.mxu0 0
  %703 = vmatpush1.bf16.msra.mxu0 0
  %704 = vmatprep.subr.bf16.mxu0 0
  %705 = vmatpush1.bf16.msra.mxu0 0
  %706 = vmatprep.subr.bf16.mxu0 0
  %707 = vmatpush1.bf16.msra.mxu0 0
  %708 = vmatprep.subr.bf16.mxu0 0
  %709 = vmatpush1.bf16.msra.mxu0 0
  %710 = vmatprep.subr.bf16.mxu0 0
  %711 = vmatpush1.bf16.msra.mxu0 0
  %712 = vmatprep.subr.bf16.mxu0 0
  %713 = vmatpush1.bf16.msra.mxu0 0
  %714 = vmatprep.mubr.bf16.mxu0 %v626
  %715 = vmatmul.mubr.bf16.gmra.mrb[0].mxu0 %v129
  %v716 = vpop.f32.mrb[0].mxu0
  %v717 = vadd.f32 %v676, %v716
  %v718 = vpop.f32.mrb[0].mxu0
  %v719 = vadd.f32 %v678, %v718
  %v720 = vpop.f32.mrb[0].mxu0
  %v721 = vpop.f32.mrb[0].mxu0
  %722 = vdwg.mxu0
  %723 = vmatprep.subr.bf16.mxu0 %v431
  %724 = vmatpush1.bf16.msra.mxu0 %v430
  %725 = vmatprep.subr.bf16.mxu0 %v435
  %726 = vmatpush1.bf16.msra.mxu0 %v434
  %727 = vmatprep.subr.bf16.mxu0 %v439
  %728 = vmatpush1.bf16.msra.mxu0 %v438
  %729 = vmatprep.subr.bf16.mxu0 %v443
  %730 = vmatpush1.bf16.msra.mxu0 %v442
  %731 = vmatprep.subr.bf16.mxu0 %v447
  %732 = vmatpush1.bf16.msra.mxu0 %v446
  %733 = vmatprep.subr.bf16.mxu0 %v451
  %734 = vmatpush1.bf16.msra.mxu0 %v450
  %735 = vmatprep.subr.bf16.mxu0 %v455
  %736 = vmatpush1.bf16.msra.mxu0 %v454
  %737 = vmatprep.subr.bf16.mxu0 %v459
  %738 = vmatpush1.bf16.msra.mxu0 %v458
  %739 = vmatprep.subr.bf16.mxu0 %v463
  %740 = vmatpush1.bf16.msra.mxu0 %v462
  %741 = vmatprep.subr.bf16.mxu0 %v467
  %742 = vmatpush1.bf16.msra.mxu0 %v466
  %743 = vmatprep.subr.bf16.mxu0 %v471
  %744 = vmatpush1.bf16.msra.mxu0 %v470
  %745 = vmatprep.subr.bf16.mxu0 %v475
  %746 = vmatpush1.bf16.msra.mxu0 %v474
  %747 = vmatprep.subr.bf16.mxu0 %v479
  %748 = vmatpush1.bf16.msra.mxu0 %v478
  %749 = vmatprep.subr.bf16.mxu0 %v483
  %750 = vmatpush1.bf16.msra.mxu0 %v482
  %751 = vmatprep.subr.bf16.mxu0 %v487
  %752 = vmatpush1.bf16.msra.mxu0 %v486
  %753 = vmatprep.subr.bf16.mxu0 %v491
  %754 = vmatpush1.bf16.msra.mxu0 %v490
  %755 = vmatprep.mubr.bf16.mxu0 %v128
  %756 = vmatmul.mubr.bf16.gmra.mrb[0].mxu0 %v127
  %v757 = vpop.f32.mrb[0].mxu0
  %v758 = vadd.f32 %v119, %v757
  %v759 = vpop.f32.mrb[0].mxu0
  %v760 = vadd.f32 %v119, %v759
  %v761 = vpop.f32.mrb[0].mxu0
  %v762 = vpop.f32.mrb[0].mxu0
  %763 = vdwg.mxu0
  %764 = vmatprep.subr.bf16.mxu0 %v495
  %765 = vmatpush1.bf16.msra.mxu0 %v494
  %766 = vmatprep.subr.bf16.mxu0 %v499
  %767 = vmatpush1.bf16.msra.mxu0 %v498
  %768 = vmatprep.subr.bf16.mxu0 %v503
  %769 = vmatpush1.bf16.msra.mxu0 %v502
  %770 = vmatprep.subr.bf16.mxu0 %v507
  %771 = vmatpush1.bf16.msra.mxu0 %v506
  %772 = vmatprep.subr.bf16.mxu0 %v511
  %773 = vmatpush1.bf16.msra.mxu0 %v510
  %774 = vmatprep.subr.bf16.mxu0 %v515
  %775 = vmatpush1.bf16.msra.mxu0 %v514
  %776 = vmatprep.subr.bf16.mxu0 %v519
  %777 = vmatpush1.bf16.msra.mxu0 %v518
  %778 = vmatprep.subr.bf16.mxu0 %v523
  %779 = vmatpush1.bf16.msra.mxu0 %v522
  %780 = vmatprep.subr.bf16.mxu0 %v639
  %781 = vmatpush1.bf16.msra.mxu0 %v636
  %782 = vmatprep.subr.bf16.mxu0 0
  %783 = vmatpush1.bf16.msra.mxu0 0
  %784 = vmatprep.subr.bf16.mxu0 0
  %785 = vmatpush1.bf16.msra.mxu0 0
  %786 = vmatprep.subr.bf16.mxu0 0
  %787 = vmatpush1.bf16.msra.mxu0 0
  %788 = vmatprep.subr.bf16.mxu0 0
  %789 = vmatpush1.bf16.msra.mxu0 0
  %790 = vmatprep.subr.bf16.mxu0 0
  %791 = vmatpush1.bf16.msra.mxu0 0
  %792 = vmatprep.subr.bf16.mxu0 0
  %793 = vmatpush1.bf16.msra.mxu0 0
  %794 = vmatprep.subr.bf16.mxu0 0
  %795 = vmatpush1.bf16.msra.mxu0 0
  %796 = vmatprep.mubr.bf16.mxu0 %v626
  %797 = vmatmul.mubr.bf16.gmra.mrb[0].mxu0 %v129
  %v798 = vpop.f32.mrb[0].mxu0
  %v799 = vadd.f32 %v758, %v798
  %v800 = vpop.f32.mrb[0].mxu0
  %v801 = vadd.f32 %v760, %v800
  %v802 = vpop.f32.mrb[0].mxu0
  %v803 = vpop.f32.mrb[0].mxu0
  %804 = vdwg.mxu0
  %v805 = vmax.f32 %v717, 0.0
  %v806 = vmax.f32 %v719, 0.0
  %v807 = vmax.f32 %v799, 0.0
  %v808 = vmax.f32 %v801, 0.0
  %809 = vst [vmem:[%s3] sm:$0xff] %v805
  %810 = vst [vmem:[%s3 + $0x8] sm:$0xff] %v806
  %811 = vst [vmem:[%s3 + $0x10] sm:$0xff] %v807
  %812 = vst [vmem:[%s3 + $0x18] sm:$0xff] %v808
  // Predicated region
  $region14: #{forward.27} parent=0 // pred_check
    _
  $region15: #{forward.27} parent=0 // pred_check_branch
    %814 = sbr.rel (0) target = $region17
  $region16: #{forward.27} parent=0 // pred_region
    _
  $region17: #{forward.27} parent=0 // pred_fallthru
    _
  // Predicated region
  $region18: #{forward.27} parent=0 // pred_check
    _
  $region19: #{forward.27} parent=0 // pred_check_branch
    %816 = sbr.rel (0) target = $region21
  $region20: #{forward.27} parent=0 // pred_region
    _
  $region21: #{forward.27} parent=0 // pred_fallthru
    _

// kernel: forward.28
$region0: #{forward.28}
  #allocation0 [shape = 'u32[]', space=smem, size = 0x4, offset = 0x4, fixed_abs, tag = 'smem constant byte address 0x4 - core index']
  #allocation1 [shape = 'u32[144,128]{1,0:T(1,128)}', space=vmem, size = 0x12000, scoped, tag = 'internal scratch']
  %s0 = inlined_call_operand.vmem [shape: f32[9,8,128], index: 0, kind: input, shape index: {}]
  %s1 = inlined_call_operand.vmem [shape: f32[8,128], index: 1, kind: output, shape index: {}]
  %s2 = sld [smem:[#allocation0]]
  $region14: #{forward.28} parent=0
    _
  %s4 = ssub.s32 1, %s2
  %s5 = scalar_select 0, %s4, %s2
  // Predicated region
  $region2: #{forward.28} parent=0 // pred_check
    _
  $region3: #{forward.28} parent=0 // pred_check_branch
    %7 = sbr.rel (0) target = $region5
  $region4: #{forward.28} parent=0 // pred_region
    _
  $region5: #{forward.28} parent=0 // pred_fallthru
    _
  %v8 = vld [vmem:[%s0] sm:$0xff]
  %s9 = scalar_lea.vmem %s0, 8
  %v10 = vld [vmem:[%s9] sm:$0xff]
  %v11 = vmax.f32 %v8, %v10
  %s12 = scalar_lea.vmem %s0, 16
  %v13 = vld [vmem:[%s12] sm:$0xff]
  %v14 = vmax.f32 %v11, %v13
  %s15 = scalar_lea.vmem %s0, 24
  %v16 = vld [vmem:[%s15] sm:$0xff]
  %v17 = vmax.f32 %v14, %v16
  %s18 = scalar_lea.vmem %s0, 32
  %v19 = vld [vmem:[%s18] sm:$0xff]
  %v20 = vmax.f32 %v17, %v19
  %s21 = scalar_lea.vmem %s0, 40
  %v22 = vld [vmem:[%s21] sm:$0xff]
  %v23 = vmax.f32 %v20, %v22
  %s24 = scalar_lea.vmem %s0, 48
  %v25 = vld [vmem:[%s24] sm:$0xff]
  %v26 = vmax.f32 %v23, %v25
  %s27 = scalar_lea.vmem %s0, 56
  %v28 = vld [vmem:[%s27] sm:$0xff]
  %v29 = vmax.f32 %v26, %v28
  %s30 = scalar_lea.vmem %s0, 64
  %v31 = vld [vmem:[%s30] sm:$0xff]
  %v32 = vmax.f32 %v29, %v31
  %33 = vst [vmem:[%s1] sm:$0xff] %v32
  // Predicated region
  $region6: #{forward.28} parent=0 // pred_check
    _
  $region7: #{forward.28} parent=0 // pred_check_branch
    %35 = sbr.rel (0) target = $region9
  $region8: #{forward.28} parent=0 // pred_region
    _
  $region9: #{forward.28} parent=0 // pred_fallthru
    _
  // Predicated region
  $region10: #{forward.28} parent=0 // pred_check
    _
  $region11: #{forward.28} parent=0 // pred_check_branch
    %37 = sbr.rel (0) target = $region13
  $region12: #{forward.28} parent=0 // pred_region
    _
  $region13: #{forward.28} parent=0 // pred_fallthru
    _

// kernel: forward.29
$region0: #{forward.29}
  #allocation0 [shape = 'u32[]', space=smem, size = 0x4, offset = 0x4, fixed_abs, tag = 'smem constant byte address 0x4 - core index']
  #allocation1 [shape = 'u32[144,128]{1,0:T(1,128)}', space=vmem, size = 0x12000, scoped, tag = 'internal scratch']
  %s0 = inlined_call_operand.vmem [shape: bf16[8,72], index: 0, kind: input, shape index: {}]
  %s1 = inlined_call_operand.vmem [shape: bf16[72,128], index: 1, kind: input, shape index: {}]
  %s2 = inlined_call_operand.vmem [shape: f32[8,1], index: 2, kind: input, shape index: {}]
  %s3 = inlined_call_operand.vmem [shape: f32[8,128], index: 3, kind: output, shape index: {}]
  %s4 = sld [smem:[#allocation0]]
  $region22: #{forward.29} parent=0
    _
  %s6 = ssub.s32 1, %s4
  %s7 = scalar_select 0, %s6, %s4
  // Predicated region
  $region2: #{forward.29} parent=0 // pred_check
    _
  $region3: #{forward.29} parent=0 // pred_check_branch
    %9 = sbr.rel (0) target = $region5
  $region4: #{forward.29} parent=0 // pred_region
    _
  $region5: #{forward.29} parent=0 // pred_fallthru
    _
  // Predicated region
  $region6: #{forward.29} parent=0 // pred_check
    _
  $region7: #{forward.29} parent=0 // pred_check_branch
    %11 = sbr.rel (0) target = $region9
  $region8: #{forward.29} parent=0 // pred_region
    _
  $region9: #{forward.29} parent=0 // pred_fallthru
    _
  // Predicated region
  $region10: #{forward.29} parent=0 // pred_check
    _
  $region11: #{forward.29} parent=0 // pred_check_branch
    %13 = sbr.rel (0) target = $region13
  $region12: #{forward.29} parent=0 // pred_region
    _
  $region13: #{forward.29} parent=0 // pred_fallthru
    _
  %v15 = vld [vmem:[%s0] sm:$0xf]
  %v16 = vld [vmem:[%s1] sm:$0xf]
  %v17 = vld [vmem:[%s1 + $0x4] sm:$0xf]
  %v18 = vld [vmem:[%s1 + $0x8] sm:$0xf]
  %v19 = vld [vmem:[%s1 + $0xc] sm:$0xf]
  %v20 = vld [vmem:[%s1 + $0x10] sm:$0xf]
  %v21 = vld [vmem:[%s1 + $0x14] sm:$0xf]
  %v22 = vld [vmem:[%s1 + $0x18] sm:$0xf]
  %v23 = vld [vmem:[%s1 + $0x1c] sm:$0xf]
  %v24 = vld [vmem:[%s1 + $0x20] sm:$0xf]
  %v25 = vld [vmem:[%s2] sm:$0xff]
  %27 = vset.pattern.permute.xlu0 0
  %28 = vperm.xlu0 %27, %v25
  %v29 = vpop.permute.xlu0 %28
  %v40 = vunpack.c.l.b16 %v16
  %v41 = vunpack.c.l.b16 %v17
  %v42 = vunpack.c.l.b16 %v18
  %v43 = vunpack.c.l.b16 %v19
  %v44 = vunpack.c.l.b16 %v20
  %v45 = vunpack.c.l.b16 %v21
  %v46 = vunpack.c.l.b16 %v22
  %v47 = vunpack.c.l.b16 %v23
  %v48 = vunpack.c.l.b16 %v24
  %v49 = vpack.c.b16 %v41, %v40
  %v50 = vpack.c.b16 %v43, %v42
  %v51 = vpack.c.b16 %v45, %v44
  %v52 = vpack.c.b16 %v47, %v46
  %v53 = vpack.c.b16 %v48, %v48
  %vm58 = vcmask 588800
  %v60 = vsel %vm58, %v15, 0
  %vm62 = vcmask 1043456
  %v64 = vsel %vm62, %v53, 0
  %66 = vmatprep.subr.bf16.mxu0 0
  %67 = vmatpush1.bf16.msra.mxu0 %v49
  %68 = vmatprep.subr.bf16.mxu0 0
  %69 = vmatpush1.bf16.msra.mxu0 %v50
  %70 = vmatprep.subr.bf16.mxu0 0
  %71 = vmatpush1.bf16.msra.mxu0 %v51
  %72 = vmatprep.subr.bf16.mxu0 0
  %73 = vmatpush1.bf16.msra.mxu0 %v52
  %74 = vmatprep.subr.bf16.mxu0 0
  %75 = vmatpush1.bf16.msra.mxu0 %v64
  %76 = vmatprep.subr.bf16.mxu0 0
  %77 = vmatpush1.bf16.msra.mxu0 0
  %78 = vmatprep.subr.bf16.mxu0 0
  %79 = vmatpush1.bf16.msra.mxu0 0
  %80 = vmatprep.subr.bf16.mxu0 0
  %81 = vmatpush1.bf16.msra.mxu0 0
  %82 = vmatprep.subr.bf16.mxu0 0
  %83 = vmatpush1.bf16.msra.mxu0 0
  %84 = vmatprep.subr.bf16.mxu0 0
  %85 = vmatpush1.bf16.msra.mxu0 0
  %86 = vmatprep.subr.bf16.mxu0 0
  %87 = vmatpush1.bf16.msra.mxu0 0
  %88 = vmatprep.subr.bf16.mxu0 0
  %89 = vmatpush1.bf16.msra.mxu0 0
  %90 = vmatprep.subr.bf16.mxu0 0
  %91 = vmatpush1.bf16.msra.mxu0 0
  %92 = vmatprep.subr.bf16.mxu0 0
  %93 = vmatpush1.bf16.msra.mxu0 0
  %94 = vmatprep.subr.bf16.mxu0 0
  %95 = vmatpush1.bf16.msra.mxu0 0
  %96 = vmatprep.subr.bf16.mxu0 0
  %97 = vmatpush1.bf16.msra.mxu0 0
  %98 = vmatprep.mubr.bf16.mxu0 0
  %99 = vmatmul.mubr.bf16.gmra.mrb[0].mxu0 %v60
  %v100 = vpop.f32.mrb[0].mxu0
  %v101 = vadd.f32 %v29, %v100
  %v102 = vpop.f32.mrb[0].mxu0
  %v103 = vpop.f32.mrb[0].mxu0
  %v104 = vpop.f32.mrb[0].mxu0
  %105 = vdwg.mxu0
  %v106 = vmax.f32 %v101, 0.0
  %107 = vst [vmem:[%s3] sm:$0xff] %v106
  // Predicated region
  $region14: #{forward.29} parent=0 // pred_check
    _
  $region15: #{forward.29} parent=0 // pred_check_branch
    %109 = sbr.rel (0) target = $region17
  $region16: #{forward.29} parent=0 // pred_region
    _
  $region17: #{forward.29} parent=0 // pred_fallthru
    _
  // Predicated region
  $region18: #{forward.29} parent=0 // pred_check
    _
  $region19: #{forward.29} parent=0 // pred_check_branch
    %111 = sbr.rel (0) target = $region21
  $region20: #{forward.29} parent=0 // pred_region
    _
  $region21: #{forward.29} parent=0 // pred_fallthru
    _

// kernel: forward.30
$region0: #{forward.30}
  #allocation0 [shape = 'u32[]', space=smem, size = 0x4, offset = 0x4, fixed_abs, tag = 'smem constant byte address 0x4 - core index']
  #allocation1 [shape = 'u32[144,128]{1,0:T(1,128)}', space=vmem, size = 0x12000, scoped, tag = 'internal scratch']
  %s0 = inlined_call_operand.vmem [shape: bf16[8,72], index: 0, kind: input, shape index: {}]
  %s1 = inlined_call_operand.vmem [shape: bf16[72,128], index: 1, kind: input, shape index: {}]
  %s2 = inlined_call_operand.vmem [shape: f32[8,1], index: 2, kind: input, shape index: {}]
  %s3 = inlined_call_operand.vmem [shape: f32[8,128], index: 3, kind: input, shape index: {}]
  %s4 = inlined_call_operand.vmem [shape: f32[8,128], index: 4, kind: output, shape index: {}]
  %s5 = sld [smem:[#allocation0]]
  $region26: #{forward.30} parent=0
    _
  %s7 = ssub.s32 1, %s5
  %s8 = scalar_select 0, %s7, %s5
  // Predicated region
  $region2: #{forward.30} parent=0 // pred_check
    _
  $region3: #{forward.30} parent=0 // pred_check_branch
    %10 = sbr.rel (0) target = $region5
  $region4: #{forward.30} parent=0 // pred_region
    _
  $region5: #{forward.30} parent=0 // pred_fallthru
    _
  // Predicated region
  $region6: #{forward.30} parent=0 // pred_check
    _
  $region7: #{forward.30} parent=0 // pred_check_branch
    %12 = sbr.rel (0) target = $region9
  $region8: #{forward.30} parent=0 // pred_region
    _
  $region9: #{forward.30} parent=0 // pred_fallthru
    _
  // Predicated region
  $region10: #{forward.30} parent=0 // pred_check
    _
  $region11: #{forward.30} parent=0 // pred_check_branch
    %14 = sbr.rel (0) target = $region13
  $region12: #{forward.30} parent=0 // pred_region
    _
  $region13: #{forward.30} parent=0 // pred_fallthru
    _
  // Predicated region
  $region14: #{forward.30} parent=0 // pred_check
    _
  $region15: #{forward.30} parent=0 // pred_check_branch
    %16 = sbr.rel (0) target = $region17
  $region16: #{forward.30} parent=0 // pred_region
    _
  $region17: #{forward.30} parent=0 // pred_fallthru
    _
  %v18 = vld [vmem:[%s0] sm:$0xf]
  %v19 = vld [vmem:[%s1] sm:$0xf]
  %v20 = vld [vmem:[%s1 + $0x4] sm:$0xf]
  %v21 = vld [vmem:[%s1 + $0x8] sm:$0xf]
  %v22 = vld [vmem:[%s1 + $0xc] sm:$0xf]
  %v23 = vld [vmem:[%s1 + $0x10] sm:$0xf]
  %v24 = vld [vmem:[%s1 + $0x14] sm:$0xf]
  %v25 = vld [vmem:[%s1 + $0x18] sm:$0xf]
  %v26 = vld [vmem:[%s1 + $0x1c] sm:$0xf]
  %v27 = vld [vmem:[%s1 + $0x20] sm:$0xf]
  %v28 = vld [vmem:[%s2] sm:$0xff]
  %30 = vset.pattern.permute.xlu0 0
  %31 = vperm.xlu0 %30, %v28
  %v32 = vpop.permute.xlu0 %31
  %v43 = vunpack.c.l.b16 %v19
  %v44 = vunpack.c.l.b16 %v20
  %v45 = vunpack.c.l.b16 %v21
  %v46 = vunpack.c.l.b16 %v22
  %v47 = vunpack.c.l.b16 %v23
  %v48 = vunpack.c.l.b16 %v24
  %v49 = vunpack.c.l.b16 %v25
  %v50 = vunpack.c.l.b16 %v26
  %v51 = vunpack.c.l.b16 %v27
  %v52 = vpack.c.b16 %v44, %v43
  %v53 = vpack.c.b16 %v46, %v45
  %v54 = vpack.c.b16 %v48, %v47
  %v55 = vpack.c.b16 %v50, %v49
  %v56 = vpack.c.b16 %v51, %v51
  %vm61 = vcmask 588800
  %v63 = vsel %vm61, %v18, 0
  %vm65 = vcmask 1043456
  %v67 = vsel %vm65, %v56, 0
  %69 = vmatprep.subr.bf16.mxu0 0
  %70 = vmatpush1.bf16.msra.mxu0 %v52
  %71 = vmatprep.subr.bf16.mxu0 0
  %72 = vmatpush1.bf16.msra.mxu0 %v53
  %73 = vmatprep.subr.bf16.mxu0 0
  %74 = vmatpush1.bf16.msra.mxu0 %v54
  %75 = vmatprep.subr.bf16.mxu0 0
  %76 = vmatpush1.bf16.msra.mxu0 %v55
  %77 = vmatprep.subr.bf16.mxu0 0
  %78 = vmatpush1.bf16.msra.mxu0 %v67
  %79 = vmatprep.subr.bf16.mxu0 0
  %80 = vmatpush1.bf16.msra.mxu0 0
  %81 = vmatprep.subr.bf16.mxu0 0
  %82 = vmatpush1.bf16.msra.mxu0 0
  %83 = vmatprep.subr.bf16.mxu0 0
  %84 = vmatpush1.bf16.msra.mxu0 0
  %85 = vmatprep.subr.bf16.mxu0 0
  %86 = vmatpush1.bf16.msra.mxu0 0
  %87 = vmatprep.subr.bf16.mxu0 0
  %88 = vmatpush1.bf16.msra.mxu0 0
  %89 = vmatprep.subr.bf16.mxu0 0
  %90 = vmatpush1.bf16.msra.mxu0 0
  %91 = vmatprep.subr.bf16.mxu0 0
  %92 = vmatpush1.bf16.msra.mxu0 0
  %93 = vmatprep.subr.bf16.mxu0 0
  %94 = vmatpush1.bf16.msra.mxu0 0
  %95 = vmatprep.subr.bf16.mxu0 0
  %96 = vmatpush1.bf16.msra.mxu0 0
  %97 = vmatprep.subr.bf16.mxu0 0
  %98 = vmatpush1.bf16.msra.mxu0 0
  %99 = vmatprep.subr.bf16.mxu0 0
  %100 = vmatpush1.bf16.msra.mxu0 0
  %101 = vmatprep.mubr.bf16.mxu0 0
  %102 = vmatmul.mubr.bf16.gmra.mrb[0].mxu0 %v63
  %v103 = vpop.f32.mrb[0].mxu0
  %v104 = vadd.f32 %v32, %v103
  %v105 = vpop.f32.mrb[0].mxu0
  %v106 = vpop.f32.mrb[0].mxu0
  %v107 = vpop.f32.mrb[0].mxu0
  %108 = vdwg.mxu0
  %v109 = vld [vmem:[%s3] sm:$0xff]
  %v110 = vadd.f32 %v104, %v109
  %v111 = vmax.f32 %v110, 0.0
  %112 = vst [vmem:[%s4] sm:$0xff] %v111
  // Predicated region
  $region18: #{forward.30} parent=0 // pred_check
    _
  $region19: #{forward.30} parent=0 // pred_check_branch
    %114 = sbr.rel (0) target = $region21
  $region20: #{forward.30} parent=0 // pred_region
    _
  $region21: #{forward.30} parent=0 // pred_fallthru
    _
  // Predicated region
  $region22: #{forward.30} parent=0 // pred_check
    _
  $region23: #{forward.30} parent=0 // pred_check_branch
    %116 = sbr.rel (0) target = $region25
  $region24: #{forward.30} parent=0 // pred_region
    _
  $region25: #{forward.30} parent=0 // pred_fallthru
    _

// kernel: forward.34
$region0: #{forward.34}
  #allocation0 [shape = 'u32[]', space=smem, size = 0x4, offset = 0x4, fixed_abs, tag = 'smem constant byte address 0x4 - core index']
  #allocation1 [shape = 'u32[144,128]{1,0:T(1,128)}', space=vmem, size = 0x12000, scoped, tag = 'internal scratch']
  %s0 = inlined_call_operand.vmem [shape: bf16[16,72], index: 0, kind: input, shape index: {}]
  %s1 = inlined_call_operand.vmem [shape: bf16[72,32], index: 1, kind: input, shape index: {}]
  %s2 = inlined_call_operand.vmem [shape: f32[16,1], index: 2, kind: input, shape index: {}]
  %s3 = inlined_call_operand.vmem [shape: f32[16,32], index: 3, kind: output, shape index: {}]
  %s4 = sld [smem:[#allocation0]]
  $region22: #{forward.34} parent=0
    _
  %s6 = ssub.s32 1, %s4
  %s7 = scalar_select 0, %s6, %s4
  // Predicated region
  $region2: #{forward.34} parent=0 // pred_check
    _
  $region3: #{forward.34} parent=0 // pred_check_branch
    %9 = sbr.rel (0) target = $region5
  $region4: #{forward.34} parent=0 // pred_region
    _
  $region5: #{forward.34} parent=0 // pred_fallthru
    _
  // Predicated region
  $region6: #{forward.34} parent=0 // pred_check
    _
  $region7: #{forward.34} parent=0 // pred_check_branch
    %11 = sbr.rel (0) target = $region9
  $region8: #{forward.34} parent=0 // pred_region
    _
  $region9: #{forward.34} parent=0 // pred_fallthru
    _
  // Predicated region
  $region10: #{forward.34} parent=0 // pred_check
    _
  $region11: #{forward.34} parent=0 // pred_check_branch
    %13 = sbr.rel (0) target = $region13
  $region12: #{forward.34} parent=0 // pred_region
    _
  $region13: #{forward.34} parent=0 // pred_fallthru
    _
  %v15 = vld [vmem:[%s0] sm:$0xf]
  %v16 = vld [vmem:[%s0 + $0x4] sm:$0xf]
  %v17 = vld [vmem:[%s1] sm:$0xf]
  %v18 = vld [vmem:[%s1 + $0x4] sm:$0xf]
  %v19 = vld [vmem:[%s1 + $0x8] sm:$0xf]
  %v20 = vld [vmem:[%s1 + $0xc] sm:$0xf]
  %v21 = vld [vmem:[%s1 + $0x10] sm:$0xf]
  %v22 = vld [vmem:[%s1 + $0x14] sm:$0xf]
  %v23 = vld [vmem:[%s1 + $0x18] sm:$0xf]
  %v24 = vld [vmem:[%s1 + $0x1c] sm:$0xf]
  %v25 = vld [vmem:[%s1 + $0x20] sm:$0xf]
  %v26 = vld [vmem:[%s2] sm:$0xff]
  %v27 = vld [vmem:[%s2 + $0x8] sm:$0xff]
  %29 = vset.pattern.permute.xlu0 0
  %30 = vperm.xlu0 %29, %v26
  %v31 = vpop.permute.xlu0 %30
  %34 = vset.pattern.permute.xlu0 0
  %35 = vperm.xlu0 %34, %v27
  %v36 = vpop.permute.xlu0 %35
  %v40 = vunpack.c.l.b16 %v15
  %v41 = vunpack.c.l.b16 %v16
  %v42 = vpack.c.b16 %v41, %v40
  %v52 = vunpack.c.l.b16 %v17
  %v53 = vunpack.c.l.b16 %v18
  %v54 = vunpack.c.l.b16 %v19
  %v55 = vunpack.c.l.b16 %v20
  %v56 = vunpack.c.l.b16 %v21
  %v57 = vunpack.c.l.b16 %v22
  %v58 = vunpack.c.l.b16 %v23
  %v59 = vunpack.c.l.b16 %v24
  %v60 = vunpack.c.l.b16 %v25
  %v61 = vpack.c.b16 %v53, %v52
  %v62 = vpack.c.b16 %v55, %v54
  %v63 = vpack.c.b16 %v57, %v56
  %v64 = vpack.c.b16 %v59, %v58
  %v65 = vpack.c.b16 %v60, %v60
  %vm70 = vcmask 588800
  %v72 = vsel %vm70, %v42, 0
  %vm74 = vcmask 1043456
  %v76 = vsel %vm74, %v65, 0
  %78 = vmatprep.subr.bf16.mxu0 0
  %79 = vmatpush1.bf16.msra.mxu0 %v61
  %80 = vmatprep.subr.bf16.mxu0 0
  %81 = vmatpush1.bf16.msra.mxu0 %v62
  %82 = vmatprep.subr.bf16.mxu0 0
  %83 = vmatpush1.bf16.msra.mxu0 %v63
  %84 = vmatprep.subr.bf16.mxu0 0
  %85 = vmatpush1.bf16.msra.mxu0 %v64
  %86 = vmatprep.subr.bf16.mxu0 0
  %87 = vmatpush1.bf16.msra.mxu0 %v76
  %88 = vmatprep.subr.bf16.mxu0 0
  %89 = vmatpush1.bf16.msra.mxu0 0
  %90 = vmatprep.subr.bf16.mxu0 0
  %91 = vmatpush1.bf16.msra.mxu0 0
  %92 = vmatprep.subr.bf16.mxu0 0
  %93 = vmatpush1.bf16.msra.mxu0 0
  %94 = vmatprep.subr.bf16.mxu0 0
  %95 = vmatpush1.bf16.msra.mxu0 0
  %96 = vmatprep.subr.bf16.mxu0 0
  %97 = vmatpush1.bf16.msra.mxu0 0
  %98 = vmatprep.subr.bf16.mxu0 0
  %99 = vmatpush1.bf16.msra.mxu0 0
  %100 = vmatprep.subr.bf16.mxu0 0
  %101 = vmatpush1.bf16.msra.mxu0 0
  %102 = vmatprep.subr.bf16.mxu0 0
  %103 = vmatpush1.bf16.msra.mxu0 0
  %104 = vmatprep.subr.bf16.mxu0 0
  %105 = vmatpush1.bf16.msra.mxu0 0
  %106 = vmatprep.subr.bf16.mxu0 0
  %107 = vmatpush1.bf16.msra.mxu0 0
  %108 = vmatprep.subr.bf16.mxu0 0
  %109 = vmatpush1.bf16.msra.mxu0 0
  %110 = vmatprep.mubr.bf16.mxu0 0
  %111 = vmatmul.mubr.bf16.gmra.mrb[0].mxu0 %v72
  %v112 = vpop.f32.mrb[0].mxu0
  %v113 = vadd.f32 %v31, %v112
  %v114 = vpop.f32.mrb[0].mxu0
  %v115 = vpop.f32.mrb[0].mxu0
  %v116 = vadd.f32 %v36, %v115
  %v117 = vpop.f32.mrb[0].mxu0
  %118 = vdwg.mxu0
  %v119 = vmax.f32 %v113, 0.0
  %v120 = vmax.f32 %v116, 0.0
  %vm121 = vcmask 261120
  %122 = vst.msk [vmem:[%s3] sm:$0xff] %vm121, %v119
  %123 = vst.msk [vmem:[%s3 + $0x8] sm:$0xff] %vm121, %v120
  // Predicated region
  $region14: #{forward.34} parent=0 // pred_check
    _
  $region15: #{forward.34} parent=0 // pred_check_branch
    %125 = sbr.rel (0) target = $region17
  $region16: #{forward.34} parent=0 // pred_region
    _
  $region17: #{forward.34} parent=0 // pred_fallthru
    _
  // Predicated region
  $region18: #{forward.34} parent=0 // pred_check
    _
  $region19: #{forward.34} parent=0 // pred_check_branch
    %127 = sbr.rel (0) target = $region21
  $region20: #{forward.34} parent=0 // pred_region
    _
  $region21: #{forward.34} parent=0 // pred_fallthru
    _

// kernel: forward.33
$region0: #{forward.33}
  #allocation0 [shape = 'u32[]', space=smem, size = 0x4, offset = 0x4, fixed_abs, tag = 'smem constant byte address 0x4 - core index']
  #allocation1 [shape = 'u32[144,128]{1,0:T(1,128)}', space=vmem, size = 0x12000, scoped, tag = 'internal scratch']
  %s0 = inlined_call_operand.vmem [shape: bf16[16,8], index: 0, kind: input, shape index: {}]
  %s1 = inlined_call_operand.vmem [shape: bf16[8,32], index: 1, kind: input, shape index: {}]
  %s2 = inlined_call_operand.vmem [shape: f32[16,1], index: 2, kind: input, shape index: {}]
  %s3 = inlined_call_operand.vmem [shape: f32[16,32], index: 3, kind: output, shape index: {}]
  %s4 = sld [smem:[#allocation0]]
  $region22: #{forward.33} parent=0
    _
  %s6 = ssub.s32 1, %s4
  %s7 = scalar_select 0, %s6, %s4
  // Predicated region
  $region2: #{forward.33} parent=0 // pred_check
    _
  $region3: #{forward.33} parent=0 // pred_check_branch
    %9 = sbr.rel (0) target = $region5
  $region4: #{forward.33} parent=0 // pred_region
    _
  $region5: #{forward.33} parent=0 // pred_fallthru
    _
  // Predicated region
  $region6: #{forward.33} parent=0 // pred_check
    _
  $region7: #{forward.33} parent=0 // pred_check_branch
    %11 = sbr.rel (0) target = $region9
  $region8: #{forward.33} parent=0 // pred_region
    _
  $region9: #{forward.33} parent=0 // pred_fallthru
    _
  // Predicated region
  $region10: #{forward.33} parent=0 // pred_check
    _
  $region11: #{forward.33} parent=0 // pred_check_branch
    %13 = sbr.rel (0) target = $region13
  $region12: #{forward.33} parent=0 // pred_region
    _
  $region13: #{forward.33} parent=0 // pred_fallthru
    _
  %v15 = vld [vmem:[%s0] sm:$0xf]
  %v16 = vld [vmem:[%s0 + $0x4] sm:$0xf]
  %v17 = vld [vmem:[%s1] sm:$0xf]
  %v18 = vld [vmem:[%s2] sm:$0xff]
  %v19 = vld [vmem:[%s2 + $0x8] sm:$0xff]
  %21 = vset.pattern.permute.xlu0 0
  %22 = vperm.xlu0 %21, %v18
  %v23 = vpop.permute.xlu0 %22
  %26 = vset.pattern.permute.xlu0 0
  %27 = vperm.xlu0 %26, %v19
  %v28 = vpop.permute.xlu0 %27
  %v32 = vunpack.c.l.b16 %v15
  %v33 = vunpack.c.l.b16 %v16
  %v34 = vpack.c.b16 %v33, %v32
  %vm35 = vcmask 64512
  %v37 = vsel %vm35, %v34, 0
  %vm39 = vcmask 1043456
  %v41 = vsel %vm39, %v17, 0
  %43 = vmatprep.subr.bf16.mxu0 0
  %44 = vmatpush1.bf16.msra.mxu0 %v41
  %45 = vmatprep.subr.bf16.mxu0 0
  %46 = vmatpush1.bf16.msra.mxu0 0
  %47 = vmatprep.subr.bf16.mxu0 0
  %48 = vmatpush1.bf16.msra.mxu0 0
  %49 = vmatprep.subr.bf16.mxu0 0
  %50 = vmatpush1.bf16.msra.mxu0 0
  %51 = vmatprep.subr.bf16.mxu0 0
  %52 = vmatpush1.bf16.msra.mxu0 0
  %53 = vmatprep.subr.bf16.mxu0 0
  %54 = vmatpush1.bf16.msra.mxu0 0
  %55 = vmatprep.subr.bf16.mxu0 0
  %56 = vmatpush1.bf16.msra.mxu0 0
  %57 = vmatprep.subr.bf16.mxu0 0
  %58 = vmatpush1.bf16.msra.mxu0 0
  %59 = vmatprep.subr.bf16.mxu0 0
  %60 = vmatpush1.bf16.msra.mxu0 0
  %61 = vmatprep.subr.bf16.mxu0 0
  %62 = vmatpush1.bf16.msra.mxu0 0
  %63 = vmatprep.subr.bf16.mxu0 0
  %64 = vmatpush1.bf16.msra.mxu0 0
  %65 = vmatprep.subr.bf16.mxu0 0
  %66 = vmatpush1.bf16.msra.mxu0 0
  %67 = vmatprep.subr.bf16.mxu0 0
  %68 = vmatpush1.bf16.msra.mxu0 0
  %69 = vmatprep.subr.bf16.mxu0 0
  %70 = vmatpush1.bf16.msra.mxu0 0
  %71 = vmatprep.subr.bf16.mxu0 0
  %72 = vmatpush1.bf16.msra.mxu0 0
  %73 = vmatprep.subr.bf16.mxu0 0
  %74 = vmatpush1.bf16.msra.mxu0 0
  %75 = vmatprep.mubr.bf16.mxu0 0
  %76 = vmatmul.mubr.bf16.gmra.mrb[0].mxu0 %v37
  %v77 = vpop.f32.mrb[0].mxu0
  %v78 = vadd.f32 %v23, %v77
  %v79 = vpop.f32.mrb[0].mxu0
  %v80 = vpop.f32.mrb[0].mxu0
  %v81 = vadd.f32 %v28, %v80
  %v82 = vpop.f32.mrb[0].mxu0
  %83 = vdwg.mxu0
  %vm84 = vcmask 261120
  %85 = vst.msk [vmem:[%s3] sm:$0xff] %vm84, %v78
  %86 = vst.msk [vmem:[%s3 + $0x8] sm:$0xff] %vm84, %v81
  // Predicated region
  $region14: #{forward.33} parent=0 // pred_check
    _
  $region15: #{forward.33} parent=0 // pred_check_branch
    %88 = sbr.rel (0) target = $region17
  $region16: #{forward.33} parent=0 // pred_region
    _
  $region17: #{forward.33} parent=0 // pred_fallthru
    _
  // Predicated region
  $region18: #{forward.33} parent=0 // pred_check
    _
  $region19: #{forward.33} parent=0 // pred_check_branch
    %90 = sbr.rel (0) target = $region21
  $region20: #{forward.33} parent=0 // pred_region
    _
  $region21: #{forward.33} parent=0 // pred_fallthru
    _

// kernel: forward.35
$region0: #{forward.35}
  #allocation0 [shape = 'u32[]', space=smem, size = 0x4, offset = 0x4, fixed_abs, tag = 'smem constant byte address 0x4 - core index']
  #allocation1 [shape = 'u32[144,128]{1,0:T(1,128)}', space=vmem, size = 0x12000, scoped, tag = 'internal scratch']
  %s0 = inlined_call_operand.vmem [shape: bf16[16,144], index: 0, kind: input, shape index: {}]
  %s1 = inlined_call_operand.vmem [shape: bf16[144,32], index: 1, kind: input, shape index: {}]
  %s2 = inlined_call_operand.vmem [shape: f32[16,1], index: 2, kind: input, shape index: {}]
  %s3 = inlined_call_operand.vmem [shape: f32[16,32], index: 3, kind: input, shape index: {}]
  %s4 = inlined_call_operand.vmem [shape: f32[16,32], index: 4, kind: output, shape index: {}]
  %s5 = sld [smem:[#allocation0]]
  $region26: #{forward.35} parent=0
    _
  %s7 = ssub.s32 1, %s5
  %s8 = scalar_select 0, %s7, %s5
  // Predicated region
  $region2: #{forward.35} parent=0 // pred_check
    _
  $region3: #{forward.35} parent=0 // pred_check_branch
    %10 = sbr.rel (0) target = $region5
  $region4: #{forward.35} parent=0 // pred_region
    _
  $region5: #{forward.35} parent=0 // pred_fallthru
    _
  // Predicated region
  $region6: #{forward.35} parent=0 // pred_check
    _
  $region7: #{forward.35} parent=0 // pred_check_branch
    %12 = sbr.rel (0) target = $region9
  $region8: #{forward.35} parent=0 // pred_region
    _
  $region9: #{forward.35} parent=0 // pred_fallthru
    _
  // Predicated region
  $region10: #{forward.35} parent=0 // pred_check
    _
  $region11: #{forward.35} parent=0 // pred_check_branch
    %14 = sbr.rel (0) target = $region13
  $region12: #{forward.35} parent=0 // pred_region
    _
  $region13: #{forward.35} parent=0 // pred_fallthru
    _
  // Predicated region
  $region14: #{forward.35} parent=0 // pred_check
    _
  $region15: #{forward.35} parent=0 // pred_check_branch
    %16 = sbr.rel (0) target = $region17
  $region16: #{forward.35} parent=0 // pred_region
    _
  $region17: #{forward.35} parent=0 // pred_fallthru
    _
  %v18 = vld [vmem:[%s0] sm:$0xff]
  %v19 = vld [vmem:[%s0 + $0x8] sm:$0xff]
  %v20 = vld [vmem:[%s1] sm:$0xf]
  %v21 = vld [vmem:[%s1 + $0x4] sm:$0xf]
  %v22 = vld [vmem:[%s1 + $0x8] sm:$0xf]
  %v23 = vld [vmem:[%s1 + $0xc] sm:$0xf]
  %v24 = vld [vmem:[%s1 + $0x10] sm:$0xf]
  %v25 = vld [vmem:[%s1 + $0x14] sm:$0xf]
  %v26 = vld [vmem:[%s1 + $0x18] sm:$0xf]
  %v27 = vld [vmem:[%s1 + $0x1c] sm:$0xf]
  %v28 = vld [vmem:[%s1 + $0x20] sm:$0xf]
  %v29 = vld [vmem:[%s1 + $0x24] sm:$0xf]
  %v30 = vld [vmem:[%s1 + $0x28] sm:$0xf]
  %v31 = vld [vmem:[%s1 + $0x2c] sm:$0xf]
  %v32 = vld [vmem:[%s1 + $0x30] sm:$0xf]
  %v33 = vld [vmem:[%s1 + $0x34] sm:$0xf]
  %v34 = vld [vmem:[%s1 + $0x38] sm:$0xf]
  %v35 = vld [vmem:[%s1 + $0x3c] sm:$0xf]
  %v36 = vld [vmem:[%s1 + $0x40] sm:$0xf]
  %v37 = vld [vmem:[%s1 + $0x44] sm:$0xf]
  %v38 = vld [vmem:[%s2] sm:$0xff]
  %v39 = vld [vmem:[%s2 + $0x8] sm:$0xff]
  %41 = vset.pattern.permute.xlu0 0
  %42 = vperm.xlu0 %41, %v38
  %v43 = vpop.permute.xlu0 %42
  %46 = vset.pattern.permute.xlu0 0
  %47 = vperm.xlu0 %46, %v39
  %v48 = vpop.permute.xlu0 %47
  %v52 = vunpack.c.l.b16 %v18
  %v53 = vunpack.c.h.b16 %v18
  %v54 = vunpack.c.l.b16 %v19
  %v55 = vunpack.c.h.b16 %v19
  %v56 = vpack.c.b16 %v54, %v52
  %v57 = vpack.c.b16 %v55, %v53
  %v77 = vunpack.c.l.b16 %v20
  %v78 = vunpack.c.l.b16 %v21
  %v79 = vunpack.c.l.b16 %v22
  %v80 = vunpack.c.l.b16 %v23
  %v81 = vunpack.c.l.b16 %v24
  %v82 = vunpack.c.l.b16 %v25
  %v83 = vunpack.c.l.b16 %v26
  %v84 = vunpack.c.l.b16 %v27
  %v85 = vunpack.c.l.b16 %v28
  %v86 = vunpack.c.l.b16 %v29
  %v87 = vunpack.c.l.b16 %v30
  %v88 = vunpack.c.l.b16 %v31
  %v89 = vunpack.c.l.b16 %v32
  %v90 = vunpack.c.l.b16 %v33
  %v91 = vunpack.c.l.b16 %v34
  %v92 = vunpack.c.l.b16 %v35
  %v93 = vunpack.c.l.b16 %v36
  %v94 = vunpack.c.l.b16 %v37
  %v95 = vpack.c.b16 %v78, %v77
  %v96 = vpack.c.b16 %v80, %v79
  %v97 = vpack.c.b16 %v82, %v81
  %v98 = vpack.c.b16 %v84, %v83
  %v99 = vpack.c.b16 %v86, %v85
  %v100 = vpack.c.b16 %v88, %v87
  %v101 = vpack.c.b16 %v90, %v89
  %v102 = vpack.c.b16 %v92, %v91
  %v103 = vpack.c.b16 %v94, %v93
  %vm113 = vcmask 130048
  %v115 = vsel %vm113, %v57, 0
  %117 = vmatprep.subr.bf16.mxu0 0
  %118 = vmatpush1.bf16.msra.mxu0 %v95
  %119 = vmatprep.subr.bf16.mxu0 0
  %120 = vmatpush1.bf16.msra.mxu0 %v96
  %121 = vmatprep.subr.bf16.mxu0 0
  %122 = vmatpush1.bf16.msra.mxu0 %v97
  %123 = vmatprep.subr.bf16.mxu0 0
  %124 = vmatpush1.bf16.msra.mxu0 %v98
  %125 = vmatprep.subr.bf16.mxu0 0
  %126 = vmatpush1.bf16.msra.mxu0 %v99
  %127 = vmatprep.subr.bf16.mxu0 0
  %128 = vmatpush1.bf16.msra.mxu0 %v100
  %129 = vmatprep.subr.bf16.mxu0 0
  %130 = vmatpush1.bf16.msra.mxu0 %v101
  %131 = vmatprep.subr.bf16.mxu0 0
  %132 = vmatpush1.bf16.msra.mxu0 %v102
  %133 = vmatprep.subr.bf16.mxu0 0
  %134 = vmatpush1.bf16.msra.mxu0 %v103
  %135 = vmatprep.subr.bf16.mxu0 0
  %136 = vmatpush1.bf16.msra.mxu0 0
  %137 = vmatprep.subr.bf16.mxu0 0
  %138 = vmatpush1.bf16.msra.mxu0 0
  %139 = vmatprep.subr.bf16.mxu0 0
  %140 = vmatpush1.bf16.msra.mxu0 0
  %141 = vmatprep.subr.bf16.mxu0 0
  %142 = vmatpush1.bf16.msra.mxu0 0
  %143 = vmatprep.subr.bf16.mxu0 0
  %144 = vmatpush1.bf16.msra.mxu0 0
  %145 = vmatprep.subr.bf16.mxu0 0
  %146 = vmatpush1.bf16.msra.mxu0 0
  %147 = vmatprep.subr.bf16.mxu0 0
  %148 = vmatpush1.bf16.msra.mxu0 0
  %149 = vmatprep.mubr.bf16.mxu0 %v115
  %150 = vmatmul.mubr.bf16.gmra.mrb[0].mxu0 %v56
  %v151 = vpop.f32.mrb[0].mxu0
  %v152 = vadd.f32 %v43, %v151
  %v153 = vpop.f32.mrb[0].mxu0
  %v154 = vpop.f32.mrb[0].mxu0
  %v155 = vadd.f32 %v48, %v154
  %v156 = vpop.f32.mrb[0].mxu0
  %157 = vdwg.mxu0
  %v158 = vld [vmem:[%s3] sm:$0xff]
  %v159 = vld [vmem:[%s3 + $0x8] sm:$0xff]
  %v160 = vadd.f32 %v152, %v158
  %v161 = vadd.f32 %v155, %v159
  %v162 = vmax.f32 %v160, 0.0
  %v163 = vmax.f32 %v161, 0.0
  %vm164 = vcmask 261120
  %165 = vst.msk [vmem:[%s4] sm:$0xff] %vm164, %v162
  %166 = vst.msk [vmem:[%s4 + $0x8] sm:$0xff] %vm164, %v163
  // Predicated region
  $region18: #{forward.35} parent=0 // pred_check
    _
  $region19: #{forward.35} parent=0 // pred_check_branch
    %168 = sbr.rel (0) target = $region21
  $region20: #{forward.35} parent=0 // pred_region
    _
  $region21: #{forward.35} parent=0 // pred_fallthru
    _
  // Predicated region
  $region22: #{forward.35} parent=0 // pred_check
    _
  $region23: #{forward.35} parent=0 // pred_check_branch
    %170 = sbr.rel (0) target = $region25
  $region24: #{forward.35} parent=0 // pred_region
    _
  $region25: #{forward.35} parent=0 // pred_fallthru
    _

// kernel: forward.36
$region0: #{forward.36}
  #allocation0 [shape = 'u32[]', space=smem, size = 0x4, offset = 0x4, fixed_abs, tag = 'smem constant byte address 0x4 - core index']
  #allocation1 [shape = 'u32[144,128]{1,0:T(1,128)}', space=vmem, size = 0x12000, scoped, tag = 'internal scratch']
  %s0 = inlined_call_operand.vmem [shape: bf16[16,144], index: 0, kind: input, shape index: {}]
  %s1 = inlined_call_operand.vmem [shape: bf16[144,32], index: 1, kind: input, shape index: {}]
  %s2 = inlined_call_operand.vmem [shape: f32[16,1], index: 2, kind: input, shape index: {}]
  %s3 = inlined_call_operand.vmem [shape: f32[16,32], index: 3, kind: output, shape index: {}]
  %s4 = sld [smem:[#allocation0]]
  $region22: #{forward.36} parent=0
    _
  %s6 = ssub.s32 1, %s4
  %s7 = scalar_select 0, %s6, %s4
  // Predicated region
  $region2: #{forward.36} parent=0 // pred_check
    _
  $region3: #{forward.36} parent=0 // pred_check_branch
    %9 = sbr.rel (0) target = $region5
  $region4: #{forward.36} parent=0 // pred_region
    _
  $region5: #{forward.36} parent=0 // pred_fallthru
    _
  // Predicated region
  $region6: #{forward.36} parent=0 // pred_check
    _
  $region7: #{forward.36} parent=0 // pred_check_branch
    %11 = sbr.rel (0) target = $region9
  $region8: #{forward.36} parent=0 // pred_region
    _
  $region9: #{forward.36} parent=0 // pred_fallthru
    _
  // Predicated region
  $region10: #{forward.36} parent=0 // pred_check
    _
  $region11: #{forward.36} parent=0 // pred_check_branch
    %13 = sbr.rel (0) target = $region13
  $region12: #{forward.36} parent=0 // pred_region
    _
  $region13: #{forward.36} parent=0 // pred_fallthru
    _
  %v15 = vld [vmem:[%s0] sm:$0xff]
  %v16 = vld [vmem:[%s0 + $0x8] sm:$0xff]
  %v17 = vld [vmem:[%s1] sm:$0xf]
  %v18 = vld [vmem:[%s1 + $0x4] sm:$0xf]
  %v19 = vld [vmem:[%s1 + $0x8] sm:$0xf]
  %v20 = vld [vmem:[%s1 + $0xc] sm:$0xf]
  %v21 = vld [vmem:[%s1 + $0x10] sm:$0xf]
  %v22 = vld [vmem:[%s1 + $0x14] sm:$0xf]
  %v23 = vld [vmem:[%s1 + $0x18] sm:$0xf]
  %v24 = vld [vmem:[%s1 + $0x1c] sm:$0xf]
  %v25 = vld [vmem:[%s1 + $0x20] sm:$0xf]
  %v26 = vld [vmem:[%s1 + $0x24] sm:$0xf]
  %v27 = vld [vmem:[%s1 + $0x28] sm:$0xf]
  %v28 = vld [vmem:[%s1 + $0x2c] sm:$0xf]
  %v29 = vld [vmem:[%s1 + $0x30] sm:$0xf]
  %v30 = vld [vmem:[%s1 + $0x34] sm:$0xf]
  %v31 = vld [vmem:[%s1 + $0x38] sm:$0xf]
  %v32 = vld [vmem:[%s1 + $0x3c] sm:$0xf]
  %v33 = vld [vmem:[%s1 + $0x40] sm:$0xf]
  %v34 = vld [vmem:[%s1 + $0x44] sm:$0xf]
  %v35 = vld [vmem:[%s2] sm:$0xff]
  %v36 = vld [vmem:[%s2 + $0x8] sm:$0xff]
  %38 = vset.pattern.permute.xlu0 0
  %39 = vperm.xlu0 %38, %v35
  %v40 = vpop.permute.xlu0 %39
  %43 = vset.pattern.permute.xlu0 0
  %44 = vperm.xlu0 %43, %v36
  %v45 = vpop.permute.xlu0 %44
  %v49 = vunpack.c.l.b16 %v15
  %v50 = vunpack.c.h.b16 %v15
  %v51 = vunpack.c.l.b16 %v16
  %v52 = vunpack.c.h.b16 %v16
  %v53 = vpack.c.b16 %v51, %v49
  %v54 = vpack.c.b16 %v52, %v50
  %v74 = vunpack.c.l.b16 %v17
  %v75 = vunpack.c.l.b16 %v18
  %v76 = vunpack.c.l.b16 %v19
  %v77 = vunpack.c.l.b16 %v20
  %v78 = vunpack.c.l.b16 %v21
  %v79 = vunpack.c.l.b16 %v22
  %v80 = vunpack.c.l.b16 %v23
  %v81 = vunpack.c.l.b16 %v24
  %v82 = vunpack.c.l.b16 %v25
  %v83 = vunpack.c.l.b16 %v26
  %v84 = vunpack.c.l.b16 %v27
  %v85 = vunpack.c.l.b16 %v28
  %v86 = vunpack.c.l.b16 %v29
  %v87 = vunpack.c.l.b16 %v30
  %v88 = vunpack.c.l.b16 %v31
  %v89 = vunpack.c.l.b16 %v32
  %v90 = vunpack.c.l.b16 %v33
  %v91 = vunpack.c.l.b16 %v34
  %v92 = vpack.c.b16 %v75, %v74
  %v93 = vpack.c.b16 %v77, %v76
  %v94 = vpack.c.b16 %v79, %v78
  %v95 = vpack.c.b16 %v81, %v80
  %v96 = vpack.c.b16 %v83, %v82
  %v97 = vpack.c.b16 %v85, %v84
  %v98 = vpack.c.b16 %v87, %v86
  %v99 = vpack.c.b16 %v89, %v88
  %v100 = vpack.c.b16 %v91, %v90
  %vm110 = vcmask 130048
  %v112 = vsel %vm110, %v54, 0
  %114 = vmatprep.subr.bf16.mxu0 0
  %115 = vmatpush1.bf16.msra.mxu0 %v92
  %116 = vmatprep.subr.bf16.mxu0 0
  %117 = vmatpush1.bf16.msra.mxu0 %v93
  %118 = vmatprep.subr.bf16.mxu0 0
  %119 = vmatpush1.bf16.msra.mxu0 %v94
  %120 = vmatprep.subr.bf16.mxu0 0
  %121 = vmatpush1.bf16.msra.mxu0 %v95
  %122 = vmatprep.subr.bf16.mxu0 0
  %123 = vmatpush1.bf16.msra.mxu0 %v96
  %124 = vmatprep.subr.bf16.mxu0 0
  %125 = vmatpush1.bf16.msra.mxu0 %v97
  %126 = vmatprep.subr.bf16.mxu0 0
  %127 = vmatpush1.bf16.msra.mxu0 %v98
  %128 = vmatprep.subr.bf16.mxu0 0
  %129 = vmatpush1.bf16.msra.mxu0 %v99
  %130 = vmatprep.subr.bf16.mxu0 0
  %131 = vmatpush1.bf16.msra.mxu0 %v100
  %132 = vmatprep.subr.bf16.mxu0 0
  %133 = vmatpush1.bf16.msra.mxu0 0
  %134 = vmatprep.subr.bf16.mxu0 0
  %135 = vmatpush1.bf16.msra.mxu0 0
  %136 = vmatprep.subr.bf16.mxu0 0
  %137 = vmatpush1.bf16.msra.mxu0 0
  %138 = vmatprep.subr.bf16.mxu0 0
  %139 = vmatpush1.bf16.msra.mxu0 0
  %140 = vmatprep.subr.bf16.mxu0 0
  %141 = vmatpush1.bf16.msra.mxu0 0
  %142 = vmatprep.subr.bf16.mxu0 0
  %143 = vmatpush1.bf16.msra.mxu0 0
  %144 = vmatprep.subr.bf16.mxu0 0
  %145 = vmatpush1.bf16.msra.mxu0 0
  %146 = vmatprep.mubr.bf16.mxu0 %v112
  %147 = vmatmul.mubr.bf16.gmra.mrb[0].mxu0 %v53
  %v148 = vpop.f32.mrb[0].mxu0
  %v149 = vadd.f32 %v40, %v148
  %v150 = vpop.f32.mrb[0].mxu0
  %v151 = vpop.f32.mrb[0].mxu0
  %v152 = vadd.f32 %v45, %v151
  %v153 = vpop.f32.mrb[0].mxu0
  %154 = vdwg.mxu0
  %v155 = vmax.f32 %v149, 0.0
  %v156 = vmax.f32 %v152, 0.0
  %vm157 = vcmask 261120
  %158 = vst.msk [vmem:[%s3] sm:$0xff] %vm157, %v155
  %159 = vst.msk [vmem:[%s3 + $0x8] sm:$0xff] %vm157, %v156
  // Predicated region
  $region14: #{forward.36} parent=0 // pred_check
    _
  $region15: #{forward.36} parent=0 // pred_check_branch
    %161 = sbr.rel (0) target = $region17
  $region16: #{forward.36} parent=0 // pred_region
    _
  $region17: #{forward.36} parent=0 // pred_fallthru
    _
  // Predicated region
  $region18: #{forward.36} parent=0 // pred_check
    _
  $region19: #{forward.36} parent=0 // pred_check_branch
    %163 = sbr.rel (0) target = $region21
  $region20: #{forward.36} parent=0 // pred_region
    _
  $region21: #{forward.36} parent=0 // pred_fallthru
    _

// kernel: forward.39
$region0: #{forward.39}
  #allocation0 [shape = 'u32[]', space=smem, size = 0x4, offset = 0x4, fixed_abs, tag = 'smem constant byte address 0x4 - core index']
  #allocation1 [shape = 'u32[144,128]{1,0:T(1,128)}', space=vmem, size = 0x12000, scoped, tag = 'internal scratch']
  %s0 = inlined_call_operand.vmem [shape: bf16[24,144], index: 0, kind: input, shape index: {}]
  %s1 = inlined_call_operand.vmem [shape: bf16[144,32], index: 1, kind: input, shape index: {}]
  %s2 = inlined_call_operand.vmem [shape: f32[24,1], index: 2, kind: input, shape index: {}]
  %s3 = inlined_call_operand.vmem [shape: f32[24,32], index: 3, kind: output, shape index: {}]
  %s4 = sld [smem:[#allocation0]]
  $region22: #{forward.39} parent=0
    _
  %s6 = ssub.s32 1, %s4
  %s7 = scalar_select 0, %s6, %s4
  // Predicated region
  $region2: #{forward.39} parent=0 // pred_check
    _
  $region3: #{forward.39} parent=0 // pred_check_branch
    %9 = sbr.rel (0) target = $region5
  $region4: #{forward.39} parent=0 // pred_region
    _
  $region5: #{forward.39} parent=0 // pred_fallthru
    _
  // Predicated region
  $region6: #{forward.39} parent=0 // pred_check
    _
  $region7: #{forward.39} parent=0 // pred_check_branch
    %11 = sbr.rel (0) target = $region9
  $region8: #{forward.39} parent=0 // pred_region
    _
  $region9: #{forward.39} parent=0 // pred_fallthru
    _
  // Predicated region
  $region10: #{forward.39} parent=0 // pred_check
    _
  $region11: #{forward.39} parent=0 // pred_check_branch
    %13 = sbr.rel (0) target = $region13
  $region12: #{forward.39} parent=0 // pred_region
    _
  $region13: #{forward.39} parent=0 // pred_fallthru
    _
  %v15 = vld [vmem:[%s0] sm:$0xff]
  %v16 = vld [vmem:[%s0 + $0x8] sm:$0xff]
  %v17 = vld [vmem:[%s0 + $0x10] sm:$0xff]
  %v18 = vld [vmem:[%s1] sm:$0xf]
  %v19 = vld [vmem:[%s1 + $0x4] sm:$0xf]
  %v20 = vld [vmem:[%s1 + $0x8] sm:$0xf]
  %v21 = vld [vmem:[%s1 + $0xc] sm:$0xf]
  %v22 = vld [vmem:[%s1 + $0x10] sm:$0xf]
  %v23 = vld [vmem:[%s1 + $0x14] sm:$0xf]
  %v24 = vld [vmem:[%s1 + $0x18] sm:$0xf]
  %v25 = vld [vmem:[%s1 + $0x1c] sm:$0xf]
  %v26 = vld [vmem:[%s1 + $0x20] sm:$0xf]
  %v27 = vld [vmem:[%s1 + $0x24] sm:$0xf]
  %v28 = vld [vmem:[%s1 + $0x28] sm:$0xf]
  %v29 = vld [vmem:[%s1 + $0x2c] sm:$0xf]
  %v30 = vld [vmem:[%s1 + $0x30] sm:$0xf]
  %v31 = vld [vmem:[%s1 + $0x34] sm:$0xf]
  %v32 = vld [vmem:[%s1 + $0x38] sm:$0xf]
  %v33 = vld [vmem:[%s1 + $0x3c] sm:$0xf]
  %v34 = vld [vmem:[%s1 + $0x40] sm:$0xf]
  %v35 = vld [vmem:[%s1 + $0x44] sm:$0xf]
  %v36 = vld [vmem:[%s2] sm:$0xff]
  %v37 = vld [vmem:[%s2 + $0x8] sm:$0xff]
  %v38 = vld [vmem:[%s2 + $0x10] sm:$0xff]
  %40 = vset.pattern.permute.xlu0 0
  %41 = vperm.xlu0 %40, %v36
  %v42 = vpop.permute.xlu0 %41
  %45 = vset.pattern.permute.xlu0 0
  %46 = vperm.xlu0 %45, %v37
  %v47 = vpop.permute.xlu0 %46
  %50 = vset.pattern.permute.xlu0 0
  %51 = vperm.xlu0 %50, %v38
  %v52 = vpop.permute.xlu0 %51
  %v57 = vunpack.c.l.b16 %v15
  %v58 = vunpack.c.h.b16 %v15
  %v59 = vunpack.c.l.b16 %v16
  %v60 = vunpack.c.h.b16 %v16
  %v61 = vunpack.c.l.b16 %v17
  %v62 = vunpack.c.h.b16 %v17
  %v63 = vpack.c.b16 %v59, %v57
  %v64 = vpack.c.b16 %v60, %v58
  %v65 = vpack.c.b16 %v61, %v61
  %v66 = vpack.c.b16 %v62, %v62
  %v87 = vunpack.c.l.b16 %v18
  %v88 = vunpack.c.l.b16 %v19
  %v89 = vunpack.c.l.b16 %v20
  %v90 = vunpack.c.l.b16 %v21
  %v91 = vunpack.c.l.b16 %v22
  %v92 = vunpack.c.l.b16 %v23
  %v93 = vunpack.c.l.b16 %v24
  %v94 = vunpack.c.l.b16 %v25
  %v95 = vunpack.c.l.b16 %v26
  %v96 = vunpack.c.l.b16 %v27
  %v97 = vunpack.c.l.b16 %v28
  %v98 = vunpack.c.l.b16 %v29
  %v99 = vunpack.c.l.b16 %v30
  %v100 = vunpack.c.l.b16 %v31
  %v101 = vunpack.c.l.b16 %v32
  %v102 = vunpack.c.l.b16 %v33
  %v103 = vunpack.c.l.b16 %v34
  %v104 = vunpack.c.l.b16 %v35
  %v105 = vpack.c.b16 %v88, %v87
  %v106 = vpack.c.b16 %v90, %v89
  %v107 = vpack.c.b16 %v92, %v91
  %v108 = vpack.c.b16 %v94, %v93
  %v109 = vpack.c.b16 %v96, %v95
  %v110 = vpack.c.b16 %v98, %v97
  %v111 = vpack.c.b16 %v100, %v99
  %v112 = vpack.c.b16 %v102, %v101
  %v113 = vpack.c.b16 %v104, %v103
  %vm123 = vcmask 130048
  %v125 = vsel %vm123, %v64, 0
  %v128 = vsel %vm123, %v66, 0
  %130 = vmatprep.subr.bf16.mxu0 0
  %131 = vmatpush1.bf16.msra.mxu0 %v105
  %132 = vmatprep.subr.bf16.mxu0 0
  %133 = vmatpush1.bf16.msra.mxu0 %v106
  %134 = vmatprep.subr.bf16.mxu0 0
  %135 = vmatpush1.bf16.msra.mxu0 %v107
  %136 = vmatprep.subr.bf16.mxu0 0
  %137 = vmatpush1.bf16.msra.mxu0 %v108
  %138 = vmatprep.subr.bf16.mxu0 0
  %139 = vmatpush1.bf16.msra.mxu0 %v109
  %140 = vmatprep.subr.bf16.mxu0 0
  %141 = vmatpush1.bf16.msra.mxu0 %v110
  %142 = vmatprep.subr.bf16.mxu0 0
  %143 = vmatpush1.bf16.msra.mxu0 %v111
  %144 = vmatprep.subr.bf16.mxu0 0
  %145 = vmatpush1.bf16.msra.mxu0 %v112
  %146 = vmatprep.subr.bf16.mxu0 0
  %147 = vmatpush1.bf16.msra.mxu0 %v113
  %148 = vmatprep.subr.bf16.mxu0 0
  %149 = vmatpush1.bf16.msra.mxu0 0
  %150 = vmatprep.subr.bf16.mxu0 0
  %151 = vmatpush1.bf16.msra.mxu0 0
  %152 = vmatprep.subr.bf16.mxu0 0
  %153 = vmatpush1.bf16.msra.mxu0 0
  %154 = vmatprep.subr.bf16.mxu0 0
  %155 = vmatpush1.bf16.msra.mxu0 0
  %156 = vmatprep.subr.bf16.mxu0 0
  %157 = vmatpush1.bf16.msra.mxu0 0
  %158 = vmatprep.subr.bf16.mxu0 0
  %159 = vmatpush1.bf16.msra.mxu0 0
  %160 = vmatprep.subr.bf16.mxu0 0
  %161 = vmatpush1.bf16.msra.mxu0 0
  %162 = vmatprep.mubr.bf16.mxu0 %v125
  %163 = vmatmul.mubr.bf16.gmra.mrb[0].mxu0 %v63
  %v164 = vpop.f32.mrb[0].mxu0
  %v165 = vadd.f32 %v42, %v164
  %v166 = vpop.f32.mrb[0].mxu0
  %v167 = vpop.f32.mrb[0].mxu0
  %v168 = vadd.f32 %v47, %v167
  %v169 = vpop.f32.mrb[0].mxu0
  %170 = vmatprep.mubr.bf16.mxu0 %v128
  %171 = vmatmul.mubr.bf16.gmra.mrb[0].mxu0 %v65
  %v172 = vpop.f32.mrb[0].mxu0
  %v173 = vadd.f32 %v52, %v172
  %v174 = vpop.f32.mrb[0].mxu0
  %v175 = vpop.f32.mrb[0].mxu0
  %v176 = vpop.f32.mrb[0].mxu0
  %177 = vdwg.mxu0
  %v178 = vmax.f32 %v165, 0.0
  %v179 = vmax.f32 %v168, 0.0
  %v180 = vmax.f32 %v173, 0.0
  %vm181 = vcmask 261120
  %182 = vst.msk [vmem:[%s3] sm:$0xff] %vm181, %v178
  %183 = vst.msk [vmem:[%s3 + $0x8] sm:$0xff] %vm181, %v179
  %184 = vst.msk [vmem:[%s3 + $0x10] sm:$0xff] %vm181, %v180
  // Predicated region
  $region14: #{forward.39} parent=0 // pred_check
    _
  $region15: #{forward.39} parent=0 // pred_check_branch
    %186 = sbr.rel (0) target = $region17
  $region16: #{forward.39} parent=0 // pred_region
    _
  $region17: #{forward.39} parent=0 // pred_fallthru
    _
  // Predicated region
  $region18: #{forward.39} parent=0 // pred_check
    _
  $region19: #{forward.39} parent=0 // pred_check_branch
    %188 = sbr.rel (0) target = $region21
  $region20: #{forward.39} parent=0 // pred_region
    _
  $region21: #{forward.39} parent=0 // pred_fallthru
    _

// kernel: forward.38
$region0: #{forward.38}
  #allocation0 [shape = 'u32[]', space=smem, size = 0x4, offset = 0x4, fixed_abs, tag = 'smem constant byte address 0x4 - core index']
  #allocation1 [shape = 'u32[144,128]{1,0:T(1,128)}', space=vmem, size = 0x12000, scoped, tag = 'internal scratch']
  %s0 = inlined_call_operand.vmem [shape: bf16[24,16], index: 0, kind: input, shape index: {}]
  %s1 = inlined_call_operand.vmem [shape: bf16[16,32], index: 1, kind: input, shape index: {}]
  %s2 = inlined_call_operand.vmem [shape: f32[24,1], index: 2, kind: input, shape index: {}]
  %s3 = inlined_call_operand.vmem [shape: f32[24,32], index: 3, kind: output, shape index: {}]
  %s4 = sld [smem:[#allocation0]]
  $region22: #{forward.38} parent=0
    _
  %s6 = ssub.s32 1, %s4
  %s7 = scalar_select 0, %s6, %s4
  // Predicated region
  $region2: #{forward.38} parent=0 // pred_check
    _
  $region3: #{forward.38} parent=0 // pred_check_branch
    %9 = sbr.rel (0) target = $region5
  $region4: #{forward.38} parent=0 // pred_region
    _
  $region5: #{forward.38} parent=0 // pred_fallthru
    _
  // Predicated region
  $region6: #{forward.38} parent=0 // pred_check
    _
  $region7: #{forward.38} parent=0 // pred_check_branch
    %11 = sbr.rel (0) target = $region9
  $region8: #{forward.38} parent=0 // pred_region
    _
  $region9: #{forward.38} parent=0 // pred_fallthru
    _
  // Predicated region
  $region10: #{forward.38} parent=0 // pred_check
    _
  $region11: #{forward.38} parent=0 // pred_check_branch
    %13 = sbr.rel (0) target = $region13
  $region12: #{forward.38} parent=0 // pred_region
    _
  $region13: #{forward.38} parent=0 // pred_fallthru
    _
  %v15 = vld [vmem:[%s0] sm:$0xf]
  %v16 = vld [vmem:[%s0 + $0x4] sm:$0xf]
  %v17 = vld [vmem:[%s0 + $0x8] sm:$0xf]
  %v18 = vld [vmem:[%s1] sm:$0xf]
  %v19 = vld [vmem:[%s1 + $0x4] sm:$0xf]
  %v20 = vld [vmem:[%s2] sm:$0xff]
  %v21 = vld [vmem:[%s2 + $0x8] sm:$0xff]
  %v22 = vld [vmem:[%s2 + $0x10] sm:$0xff]
  %24 = vset.pattern.permute.xlu0 0
  %25 = vperm.xlu0 %24, %v20
  %v26 = vpop.permute.xlu0 %25
  %29 = vset.pattern.permute.xlu0 0
  %30 = vperm.xlu0 %29, %v21
  %v31 = vpop.permute.xlu0 %30
  %34 = vset.pattern.permute.xlu0 0
  %35 = vperm.xlu0 %34, %v22
  %v36 = vpop.permute.xlu0 %35
  %v41 = vunpack.c.l.b16 %v15
  %v42 = vunpack.c.l.b16 %v16
  %v43 = vunpack.c.l.b16 %v17
  %v44 = vpack.c.b16 %v42, %v41
  %v45 = vpack.c.b16 %v43, %v43
  %v48 = vunpack.c.l.b16 %v18
  %v49 = vunpack.c.l.b16 %v19
  %v50 = vpack.c.b16 %v49, %v48
  %vm52 = vcmask 130048
  %v54 = vsel %vm52, %v44, 0
  %v57 = vsel %vm52, %v45, 0
  %59 = vmatprep.subr.bf16.mxu0 0
  %60 = vmatpush1.bf16.msra.mxu0 %v50
  %61 = vmatprep.subr.bf16.mxu0 0
  %62 = vmatpush1.bf16.msra.mxu0 0
  %63 = vmatprep.subr.bf16.mxu0 0
  %64 = vmatpush1.bf16.msra.mxu0 0
  %65 = vmatprep.subr.bf16.mxu0 0
  %66 = vmatpush1.bf16.msra.mxu0 0
  %67 = vmatprep.subr.bf16.mxu0 0
  %68 = vmatpush1.bf16.msra.mxu0 0
  %69 = vmatprep.subr.bf16.mxu0 0
  %70 = vmatpush1.bf16.msra.mxu0 0
  %71 = vmatprep.subr.bf16.mxu0 0
  %72 = vmatpush1.bf16.msra.mxu0 0
  %73 = vmatprep.subr.bf16.mxu0 0
  %74 = vmatpush1.bf16.msra.mxu0 0
  %75 = vmatprep.subr.bf16.mxu0 0
  %76 = vmatpush1.bf16.msra.mxu0 0
  %77 = vmatprep.subr.bf16.mxu0 0
  %78 = vmatpush1.bf16.msra.mxu0 0
  %79 = vmatprep.subr.bf16.mxu0 0
  %80 = vmatpush1.bf16.msra.mxu0 0
  %81 = vmatprep.subr.bf16.mxu0 0
  %82 = vmatpush1.bf16.msra.mxu0 0
  %83 = vmatprep.subr.bf16.mxu0 0
  %84 = vmatpush1.bf16.msra.mxu0 0
  %85 = vmatprep.subr.bf16.mxu0 0
  %86 = vmatpush1.bf16.msra.mxu0 0
  %87 = vmatprep.subr.bf16.mxu0 0
  %88 = vmatpush1.bf16.msra.mxu0 0
  %89 = vmatprep.subr.bf16.mxu0 0
  %90 = vmatpush1.bf16.msra.mxu0 0
  %91 = vmatprep.mubr.bf16.mxu0 0
  %92 = vmatmul.mubr.bf16.gmra.mrb[0].mxu0 %v54
  %v93 = vpop.f32.mrb[0].mxu0
  %v94 = vadd.f32 %v26, %v93
  %v95 = vpop.f32.mrb[0].mxu0
  %v96 = vpop.f32.mrb[0].mxu0
  %v97 = vadd.f32 %v31, %v96
  %v98 = vpop.f32.mrb[0].mxu0
  %99 = vmatprep.mubr.bf16.mxu0 0
  %100 = vmatmul.mubr.bf16.gmra.mrb[0].mxu0 %v57
  %v101 = vpop.f32.mrb[0].mxu0
  %v102 = vadd.f32 %v36, %v101
  %v103 = vpop.f32.mrb[0].mxu0
  %v104 = vpop.f32.mrb[0].mxu0
  %v105 = vpop.f32.mrb[0].mxu0
  %106 = vdwg.mxu0
  %vm107 = vcmask 261120
  %108 = vst.msk [vmem:[%s3] sm:$0xff] %vm107, %v94
  %109 = vst.msk [vmem:[%s3 + $0x8] sm:$0xff] %vm107, %v97
  %110 = vst.msk [vmem:[%s3 + $0x10] sm:$0xff] %vm107, %v102
  // Predicated region
  $region14: #{forward.38} parent=0 // pred_check
    _
  $region15: #{forward.38} parent=0 // pred_check_branch
    %112 = sbr.rel (0) target = $region17
  $region16: #{forward.38} parent=0 // pred_region
    _
  $region17: #{forward.38} parent=0 // pred_fallthru
    _
  // Predicated region
  $region18: #{forward.38} parent=0 // pred_check
    _
  $region19: #{forward.38} parent=0 // pred_check_branch
    %114 = sbr.rel (0) target = $region21
  $region20: #{forward.38} parent=0 // pred_region
    _
  $region21: #{forward.38} parent=0 // pred_fallthru
    _

// kernel: forward.40
$region0: #{forward.40}
  #allocation0 [shape = 'u32[]', space=smem, size = 0x4, offset = 0x4, fixed_abs, tag = 'smem constant byte address 0x4 - core index']
  #allocation1 [shape = 'u32[144,128]{1,0:T(1,128)}', space=vmem, size = 0x12000, scoped, tag = 'internal scratch']
  %s0 = inlined_call_operand.vmem [shape: bf16[24,216], index: 0, kind: input, shape index: {}]
  %s1 = inlined_call_operand.vmem [shape: bf16[216,32], index: 1, kind: input, shape index: {}]
  %s2 = inlined_call_operand.vmem [shape: f32[24,1], index: 2, kind: input, shape index: {}]
  %s3 = inlined_call_operand.vmem [shape: f32[24,32], index: 3, kind: input, shape index: {}]
  %s4 = inlined_call_operand.vmem [shape: f32[24,32], index: 4, kind: output, shape index: {}]
  %s5 = sld [smem:[#allocation0]]
  $region26: #{forward.40} parent=0
    _
  %s7 = ssub.s32 1, %s5
  %s8 = scalar_select 0, %s7, %s5
  // Predicated region
  $region2: #{forward.40} parent=0 // pred_check
    _
  $region3: #{forward.40} parent=0 // pred_check_branch
    %10 = sbr.rel (0) target = $region5
  $region4: #{forward.40} parent=0 // pred_region
    _
  $region5: #{forward.40} parent=0 // pred_fallthru
    _
  // Predicated region
  $region6: #{forward.40} parent=0 // pred_check
    _
  $region7: #{forward.40} parent=0 // pred_check_branch
    %12 = sbr.rel (0) target = $region9
  $region8: #{forward.40} parent=0 // pred_region
    _
  $region9: #{forward.40} parent=0 // pred_fallthru
    _
  // Predicated region
  $region10: #{forward.40} parent=0 // pred_check
    _
  $region11: #{forward.40} parent=0 // pred_check_branch
    %14 = sbr.rel (0) target = $region13
  $region12: #{forward.40} parent=0 // pred_region
    _
  $region13: #{forward.40} parent=0 // pred_fallthru
    _
  // Predicated region
  $region14: #{forward.40} parent=0 // pred_check
    _
  $region15: #{forward.40} parent=0 // pred_check_branch
    %16 = sbr.rel (0) target = $region17
  $region16: #{forward.40} parent=0 // pred_region
    _
  $region17: #{forward.40} parent=0 // pred_fallthru
    _
  %v18 = vld [vmem:[%s0] sm:$0xff]
  %v19 = vld [vmem:[%s0 + $0x8] sm:$0xff]
  %v20 = vld [vmem:[%s0 + $0x10] sm:$0xff]
  %v21 = vld [vmem:[%s1] sm:$0xf]
  %v22 = vld [vmem:[%s1 + $0x4] sm:$0xf]
  %v23 = vld [vmem:[%s1 + $0x8] sm:$0xf]
  %v24 = vld [vmem:[%s1 + $0xc] sm:$0xf]
  %v25 = vld [vmem:[%s1 + $0x10] sm:$0xf]
  %v26 = vld [vmem:[%s1 + $0x14] sm:$0xf]
  %v27 = vld [vmem:[%s1 + $0x18] sm:$0xf]
  %v28 = vld [vmem:[%s1 + $0x1c] sm:$0xf]
  %v29 = vld [vmem:[%s1 + $0x20] sm:$0xf]
  %v30 = vld [vmem:[%s1 + $0x24] sm:$0xf]
  %v31 = vld [vmem:[%s1 + $0x28] sm:$0xf]
  %v32 = vld [vmem:[%s1 + $0x2c] sm:$0xf]
  %v33 = vld [vmem:[%s1 + $0x30] sm:$0xf]
  %v34 = vld [vmem:[%s1 + $0x34] sm:$0xf]
  %v35 = vld [vmem:[%s1 + $0x38] sm:$0xf]
  %v36 = vld [vmem:[%s1 + $0x3c] sm:$0xf]
  %v37 = vld [vmem:[%s1 + $0x40] sm:$0xf]
  %v38 = vld [vmem:[%s1 + $0x44] sm:$0xf]
  %v39 = vld [vmem:[%s1 + $0x48] sm:$0xf]
  %v40 = vld [vmem:[%s1 + $0x4c] sm:$0xf]
  %v41 = vld [vmem:[%s1 + $0x50] sm:$0xf]
  %v42 = vld [vmem:[%s1 + $0x54] sm:$0xf]
  %v43 = vld [vmem:[%s1 + $0x58] sm:$0xf]
  %v44 = vld [vmem:[%s1 + $0x5c] sm:$0xf]
  %v45 = vld [vmem:[%s1 + $0x60] sm:$0xf]
  %v46 = vld [vmem:[%s1 + $0x64] sm:$0xf]
  %v47 = vld [vmem:[%s1 + $0x68] sm:$0xf]
  %v48 = vld [vmem:[%s2] sm:$0xff]
  %v49 = vld [vmem:[%s2 + $0x8] sm:$0xff]
  %v50 = vld [vmem:[%s2 + $0x10] sm:$0xff]
  %52 = vset.pattern.permute.xlu0 0
  %53 = vperm.xlu0 %52, %v48
  %v54 = vpop.permute.xlu0 %53
  %57 = vset.pattern.permute.xlu0 0
  %58 = vperm.xlu0 %57, %v49
  %v59 = vpop.permute.xlu0 %58
  %62 = vset.pattern.permute.xlu0 0
  %63 = vperm.xlu0 %62, %v50
  %v64 = vpop.permute.xlu0 %63
  %v69 = vunpack.c.l.b16 %v18
  %v70 = vunpack.c.h.b16 %v18
  %v71 = vunpack.c.l.b16 %v19
  %v72 = vunpack.c.h.b16 %v19
  %v73 = vunpack.c.l.b16 %v20
  %v74 = vunpack.c.h.b16 %v20
  %v75 = vpack.c.b16 %v71, %v69
  %v76 = vpack.c.b16 %v72, %v70
  %v77 = vpack.c.b16 %v73, %v73
  %v78 = vpack.c.b16 %v74, %v74
  %v108 = vunpack.c.l.b16 %v21
  %v109 = vunpack.c.l.b16 %v22
  %v110 = vunpack.c.l.b16 %v23
  %v111 = vunpack.c.l.b16 %v24
  %v112 = vunpack.c.l.b16 %v25
  %v113 = vunpack.c.l.b16 %v26
  %v114 = vunpack.c.l.b16 %v27
  %v115 = vunpack.c.l.b16 %v28
  %v116 = vunpack.c.l.b16 %v29
  %v117 = vunpack.c.l.b16 %v30
  %v118 = vunpack.c.l.b16 %v31
  %v119 = vunpack.c.l.b16 %v32
  %v120 = vunpack.c.l.b16 %v33
  %v121 = vunpack.c.l.b16 %v34
  %v122 = vunpack.c.l.b16 %v35
  %v123 = vunpack.c.l.b16 %v36
  %v124 = vunpack.c.l.b16 %v37
  %v125 = vunpack.c.l.b16 %v38
  %v126 = vunpack.c.l.b16 %v39
  %v127 = vunpack.c.l.b16 %v40
  %v128 = vunpack.c.l.b16 %v41
  %v129 = vunpack.c.l.b16 %v42
  %v130 = vunpack.c.l.b16 %v43
  %v131 = vunpack.c.l.b16 %v44
  %v132 = vunpack.c.l.b16 %v45
  %v133 = vunpack.c.l.b16 %v46
  %v134 = vunpack.c.l.b16 %v47
  %v135 = vpack.c.b16 %v109, %v108
  %v136 = vpack.c.b16 %v111, %v110
  %v137 = vpack.c.b16 %v113, %v112
  %v138 = vpack.c.b16 %v115, %v114
  %v139 = vpack.c.b16 %v117, %v116
  %v140 = vpack.c.b16 %v119, %v118
  %v141 = vpack.c.b16 %v121, %v120
  %v142 = vpack.c.b16 %v123, %v122
  %v143 = vpack.c.b16 %v125, %v124
  %v144 = vpack.c.b16 %v127, %v126
  %v145 = vpack.c.b16 %v129, %v128
  %v146 = vpack.c.b16 %v131, %v130
  %v147 = vpack.c.b16 %v133, %v132
  %v148 = vpack.c.b16 %v134, %v134
  %vm162 = vcmask 719872
  %v164 = vsel %vm162, %v76, 0
  %v167 = vsel %vm162, %v78, 0
  %vm169 = vcmask 1043456
  %v171 = vsel %vm169, %v148, 0
  %173 = vmatprep.subr.bf16.mxu0 0
  %174 = vmatpush1.bf16.msra.mxu0 %v135
  %175 = vmatprep.subr.bf16.mxu0 0
  %176 = vmatpush1.bf16.msra.mxu0 %v136
  %177 = vmatprep.subr.bf16.mxu0 0
  %178 = vmatpush1.bf16.msra.mxu0 %v137
  %179 = vmatprep.subr.bf16.mxu0 0
  %180 = vmatpush1.bf16.msra.mxu0 %v138
  %181 = vmatprep.subr.bf16.mxu0 0
  %182 = vmatpush1.bf16.msra.mxu0 %v139
  %183 = vmatprep.subr.bf16.mxu0 0
  %184 = vmatpush1.bf16.msra.mxu0 %v140
  %185 = vmatprep.subr.bf16.mxu0 0
  %186 = vmatpush1.bf16.msra.mxu0 %v141
  %187 = vmatprep.subr.bf16.mxu0 0
  %188 = vmatpush1.bf16.msra.mxu0 %v142
  %189 = vmatprep.subr.bf16.mxu0 0
  %190 = vmatpush1.bf16.msra.mxu0 %v143
  %191 = vmatprep.subr.bf16.mxu0 0
  %192 = vmatpush1.bf16.msra.mxu0 %v144
  %193 = vmatprep.subr.bf16.mxu0 0
  %194 = vmatpush1.bf16.msra.mxu0 %v145
  %195 = vmatprep.subr.bf16.mxu0 0
  %196 = vmatpush1.bf16.msra.mxu0 %v146
  %197 = vmatprep.subr.bf16.mxu0 0
  %198 = vmatpush1.bf16.msra.mxu0 %v147
  %199 = vmatprep.subr.bf16.mxu0 0
  %200 = vmatpush1.bf16.msra.mxu0 %v171
  %201 = vmatprep.subr.bf16.mxu0 0
  %202 = vmatpush1.bf16.msra.mxu0 0
  %203 = vmatprep.subr.bf16.mxu0 0
  %204 = vmatpush1.bf16.msra.mxu0 0
  %205 = vmatprep.mubr.bf16.mxu0 %v164
  %206 = vmatmul.mubr.bf16.gmra.mrb[0].mxu0 %v75
  %v207 = vpop.f32.mrb[0].mxu0
  %v208 = vadd.f32 %v54, %v207
  %v209 = vpop.f32.mrb[0].mxu0
  %v210 = vpop.f32.mrb[0].mxu0
  %v211 = vadd.f32 %v59, %v210
  %v212 = vpop.f32.mrb[0].mxu0
  %213 = vmatprep.mubr.bf16.mxu0 %v167
  %214 = vmatmul.mubr.bf16.gmra.mrb[0].mxu0 %v77
  %v215 = vpop.f32.mrb[0].mxu0
  %v216 = vadd.f32 %v64, %v215
  %v217 = vpop.f32.mrb[0].mxu0
  %v218 = vpop.f32.mrb[0].mxu0
  %v219 = vpop.f32.mrb[0].mxu0
  %220 = vdwg.mxu0
  %v221 = vld [vmem:[%s3] sm:$0xff]
  %v222 = vld [vmem:[%s3 + $0x8] sm:$0xff]
  %v223 = vld [vmem:[%s3 + $0x10] sm:$0xff]
  %v224 = vadd.f32 %v208, %v221
  %v225 = vadd.f32 %v211, %v222
  %v226 = vadd.f32 %v216, %v223
  %v227 = vmax.f32 %v224, 0.0
  %v228 = vmax.f32 %v225, 0.0
  %v229 = vmax.f32 %v226, 0.0
  %vm230 = vcmask 261120
  %231 = vst.msk [vmem:[%s4] sm:$0xff] %vm230, %v227
  %232 = vst.msk [vmem:[%s4 + $0x8] sm:$0xff] %vm230, %v228
  %233 = vst.msk [vmem:[%s4 + $0x10] sm:$0xff] %vm230, %v229
  // Predicated region
  $region18: #{forward.40} parent=0 // pred_check
    _
  $region19: #{forward.40} parent=0 // pred_check_branch
    %235 = sbr.rel (0) target = $region21
  $region20: #{forward.40} parent=0 // pred_region
    _
  $region21: #{forward.40} parent=0 // pred_fallthru
    _
  // Predicated region
  $region22: #{forward.40} parent=0 // pred_check
    _
  $region23: #{forward.40} parent=0 // pred_check_branch
    %237 = sbr.rel (0) target = $region25
  $region24: #{forward.40} parent=0 // pred_region
    _
  $region25: #{forward.40} parent=0 // pred_fallthru
    _

// kernel: forward.41
$region0: #{forward.41}
  #allocation0 [shape = 'u32[]', space=smem, size = 0x4, offset = 0x4, fixed_abs, tag = 'smem constant byte address 0x4 - core index']
  #allocation1 [shape = 'u32[144,128]{1,0:T(1,128)}', space=vmem, size = 0x12000, scoped, tag = 'internal scratch']
  %s0 = inlined_call_operand.vmem [shape: bf16[24,216], index: 0, kind: input, shape index: {}]
  %s1 = inlined_call_operand.vmem [shape: bf16[216,32], index: 1, kind: input, shape index: {}]
  %s2 = inlined_call_operand.vmem [shape: f32[24,1], index: 2, kind: input, shape index: {}]
  %s3 = inlined_call_operand.vmem [shape: f32[24,32], index: 3, kind: output, shape index: {}]
  %s4 = sld [smem:[#allocation0]]
  $region22: #{forward.41} parent=0
    _
  %s6 = ssub.s32 1, %s4
  %s7 = scalar_select 0, %s6, %s4
  // Predicated region
  $region2: #{forward.41} parent=0 // pred_check
    _
  $region3: #{forward.41} parent=0 // pred_check_branch
    %9 = sbr.rel (0) target = $region5
  $region4: #{forward.41} parent=0 // pred_region
    _
  $region5: #{forward.41} parent=0 // pred_fallthru
    _
  // Predicated region
  $region6: #{forward.41} parent=0 // pred_check
    _
  $region7: #{forward.41} parent=0 // pred_check_branch
    %11 = sbr.rel (0) target = $region9
  $region8: #{forward.41} parent=0 // pred_region
    _
  $region9: #{forward.41} parent=0 // pred_fallthru
    _
  // Predicated region
  $region10: #{forward.41} parent=0 // pred_check
    _
  $region11: #{forward.41} parent=0 // pred_check_branch
    %13 = sbr.rel (0) target = $region13
  $region12: #{forward.41} parent=0 // pred_region
    _
  $region13: #{forward.41} parent=0 // pred_fallthru
    _
  %v15 = vld [vmem:[%s0] sm:$0xff]
  %v16 = vld [vmem:[%s0 + $0x8] sm:$0xff]
  %v17 = vld [vmem:[%s0 + $0x10] sm:$0xff]
  %v18 = vld [vmem:[%s1] sm:$0xf]
  %v19 = vld [vmem:[%s1 + $0x4] sm:$0xf]
  %v20 = vld [vmem:[%s1 + $0x8] sm:$0xf]
  %v21 = vld [vmem:[%s1 + $0xc] sm:$0xf]
  %v22 = vld [vmem:[%s1 + $0x10] sm:$0xf]
  %v23 = vld [vmem:[%s1 + $0x14] sm:$0xf]
  %v24 = vld [vmem:[%s1 + $0x18] sm:$0xf]
  %v25 = vld [vmem:[%s1 + $0x1c] sm:$0xf]
  %v26 = vld [vmem:[%s1 + $0x20] sm:$0xf]
  %v27 = vld [vmem:[%s1 + $0x24] sm:$0xf]
  %v28 = vld [vmem:[%s1 + $0x28] sm:$0xf]
  %v29 = vld [vmem:[%s1 + $0x2c] sm:$0xf]
  %v30 = vld [vmem:[%s1 + $0x30] sm:$0xf]
  %v31 = vld [vmem:[%s1 + $0x34] sm:$0xf]
  %v32 = vld [vmem:[%s1 + $0x38] sm:$0xf]
  %v33 = vld [vmem:[%s1 + $0x3c] sm:$0xf]
  %v34 = vld [vmem:[%s1 + $0x40] sm:$0xf]
  %v35 = vld [vmem:[%s1 + $0x44] sm:$0xf]
  %v36 = vld [vmem:[%s1 + $0x48] sm:$0xf]
  %v37 = vld [vmem:[%s1 + $0x4c] sm:$0xf]
  %v38 = vld [vmem:[%s1 + $0x50] sm:$0xf]
  %v39 = vld [vmem:[%s1 + $0x54] sm:$0xf]
  %v40 = vld [vmem:[%s1 + $0x58] sm:$0xf]
  %v41 = vld [vmem:[%s1 + $0x5c] sm:$0xf]
  %v42 = vld [vmem:[%s1 + $0x60] sm:$0xf]
  %v43 = vld [vmem:[%s1 + $0x64] sm:$0xf]
  %v44 = vld [vmem:[%s1 + $0x68] sm:$0xf]
  %v45 = vld [vmem:[%s2] sm:$0xff]
  %v46 = vld [vmem:[%s2 + $0x8] sm:$0xff]
  %v47 = vld [vmem:[%s2 + $0x10] sm:$0xff]
  %49 = vset.pattern.permute.xlu0 0
  %50 = vperm.xlu0 %49, %v45
  %v51 = vpop.permute.xlu0 %50
  %54 = vset.pattern.permute.xlu0 0
  %55 = vperm.xlu0 %54, %v46
  %v56 = vpop.permute.xlu0 %55
  %59 = vset.pattern.permute.xlu0 0
  %60 = vperm.xlu0 %59, %v47
  %v61 = vpop.permute.xlu0 %60
  %v66 = vunpack.c.l.b16 %v15
  %v67 = vunpack.c.h.b16 %v15
  %v68 = vunpack.c.l.b16 %v16
  %v69 = vunpack.c.h.b16 %v16
  %v70 = vunpack.c.l.b16 %v17
  %v71 = vunpack.c.h.b16 %v17
  %v72 = vpack.c.b16 %v68, %v66
  %v73 = vpack.c.b16 %v69, %v67
  %v74 = vpack.c.b16 %v70, %v70
  %v75 = vpack.c.b16 %v71, %v71
  %v105 = vunpack.c.l.b16 %v18
  %v106 = vunpack.c.l.b16 %v19
  %v107 = vunpack.c.l.b16 %v20
  %v108 = vunpack.c.l.b16 %v21
  %v109 = vunpack.c.l.b16 %v22
  %v110 = vunpack.c.l.b16 %v23
  %v111 = vunpack.c.l.b16 %v24
  %v112 = vunpack.c.l.b16 %v25
  %v113 = vunpack.c.l.b16 %v26
  %v114 = vunpack.c.l.b16 %v27
  %v115 = vunpack.c.l.b16 %v28
  %v116 = vunpack.c.l.b16 %v29
  %v117 = vunpack.c.l.b16 %v30
  %v118 = vunpack.c.l.b16 %v31
  %v119 = vunpack.c.l.b16 %v32
  %v120 = vunpack.c.l.b16 %v33
  %v121 = vunpack.c.l.b16 %v34
  %v122 = vunpack.c.l.b16 %v35
  %v123 = vunpack.c.l.b16 %v36
  %v124 = vunpack.c.l.b16 %v37
  %v125 = vunpack.c.l.b16 %v38
  %v126 = vunpack.c.l.b16 %v39
  %v127 = vunpack.c.l.b16 %v40
  %v128 = vunpack.c.l.b16 %v41
  %v129 = vunpack.c.l.b16 %v42
  %v130 = vunpack.c.l.b16 %v43
  %v131 = vunpack.c.l.b16 %v44
  %v132 = vpack.c.b16 %v106, %v105
  %v133 = vpack.c.b16 %v108, %v107
  %v134 = vpack.c.b16 %v110, %v109
  %v135 = vpack.c.b16 %v112, %v111
  %v136 = vpack.c.b16 %v114, %v113
  %v137 = vpack.c.b16 %v116, %v115
  %v138 = vpack.c.b16 %v118, %v117
  %v139 = vpack.c.b16 %v120, %v119
  %v140 = vpack.c.b16 %v122, %v121
  %v141 = vpack.c.b16 %v124, %v123
  %v142 = vpack.c.b16 %v126, %v125
  %v143 = vpack.c.b16 %v128, %v127
  %v144 = vpack.c.b16 %v130, %v129
  %v145 = vpack.c.b16 %v131, %v131
  %vm159 = vcmask 719872
  %v161 = vsel %vm159, %v73, 0
  %v164 = vsel %vm159, %v75, 0
  %vm166 = vcmask 1043456
  %v168 = vsel %vm166, %v145, 0
  %170 = vmatprep.subr.bf16.mxu0 0
  %171 = vmatpush1.bf16.msra.mxu0 %v132
  %172 = vmatprep.subr.bf16.mxu0 0
  %173 = vmatpush1.bf16.msra.mxu0 %v133
  %174 = vmatprep.subr.bf16.mxu0 0
  %175 = vmatpush1.bf16.msra.mxu0 %v134
  %176 = vmatprep.subr.bf16.mxu0 0
  %177 = vmatpush1.bf16.msra.mxu0 %v135
  %178 = vmatprep.subr.bf16.mxu0 0
  %179 = vmatpush1.bf16.msra.mxu0 %v136
  %180 = vmatprep.subr.bf16.mxu0 0
  %181 = vmatpush1.bf16.msra.mxu0 %v137
  %182 = vmatprep.subr.bf16.mxu0 0
  %183 = vmatpush1.bf16.msra.mxu0 %v138
  %184 = vmatprep.subr.bf16.mxu0 0
  %185 = vmatpush1.bf16.msra.mxu0 %v139
  %186 = vmatprep.subr.bf16.mxu0 0
  %187 = vmatpush1.bf16.msra.mxu0 %v140
  %188 = vmatprep.subr.bf16.mxu0 0
  %189 = vmatpush1.bf16.msra.mxu0 %v141
  %190 = vmatprep.subr.bf16.mxu0 0
  %191 = vmatpush1.bf16.msra.mxu0 %v142
  %192 = vmatprep.subr.bf16.mxu0 0
  %193 = vmatpush1.bf16.msra.mxu0 %v143
  %194 = vmatprep.subr.bf16.mxu0 0
  %195 = vmatpush1.bf16.msra.mxu0 %v144
  %196 = vmatprep.subr.bf16.mxu0 0
  %197 = vmatpush1.bf16.msra.mxu0 %v168
  %198 = vmatprep.subr.bf16.mxu0 0
  %199 = vmatpush1.bf16.msra.mxu0 0
  %200 = vmatprep.subr.bf16.mxu0 0
  %201 = vmatpush1.bf16.msra.mxu0 0
  %202 = vmatprep.mubr.bf16.mxu0 %v161
  %203 = vmatmul.mubr.bf16.gmra.mrb[0].mxu0 %v72
  %v204 = vpop.f32.mrb[0].mxu0
  %v205 = vadd.f32 %v51, %v204
  %v206 = vpop.f32.mrb[0].mxu0
  %v207 = vpop.f32.mrb[0].mxu0
  %v208 = vadd.f32 %v56, %v207
  %v209 = vpop.f32.mrb[0].mxu0
  %210 = vmatprep.mubr.bf16.mxu0 %v164
  %211 = vmatmul.mubr.bf16.gmra.mrb[0].mxu0 %v74
  %v212 = vpop.f32.mrb[0].mxu0
  %v213 = vadd.f32 %v61, %v212
  %v214 = vpop.f32.mrb[0].mxu0
  %v215 = vpop.f32.mrb[0].mxu0
  %v216 = vpop.f32.mrb[0].mxu0
  %217 = vdwg.mxu0
  %v218 = vmax.f32 %v205, 0.0
  %v219 = vmax.f32 %v208, 0.0
  %v220 = vmax.f32 %v213, 0.0
  %vm221 = vcmask 261120
  %222 = vst.msk [vmem:[%s3] sm:$0xff] %vm221, %v218
  %223 = vst.msk [vmem:[%s3 + $0x8] sm:$0xff] %vm221, %v219
  %224 = vst.msk [vmem:[%s3 + $0x10] sm:$0xff] %vm221, %v220
  // Predicated region
  $region14: #{forward.41} parent=0 // pred_check
    _
  $region15: #{forward.41} parent=0 // pred_check_branch
    %226 = sbr.rel (0) target = $region17
  $region16: #{forward.41} parent=0 // pred_region
    _
  $region17: #{forward.41} parent=0 // pred_fallthru
    _
  // Predicated region
  $region18: #{forward.41} parent=0 // pred_check
    _
  $region19: #{forward.41} parent=0 // pred_check_branch
    %228 = sbr.rel (0) target = $region21
  $region20: #{forward.41} parent=0 // pred_region
    _
  $region21: #{forward.41} parent=0 // pred_fallthru
    _

// kernel: forward.44
$region0: #{forward.44}
  #allocation0 [shape = 'u32[]', space=smem, size = 0x4, offset = 0x4, fixed_abs, tag = 'smem constant byte address 0x4 - core index']
  #allocation1 [shape = 'u32[144,128]{1,0:T(1,128)}', space=vmem, size = 0x12000, scoped, tag = 'internal scratch']
  %s0 = inlined_call_operand.vmem [shape: bf16[32,216], index: 0, kind: input, shape index: {}]
  %s1 = inlined_call_operand.vmem [shape: bf16[216,32], index: 1, kind: input, shape index: {}]
  %s2 = inlined_call_operand.vmem [shape: f32[32,1], index: 2, kind: input, shape index: {}]
  %s3 = inlined_call_operand.vmem [shape: f32[32,32], index: 3, kind: output, shape index: {}]
  %s4 = sld [smem:[#allocation0]]
  $region22: #{forward.44} parent=0
    _
  %s6 = ssub.s32 1, %s4
  %s7 = scalar_select 0, %s6, %s4
  // Predicated region
  $region2: #{forward.44} parent=0 // pred_check
    _
  $region3: #{forward.44} parent=0 // pred_check_branch
    %9 = sbr.rel (0) target = $region5
  $region4: #{forward.44} parent=0 // pred_region
    _
  $region5: #{forward.44} parent=0 // pred_fallthru
    _
  // Predicated region
  $region6: #{forward.44} parent=0 // pred_check
    _
  $region7: #{forward.44} parent=0 // pred_check_branch
    %11 = sbr.rel (0) target = $region9
  $region8: #{forward.44} parent=0 // pred_region
    _
  $region9: #{forward.44} parent=0 // pred_fallthru
    _
  // Predicated region
  $region10: #{forward.44} parent=0 // pred_check
    _
  $region11: #{forward.44} parent=0 // pred_check_branch
    %13 = sbr.rel (0) target = $region13
  $region12: #{forward.44} parent=0 // pred_region
    _
  $region13: #{forward.44} parent=0 // pred_fallthru
    _
  %v15 = vld [vmem:[%s0] sm:$0xff]
  %v16 = vld [vmem:[%s0 + $0x8] sm:$0xff]
  %v17 = vld [vmem:[%s0 + $0x10] sm:$0xff]
  %v18 = vld [vmem:[%s0 + $0x18] sm:$0xff]
  %v19 = vld [vmem:[%s1] sm:$0xf]
  %v20 = vld [vmem:[%s1 + $0x4] sm:$0xf]
  %v21 = vld [vmem:[%s1 + $0x8] sm:$0xf]
  %v22 = vld [vmem:[%s1 + $0xc] sm:$0xf]
  %v23 = vld [vmem:[%s1 + $0x10] sm:$0xf]
  %v24 = vld [vmem:[%s1 + $0x14] sm:$0xf]
  %v25 = vld [vmem:[%s1 + $0x18] sm:$0xf]
  %v26 = vld [vmem:[%s1 + $0x1c] sm:$0xf]
  %v27 = vld [vmem:[%s1 + $0x20] sm:$0xf]
  %v28 = vld [vmem:[%s1 + $0x24] sm:$0xf]
  %v29 = vld [vmem:[%s1 + $0x28] sm:$0xf]
  %v30 = vld [vmem:[%s1 + $0x2c] sm:$0xf]
  %v31 = vld [vmem:[%s1 + $0x30] sm:$0xf]
  %v32 = vld [vmem:[%s1 + $0x34] sm:$0xf]
  %v33 = vld [vmem:[%s1 + $0x38] sm:$0xf]
  %v34 = vld [vmem:[%s1 + $0x3c] sm:$0xf]
  %v35 = vld [vmem:[%s1 + $0x40] sm:$0xf]
  %v36 = vld [vmem:[%s1 + $0x44] sm:$0xf]
  %v37 = vld [vmem:[%s1 + $0x48] sm:$0xf]
  %v38 = vld [vmem:[%s1 + $0x4c] sm:$0xf]
  %v39 = vld [vmem:[%s1 + $0x50] sm:$0xf]
  %v40 = vld [vmem:[%s1 + $0x54] sm:$0xf]
  %v41 = vld [vmem:[%s1 + $0x58] sm:$0xf]
  %v42 = vld [vmem:[%s1 + $0x5c] sm:$0xf]
  %v43 = vld [vmem:[%s1 + $0x60] sm:$0xf]
  %v44 = vld [vmem:[%s1 + $0x64] sm:$0xf]
  %v45 = vld [vmem:[%s1 + $0x68] sm:$0xf]
  %v46 = vld [vmem:[%s2] sm:$0xff]
  %v47 = vld [vmem:[%s2 + $0x8] sm:$0xff]
  %v48 = vld [vmem:[%s2 + $0x10] sm:$0xff]
  %v49 = vld [vmem:[%s2 + $0x18] sm:$0xff]
  %51 = vset.pattern.permute.xlu0 0
  %52 = vperm.xlu0 %51, %v46
  %v53 = vpop.permute.xlu0 %52
  %56 = vset.pattern.permute.xlu0 0
  %57 = vperm.xlu0 %56, %v47
  %v58 = vpop.permute.xlu0 %57
  %61 = vset.pattern.permute.xlu0 0
  %62 = vperm.xlu0 %61, %v48
  %v63 = vpop.permute.xlu0 %62
  %66 = vset.pattern.permute.xlu0 0
  %67 = vperm.xlu0 %66, %v49
  %v68 = vpop.permute.xlu0 %67
  %v74 = vunpack.c.l.b16 %v15
  %v75 = vunpack.c.h.b16 %v15
  %v76 = vunpack.c.l.b16 %v16
  %v77 = vunpack.c.h.b16 %v16
  %v78 = vunpack.c.l.b16 %v17
  %v79 = vunpack.c.h.b16 %v17
  %v80 = vunpack.c.l.b16 %v18
  %v81 = vunpack.c.h.b16 %v18
  %v82 = vpack.c.b16 %v76, %v74
  %v83 = vpack.c.b16 %v77, %v75
  %v84 = vpack.c.b16 %v80, %v78
  %v85 = vpack.c.b16 %v81, %v79
  %v115 = vunpack.c.l.b16 %v19
  %v116 = vunpack.c.l.b16 %v20
  %v117 = vunpack.c.l.b16 %v21
  %v118 = vunpack.c.l.b16 %v22
  %v119 = vunpack.c.l.b16 %v23
  %v120 = vunpack.c.l.b16 %v24
  %v121 = vunpack.c.l.b16 %v25
  %v122 = vunpack.c.l.b16 %v26
  %v123 = vunpack.c.l.b16 %v27
  %v124 = vunpack.c.l.b16 %v28
  %v125 = vunpack.c.l.b16 %v29
  %v126 = vunpack.c.l.b16 %v30
  %v127 = vunpack.c.l.b16 %v31
  %v128 = vunpack.c.l.b16 %v32
  %v129 = vunpack.c.l.b16 %v33
  %v130 = vunpack.c.l.b16 %v34
  %v131 = vunpack.c.l.b16 %v35
  %v132 = vunpack.c.l.b16 %v36
  %v133 = vunpack.c.l.b16 %v37
  %v134 = vunpack.c.l.b16 %v38
  %v135 = vunpack.c.l.b16 %v39
  %v136 = vunpack.c.l.b16 %v40
  %v137 = vunpack.c.l.b16 %v41
  %v138 = vunpack.c.l.b16 %v42
  %v139 = vunpack.c.l.b16 %v43
  %v140 = vunpack.c.l.b16 %v44
  %v141 = vunpack.c.l.b16 %v45
  %v142 = vpack.c.b16 %v116, %v115
  %v143 = vpack.c.b16 %v118, %v117
  %v144 = vpack.c.b16 %v120, %v119
  %v145 = vpack.c.b16 %v122, %v121
  %v146 = vpack.c.b16 %v124, %v123
  %v147 = vpack.c.b16 %v126, %v125
  %v148 = vpack.c.b16 %v128, %v127
  %v149 = vpack.c.b16 %v130, %v129
  %v150 = vpack.c.b16 %v132, %v131
  %v151 = vpack.c.b16 %v134, %v133
  %v152 = vpack.c.b16 %v136, %v135
  %v153 = vpack.c.b16 %v138, %v137
  %v154 = vpack.c.b16 %v140, %v139
  %v155 = vpack.c.b16 %v141, %v141
  %vm169 = vcmask 719872
  %v171 = vsel %vm169, %v83, 0
  %v174 = vsel %vm169, %v85, 0
  %vm176 = vcmask 1043456
  %v178 = vsel %vm176, %v155, 0
  %180 = vmatprep.subr.bf16.mxu0 0
  %181 = vmatpush1.bf16.msra.mxu0 %v142
  %182 = vmatprep.subr.bf16.mxu0 0
  %183 = vmatpush1.bf16.msra.mxu0 %v143
  %184 = vmatprep.subr.bf16.mxu0 0
  %185 = vmatpush1.bf16.msra.mxu0 %v144
  %186 = vmatprep.subr.bf16.mxu0 0
  %187 = vmatpush1.bf16.msra.mxu0 %v145
  %188 = vmatprep.subr.bf16.mxu0 0
  %189 = vmatpush1.bf16.msra.mxu0 %v146
  %190 = vmatprep.subr.bf16.mxu0 0
  %191 = vmatpush1.bf16.msra.mxu0 %v147
  %192 = vmatprep.subr.bf16.mxu0 0
  %193 = vmatpush1.bf16.msra.mxu0 %v148
  %194 = vmatprep.subr.bf16.mxu0 0
  %195 = vmatpush1.bf16.msra.mxu0 %v149
  %196 = vmatprep.subr.bf16.mxu0 0
  %197 = vmatpush1.bf16.msra.mxu0 %v150
  %198 = vmatprep.subr.bf16.mxu0 0
  %199 = vmatpush1.bf16.msra.mxu0 %v151
  %200 = vmatprep.subr.bf16.mxu0 0
  %201 = vmatpush1.bf16.msra.mxu0 %v152
  %202 = vmatprep.subr.bf16.mxu0 0
  %203 = vmatpush1.bf16.msra.mxu0 %v153
  %204 = vmatprep.subr.bf16.mxu0 0
  %205 = vmatpush1.bf16.msra.mxu0 %v154
  %206 = vmatprep.subr.bf16.mxu0 0
  %207 = vmatpush1.bf16.msra.mxu0 %v178
  %208 = vmatprep.subr.bf16.mxu0 0
  %209 = vmatpush1.bf16.msra.mxu0 0
  %210 = vmatprep.subr.bf16.mxu0 0
  %211 = vmatpush1.bf16.msra.mxu0 0
  %212 = vmatprep.mubr.bf16.mxu0 %v171
  %213 = vmatmul.mubr.bf16.gmra.mrb[0].mxu0 %v82
  %v214 = vpop.f32.mrb[0].mxu0
  %v215 = vadd.f32 %v53, %v214
  %v216 = vpop.f32.mrb[0].mxu0
  %v217 = vpop.f32.mrb[0].mxu0
  %v218 = vadd.f32 %v58, %v217
  %v219 = vpop.f32.mrb[0].mxu0
  %220 = vmatprep.mubr.bf16.mxu0 %v174
  %221 = vmatmul.mubr.bf16.gmra.mrb[0].mxu0 %v84
  %v222 = vpop.f32.mrb[0].mxu0
  %v223 = vadd.f32 %v63, %v222
  %v224 = vpop.f32.mrb[0].mxu0
  %v225 = vpop.f32.mrb[0].mxu0
  %v226 = vadd.f32 %v68, %v225
  %v227 = vpop.f32.mrb[0].mxu0
  %228 = vdwg.mxu0
  %v229 = vmax.f32 %v215, 0.0
  %v230 = vmax.f32 %v218, 0.0
  %v231 = vmax.f32 %v223, 0.0
  %v232 = vmax.f32 %v226, 0.0
  %vm233 = vcmask 261120
  %234 = vst.msk [vmem:[%s3] sm:$0xff] %vm233, %v229
  %235 = vst.msk [vmem:[%s3 + $0x8] sm:$0xff] %vm233, %v230
  %236 = vst.msk [vmem:[%s3 + $0x10] sm:$0xff] %vm233, %v231
  %237 = vst.msk [vmem:[%s3 + $0x18] sm:$0xff] %vm233, %v232
  // Predicated region
  $region14: #{forward.44} parent=0 // pred_check
    _
  $region15: #{forward.44} parent=0 // pred_check_branch
    %239 = sbr.rel (0) target = $region17
  $region16: #{forward.44} parent=0 // pred_region
    _
  $region17: #{forward.44} parent=0 // pred_fallthru
    _
  // Predicated region
  $region18: #{forward.44} parent=0 // pred_check
    _
  $region19: #{forward.44} parent=0 // pred_check_branch
    %241 = sbr.rel (0) target = $region21
  $region20: #{forward.44} parent=0 // pred_region
    _
  $region21: #{forward.44} parent=0 // pred_fallthru
    _

// kernel: forward.43
$region0: #{forward.43}
  #allocation0 [shape = 'u32[]', space=smem, size = 0x4, offset = 0x4, fixed_abs, tag = 'smem constant byte address 0x4 - core index']
  #allocation1 [shape = 'u32[144,128]{1,0:T(1,128)}', space=vmem, size = 0x12000, scoped, tag = 'internal scratch']
  %s0 = inlined_call_operand.vmem [shape: bf16[32,24], index: 0, kind: input, shape index: {}]
  %s1 = inlined_call_operand.vmem [shape: bf16[24,32], index: 1, kind: input, shape index: {}]
  %s2 = inlined_call_operand.vmem [shape: f32[32,1], index: 2, kind: input, shape index: {}]
  %s3 = inlined_call_operand.vmem [shape: f32[32,32], index: 3, kind: output, shape index: {}]
  %s4 = sld [smem:[#allocation0]]
  $region22: #{forward.43} parent=0
    _
  %s6 = ssub.s32 1, %s4
  %s7 = scalar_select 0, %s6, %s4
  // Predicated region
  $region2: #{forward.43} parent=0 // pred_check
    _
  $region3: #{forward.43} parent=0 // pred_check_branch
    %9 = sbr.rel (0) target = $region5
  $region4: #{forward.43} parent=0 // pred_region
    _
  $region5: #{forward.43} parent=0 // pred_fallthru
    _
  // Predicated region
  $region6: #{forward.43} parent=0 // pred_check
    _
  $region7: #{forward.43} parent=0 // pred_check_branch
    %11 = sbr.rel (0) target = $region9
  $region8: #{forward.43} parent=0 // pred_region
    _
  $region9: #{forward.43} parent=0 // pred_fallthru
    _
  // Predicated region
  $region10: #{forward.43} parent=0 // pred_check
    _
  $region11: #{forward.43} parent=0 // pred_check_branch
    %13 = sbr.rel (0) target = $region13
  $region12: #{forward.43} parent=0 // pred_region
    _
  $region13: #{forward.43} parent=0 // pred_fallthru
    _
  %v15 = vld [vmem:[%s0] sm:$0xf]
  %v16 = vld [vmem:[%s0 + $0x4] sm:$0xf]
  %v17 = vld [vmem:[%s0 + $0x8] sm:$0xf]
  %v18 = vld [vmem:[%s0 + $0xc] sm:$0xf]
  %v19 = vld [vmem:[%s1] sm:$0xf]
  %v20 = vld [vmem:[%s1 + $0x4] sm:$0xf]
  %v21 = vld [vmem:[%s1 + $0x8] sm:$0xf]
  %v22 = vld [vmem:[%s2] sm:$0xff]
  %v23 = vld [vmem:[%s2 + $0x8] sm:$0xff]
  %v24 = vld [vmem:[%s2 + $0x10] sm:$0xff]
  %v25 = vld [vmem:[%s2 + $0x18] sm:$0xff]
  %27 = vset.pattern.permute.xlu0 0
  %28 = vperm.xlu0 %27, %v22
  %v29 = vpop.permute.xlu0 %28
  %32 = vset.pattern.permute.xlu0 0
  %33 = vperm.xlu0 %32, %v23
  %v34 = vpop.permute.xlu0 %33
  %37 = vset.pattern.permute.xlu0 0
  %38 = vperm.xlu0 %37, %v24
  %v39 = vpop.permute.xlu0 %38
  %42 = vset.pattern.permute.xlu0 0
  %43 = vperm.xlu0 %42, %v25
  %v44 = vpop.permute.xlu0 %43
  %v50 = vunpack.c.l.b16 %v15
  %v51 = vunpack.c.l.b16 %v16
  %v52 = vunpack.c.l.b16 %v17
  %v53 = vunpack.c.l.b16 %v18
  %v54 = vpack.c.b16 %v51, %v50
  %v55 = vpack.c.b16 %v53, %v52
  %v59 = vunpack.c.l.b16 %v19
  %v60 = vunpack.c.l.b16 %v20
  %v61 = vunpack.c.l.b16 %v21
  %v62 = vpack.c.b16 %v60, %v59
  %v63 = vpack.c.b16 %v61, %v61
  %vm65 = vcmask 195584
  %v67 = vsel %vm65, %v54, 0
  %v70 = vsel %vm65, %v55, 0
  %vm72 = vcmask 1043456
  %v74 = vsel %vm72, %v63, 0
  %76 = vmatprep.subr.bf16.mxu0 0
  %77 = vmatpush1.bf16.msra.mxu0 %v62
  %78 = vmatprep.subr.bf16.mxu0 0
  %79 = vmatpush1.bf16.msra.mxu0 %v74
  %80 = vmatprep.subr.bf16.mxu0 0
  %81 = vmatpush1.bf16.msra.mxu0 0
  %82 = vmatprep.subr.bf16.mxu0 0
  %83 = vmatpush1.bf16.msra.mxu0 0
  %84 = vmatprep.subr.bf16.mxu0 0
  %85 = vmatpush1.bf16.msra.mxu0 0
  %86 = vmatprep.subr.bf16.mxu0 0
  %87 = vmatpush1.bf16.msra.mxu0 0
  %88 = vmatprep.subr.bf16.mxu0 0
  %89 = vmatpush1.bf16.msra.mxu0 0
  %90 = vmatprep.subr.bf16.mxu0 0
  %91 = vmatpush1.bf16.msra.mxu0 0
  %92 = vmatprep.subr.bf16.mxu0 0
  %93 = vmatpush1.bf16.msra.mxu0 0
  %94 = vmatprep.subr.bf16.mxu0 0
  %95 = vmatpush1.bf16.msra.mxu0 0
  %96 = vmatprep.subr.bf16.mxu0 0
  %97 = vmatpush1.bf16.msra.mxu0 0
  %98 = vmatprep.subr.bf16.mxu0 0
  %99 = vmatpush1.bf16.msra.mxu0 0
  %100 = vmatprep.subr.bf16.mxu0 0
  %101 = vmatpush1.bf16.msra.mxu0 0
  %102 = vmatprep.subr.bf16.mxu0 0
  %103 = vmatpush1.bf16.msra.mxu0 0
  %104 = vmatprep.subr.bf16.mxu0 0
  %105 = vmatpush1.bf16.msra.mxu0 0
  %106 = vmatprep.subr.bf16.mxu0 0
  %107 = vmatpush1.bf16.msra.mxu0 0
  %108 = vmatprep.mubr.bf16.mxu0 0
  %109 = vmatmul.mubr.bf16.gmra.mrb[0].mxu0 %v67
  %v110 = vpop.f32.mrb[0].mxu0
  %v111 = vadd.f32 %v29, %v110
  %v112 = vpop.f32.mrb[0].mxu0
  %v113 = vpop.f32.mrb[0].mxu0
  %v114 = vadd.f32 %v34, %v113
  %v115 = vpop.f32.mrb[0].mxu0
  %116 = vmatprep.mubr.bf16.mxu0 0
  %117 = vmatmul.mubr.bf16.gmra.mrb[0].mxu0 %v70
  %v118 = vpop.f32.mrb[0].mxu0
  %v119 = vadd.f32 %v39, %v118
  %v120 = vpop.f32.mrb[0].mxu0
  %v121 = vpop.f32.mrb[0].mxu0
  %v122 = vadd.f32 %v44, %v121
  %v123 = vpop.f32.mrb[0].mxu0
  %124 = vdwg.mxu0
  %vm125 = vcmask 261120
  %126 = vst.msk [vmem:[%s3] sm:$0xff] %vm125, %v111
  %127 = vst.msk [vmem:[%s3 + $0x8] sm:$0xff] %vm125, %v114
  %128 = vst.msk [vmem:[%s3 + $0x10] sm:$0xff] %vm125, %v119
  %129 = vst.msk [vmem:[%s3 + $0x18] sm:$0xff] %vm125, %v122
  // Predicated region
  $region14: #{forward.43} parent=0 // pred_check
    _
  $region15: #{forward.43} parent=0 // pred_check_branch
    %131 = sbr.rel (0) target = $region17
  $region16: #{forward.43} parent=0 // pred_region
    _
  $region17: #{forward.43} parent=0 // pred_fallthru
    _
  // Predicated region
  $region18: #{forward.43} parent=0 // pred_check
    _
  $region19: #{forward.43} parent=0 // pred_check_branch
    %133 = sbr.rel (0) target = $region21
  $region20: #{forward.43} parent=0 // pred_region
    _
  $region21: #{forward.43} parent=0 // pred_fallthru
    _

// kernel: forward.45
$region0: #{forward.45}
  #allocation0 [shape = 'u32[]', space=smem, size = 0x4, offset = 0x4, fixed_abs, tag = 'smem constant byte address 0x4 - core index']
  #allocation1 [shape = 'u32[144,128]{1,0:T(1,128)}', space=vmem, size = 0x12000, scoped, tag = 'internal scratch']
  %s0 = inlined_call_operand.vmem [shape: bf16[32,288], index: 0, kind: input, shape index: {}]
  %s1 = inlined_call_operand.vmem [shape: bf16[288,32], index: 1, kind: input, shape index: {}]
  %s2 = inlined_call_operand.vmem [shape: f32[32,1], index: 2, kind: input, shape index: {}]
  %s3 = inlined_call_operand.vmem [shape: f32[32,32], index: 3, kind: input, shape index: {}]
  %s4 = inlined_call_operand.vmem [shape: f32[32,32], index: 4, kind: output, shape index: {}]
  %s5 = sld [smem:[#allocation0]]
  $region26: #{forward.45} parent=0
    _
  %s7 = ssub.s32 1, %s5
  %s8 = scalar_select 0, %s7, %s5
  // Predicated region
  $region2: #{forward.45} parent=0 // pred_check
    _
  $region3: #{forward.45} parent=0 // pred_check_branch
    %10 = sbr.rel (0) target = $region5
  $region4: #{forward.45} parent=0 // pred_region
    _
  $region5: #{forward.45} parent=0 // pred_fallthru
    _
  // Predicated region
  $region6: #{forward.45} parent=0 // pred_check
    _
  $region7: #{forward.45} parent=0 // pred_check_branch
    %12 = sbr.rel (0) target = $region9
  $region8: #{forward.45} parent=0 // pred_region
    _
  $region9: #{forward.45} parent=0 // pred_fallthru
    _
  // Predicated region
  $region10: #{forward.45} parent=0 // pred_check
    _
  $region11: #{forward.45} parent=0 // pred_check_branch
    %14 = sbr.rel (0) target = $region13
  $region12: #{forward.45} parent=0 // pred_region
    _
  $region13: #{forward.45} parent=0 // pred_fallthru
    _
  // Predicated region
  $region14: #{forward.45} parent=0 // pred_check
    _
  $region15: #{forward.45} parent=0 // pred_check_branch
    %16 = sbr.rel (0) target = $region17
  $region16: #{forward.45} parent=0 // pred_region
    _
  $region17: #{forward.45} parent=0 // pred_fallthru
    _
  %v18 = vld [vmem:[%s0] sm:$0xff]
  %v19 = vld [vmem:[%s0 + $0x8] sm:$0xf]
  %v20 = vld [vmem:[%s0 + $0xc] sm:$0xff]
  %v21 = vld [vmem:[%s0 + $0x14] sm:$0xf]
  %v22 = vld [vmem:[%s0 + $0x18] sm:$0xff]
  %v23 = vld [vmem:[%s0 + $0x20] sm:$0xf]
  %v24 = vld [vmem:[%s0 + $0x24] sm:$0xff]
  %v25 = vld [vmem:[%s0 + $0x2c] sm:$0xf]
  %v26 = vld [vmem:[%s1] sm:$0xf]
  %v27 = vld [vmem:[%s1 + $0x4] sm:$0xf]
  %v28 = vld [vmem:[%s1 + $0x8] sm:$0xf]
  %v29 = vld [vmem:[%s1 + $0xc] sm:$0xf]
  %v30 = vld [vmem:[%s1 + $0x10] sm:$0xf]
  %v31 = vld [vmem:[%s1 + $0x14] sm:$0xf]
  %v32 = vld [vmem:[%s1 + $0x18] sm:$0xf]
  %v33 = vld [vmem:[%s1 + $0x1c] sm:$0xf]
  %v34 = vld [vmem:[%s1 + $0x20] sm:$0xf]
  %v35 = vld [vmem:[%s1 + $0x24] sm:$0xf]
  %v36 = vld [vmem:[%s1 + $0x28] sm:$0xf]
  %v37 = vld [vmem:[%s1 + $0x2c] sm:$0xf]
  %v38 = vld [vmem:[%s1 + $0x30] sm:$0xf]
  %v39 = vld [vmem:[%s1 + $0x34] sm:$0xf]
  %v40 = vld [vmem:[%s1 + $0x38] sm:$0xf]
  %v41 = vld [vmem:[%s1 + $0x3c] sm:$0xf]
  %v42 = vld [vmem:[%s1 + $0x40] sm:$0xf]
  %v43 = vld [vmem:[%s1 + $0x44] sm:$0xf]
  %v44 = vld [vmem:[%s1 + $0x48] sm:$0xf]
  %v45 = vld [vmem:[%s1 + $0x4c] sm:$0xf]
  %v46 = vld [vmem:[%s1 + $0x50] sm:$0xf]
  %v47 = vld [vmem:[%s1 + $0x54] sm:$0xf]
  %v48 = vld [vmem:[%s1 + $0x58] sm:$0xf]
  %v49 = vld [vmem:[%s1 + $0x5c] sm:$0xf]
  %v50 = vld [vmem:[%s1 + $0x60] sm:$0xf]
  %v51 = vld [vmem:[%s1 + $0x64] sm:$0xf]
  %v52 = vld [vmem:[%s1 + $0x68] sm:$0xf]
  %v53 = vld [vmem:[%s1 + $0x6c] sm:$0xf]
  %v54 = vld [vmem:[%s1 + $0x70] sm:$0xf]
  %v55 = vld [vmem:[%s1 + $0x74] sm:$0xf]
  %v56 = vld [vmem:[%s1 + $0x78] sm:$0xf]
  %v57 = vld [vmem:[%s1 + $0x7c] sm:$0xf]
  %v58 = vld [vmem:[%s1 + $0x80] sm:$0xf]
  %v59 = vld [vmem:[%s1 + $0x84] sm:$0xf]
  %v60 = vld [vmem:[%s1 + $0x88] sm:$0xf]
  %v61 = vld [vmem:[%s1 + $0x8c] sm:$0xf]
  %v62 = vld [vmem:[%s2] sm:$0xff]
  %v63 = vld [vmem:[%s2 + $0x8] sm:$0xff]
  %v64 = vld [vmem:[%s2 + $0x10] sm:$0xff]
  %v65 = vld [vmem:[%s2 + $0x18] sm:$0xff]
  %67 = vset.pattern.permute.xlu0 0
  %68 = vperm.xlu0 %67, %v62
  %v69 = vpop.permute.xlu0 %68
  %72 = vset.pattern.permute.xlu0 0
  %73 = vperm.xlu0 %72, %v63
  %v74 = vpop.permute.xlu0 %73
  %77 = vset.pattern.permute.xlu0 0
  %78 = vperm.xlu0 %77, %v64
  %v79 = vpop.permute.xlu0 %78
  %82 = vset.pattern.permute.xlu0 0
  %83 = vperm.xlu0 %82, %v65
  %v84 = vpop.permute.xlu0 %83
  %v94 = vunpack.c.l.b16 %v18
  %v95 = vunpack.c.h.b16 %v18
  %v96 = vunpack.c.l.b16 %v19
  %v97 = vunpack.c.l.b16 %v20
  %v98 = vunpack.c.h.b16 %v20
  %v99 = vunpack.c.l.b16 %v21
  %v100 = vunpack.c.l.b16 %v22
  %v101 = vunpack.c.h.b16 %v22
  %v102 = vunpack.c.l.b16 %v23
  %v103 = vunpack.c.l.b16 %v24
  %v104 = vunpack.c.h.b16 %v24
  %v105 = vunpack.c.l.b16 %v25
  %v106 = vpack.c.b16 %v97, %v94
  %v107 = vpack.c.b16 %v98, %v95
  %v108 = vpack.c.b16 %v99, %v96
  %v109 = vpack.c.b16 %v103, %v100
  %v110 = vpack.c.b16 %v104, %v101
  %v111 = vpack.c.b16 %v105, %v102
  %v152 = vunpack.c.l.b16 %v26
  %v153 = vunpack.c.l.b16 %v27
  %v154 = vunpack.c.l.b16 %v28
  %v155 = vunpack.c.l.b16 %v29
  %v156 = vunpack.c.l.b16 %v30
  %v157 = vunpack.c.l.b16 %v31
  %v158 = vunpack.c.l.b16 %v32
  %v159 = vunpack.c.l.b16 %v33
  %v160 = vunpack.c.l.b16 %v34
  %v161 = vunpack.c.l.b16 %v35
  %v162 = vunpack.c.l.b16 %v36
  %v163 = vunpack.c.l.b16 %v37
  %v164 = vunpack.c.l.b16 %v38
  %v165 = vunpack.c.l.b16 %v39
  %v166 = vunpack.c.l.b16 %v40
  %v167 = vunpack.c.l.b16 %v41
  %v168 = vunpack.c.l.b16 %v42
  %v169 = vunpack.c.l.b16 %v43
  %v170 = vunpack.c.l.b16 %v44
  %v171 = vunpack.c.l.b16 %v45
  %v172 = vunpack.c.l.b16 %v46
  %v173 = vunpack.c.l.b16 %v47
  %v174 = vunpack.c.l.b16 %v48
  %v175 = vunpack.c.l.b16 %v49
  %v176 = vunpack.c.l.b16 %v50
  %v177 = vunpack.c.l.b16 %v51
  %v178 = vunpack.c.l.b16 %v52
  %v179 = vunpack.c.l.b16 %v53
  %v180 = vunpack.c.l.b16 %v54
  %v181 = vunpack.c.l.b16 %v55
  %v182 = vunpack.c.l.b16 %v56
  %v183 = vunpack.c.l.b16 %v57
  %v184 = vunpack.c.l.b16 %v58
  %v185 = vunpack.c.l.b16 %v59
  %v186 = vunpack.c.l.b16 %v60
  %v187 = vunpack.c.l.b16 %v61
  %v188 = vpack.c.b16 %v153, %v152
  %v189 = vpack.c.b16 %v155, %v154
  %v190 = vpack.c.b16 %v157, %v156
  %v191 = vpack.c.b16 %v159, %v158
  %v192 = vpack.c.b16 %v161, %v160
  %v193 = vpack.c.b16 %v163, %v162
  %v194 = vpack.c.b16 %v165, %v164
  %v195 = vpack.c.b16 %v167, %v166
  %v196 = vpack.c.b16 %v169, %v168
  %v197 = vpack.c.b16 %v171, %v170
  %v198 = vpack.c.b16 %v173, %v172
  %v199 = vpack.c.b16 %v175, %v174
  %v200 = vpack.c.b16 %v177, %v176
  %v201 = vpack.c.b16 %v179, %v178
  %v202 = vpack.c.b16 %v181, %v180
  %v203 = vpack.c.b16 %v183, %v182
  %v204 = vpack.c.b16 %v185, %v184
  %v205 = vpack.c.b16 %v187, %v186
  %vm224 = vcmask 261120
  %v226 = vsel %vm224, %v108, 0
  %v229 = vsel %vm224, %v111, 0
  %231 = vmatprep.subr.bf16.mxu0 0
  %232 = vmatpush1.bf16.msra.mxu0 %v188
  %233 = vmatprep.subr.bf16.mxu0 0
  %234 = vmatpush1.bf16.msra.mxu0 %v189
  %235 = vmatprep.subr.bf16.mxu0 0
  %236 = vmatpush1.bf16.msra.mxu0 %v190
  %237 = vmatprep.subr.bf16.mxu0 0
  %238 = vmatpush1.bf16.msra.mxu0 %v191
  %239 = vmatprep.subr.bf16.mxu0 0
  %240 = vmatpush1.bf16.msra.mxu0 %v192
  %241 = vmatprep.subr.bf16.mxu0 0
  %242 = vmatpush1.bf16.msra.mxu0 %v193
  %243 = vmatprep.subr.bf16.mxu0 0
  %244 = vmatpush1.bf16.msra.mxu0 %v194
  %245 = vmatprep.subr.bf16.mxu0 0
  %246 = vmatpush1.bf16.msra.mxu0 %v195
  %247 = vmatprep.subr.bf16.mxu0 0
  %248 = vmatpush1.bf16.msra.mxu0 %v196
  %249 = vmatprep.subr.bf16.mxu0 0
  %250 = vmatpush1.bf16.msra.mxu0 %v197
  %251 = vmatprep.subr.bf16.mxu0 0
  %252 = vmatpush1.bf16.msra.mxu0 %v198
  %253 = vmatprep.subr.bf16.mxu0 0
  %254 = vmatpush1.bf16.msra.mxu0 %v199
  %255 = vmatprep.subr.bf16.mxu0 0
  %256 = vmatpush1.bf16.msra.mxu0 %v200
  %257 = vmatprep.subr.bf16.mxu0 0
  %258 = vmatpush1.bf16.msra.mxu0 %v201
  %259 = vmatprep.subr.bf16.mxu0 0
  %260 = vmatpush1.bf16.msra.mxu0 %v202
  %261 = vmatprep.subr.bf16.mxu0 0
  %262 = vmatpush1.bf16.msra.mxu0 %v203
  %263 = vmatprep.mubr.bf16.mxu0 %v107
  %264 = vmatmul.mubr.bf16.gmra.mrb[0].mxu0 %v106
  %v265 = vpop.f32.mrb[0].mxu0
  %v266 = vadd.f32 %v69, %v265
  %v267 = vpop.f32.mrb[0].mxu0
  %v268 = vpop.f32.mrb[0].mxu0
  %v269 = vadd.f32 %v74, %v268
  %v270 = vpop.f32.mrb[0].mxu0
  %271 = vmatprep.mubr.bf16.mxu0 %v110
  %272 = vmatmul.mubr.bf16.gmra.mrb[0].mxu0 %v109
  %v273 = vpop.f32.mrb[0].mxu0
  %v274 = vadd.f32 %v79, %v273
  %v275 = vpop.f32.mrb[0].mxu0
  %v276 = vpop.f32.mrb[0].mxu0
  %v277 = vadd.f32 %v84, %v276
  %v278 = vpop.f32.mrb[0].mxu0
  %279 = vdwg.mxu0
  %280 = vmatprep.subr.bf16.mxu0 0
  %281 = vmatpush1.bf16.msra.mxu0 %v204
  %282 = vmatprep.subr.bf16.mxu0 0
  %283 = vmatpush1.bf16.msra.mxu0 %v205
  %284 = vmatprep.subr.bf16.mxu0 0
  %285 = vmatpush1.bf16.msra.mxu0 0
  %286 = vmatprep.subr.bf16.mxu0 0
  %287 = vmatpush1.bf16.msra.mxu0 0
  %288 = vmatprep.subr.bf16.mxu0 0
  %289 = vmatpush1.bf16.msra.mxu0 0
  %290 = vmatprep.subr.bf16.mxu0 0
  %291 = vmatpush1.bf16.msra.mxu0 0
  %292 = vmatprep.subr.bf16.mxu0 0
  %293 = vmatpush1.bf16.msra.mxu0 0
  %294 = vmatprep.subr.bf16.mxu0 0
  %295 = vmatpush1.bf16.msra.mxu0 0
  %296 = vmatprep.subr.bf16.mxu0 0
  %297 = vmatpush1.bf16.msra.mxu0 0
  %298 = vmatprep.subr.bf16.mxu0 0
  %299 = vmatpush1.bf16.msra.mxu0 0
  %300 = vmatprep.subr.bf16.mxu0 0
  %301 = vmatpush1.bf16.msra.mxu0 0
  %302 = vmatprep.subr.bf16.mxu0 0
  %303 = vmatpush1.bf16.msra.mxu0 0
  %304 = vmatprep.subr.bf16.mxu0 0
  %305 = vmatpush1.bf16.msra.mxu0 0
  %306 = vmatprep.subr.bf16.mxu0 0
  %307 = vmatpush1.bf16.msra.mxu0 0
  %308 = vmatprep.subr.bf16.mxu0 0
  %309 = vmatpush1.bf16.msra.mxu0 0
  %310 = vmatprep.subr.bf16.mxu0 0
  %311 = vmatpush1.bf16.msra.mxu0 0
  %312 = vmatprep.mubr.bf16.mxu0 0
  %313 = vmatmul.mubr.bf16.gmra.mrb[0].mxu0 %v226
  %v314 = vpop.f32.mrb[0].mxu0
  %v315 = vadd.f32 %v266, %v314
  %v316 = vpop.f32.mrb[0].mxu0
  %v317 = vpop.f32.mrb[0].mxu0
  %v318 = vadd.f32 %v269, %v317
  %v319 = vpop.f32.mrb[0].mxu0
  %320 = vmatprep.mubr.bf16.mxu0 0
  %321 = vmatmul.mubr.bf16.gmra.mrb[0].mxu0 %v229
  %v322 = vpop.f32.mrb[0].mxu0
  %v323 = vadd.f32 %v274, %v322
  %v324 = vpop.f32.mrb[0].mxu0
  %v325 = vpop.f32.mrb[0].mxu0
  %v326 = vadd.f32 %v277, %v325
  %v327 = vpop.f32.mrb[0].mxu0
  %328 = vdwg.mxu0
  %v329 = vld [vmem:[%s3] sm:$0xff]
  %v330 = vld [vmem:[%s3 + $0x8] sm:$0xff]
  %v331 = vld [vmem:[%s3 + $0x10] sm:$0xff]
  %v332 = vld [vmem:[%s3 + $0x18] sm:$0xff]
  %v333 = vadd.f32 %v315, %v329
  %v334 = vadd.f32 %v318, %v330
  %v335 = vadd.f32 %v323, %v331
  %v336 = vadd.f32 %v326, %v332
  %v337 = vmax.f32 %v333, 0.0
  %v338 = vmax.f32 %v334, 0.0
  %v339 = vmax.f32 %v335, 0.0
  %v340 = vmax.f32 %v336, 0.0
  %341 = vst.msk [vmem:[%s4] sm:$0xff] %vm224, %v337
  %342 = vst.msk [vmem:[%s4 + $0x8] sm:$0xff] %vm224, %v338
  %343 = vst.msk [vmem:[%s4 + $0x10] sm:$0xff] %vm224, %v339
  %344 = vst.msk [vmem:[%s4 + $0x18] sm:$0xff] %vm224, %v340
  // Predicated region
  $region18: #{forward.45} parent=0 // pred_check
    _
  $region19: #{forward.45} parent=0 // pred_check_branch
    %346 = sbr.rel (0) target = $region21
  $region20: #{forward.45} parent=0 // pred_region
    _
  $region21: #{forward.45} parent=0 // pred_fallthru
    _
  // Predicated region
  $region22: #{forward.45} parent=0 // pred_check
    _
  $region23: #{forward.45} parent=0 // pred_check_branch
    %348 = sbr.rel (0) target = $region25
  $region24: #{forward.45} parent=0 // pred_region
    _
  $region25: #{forward.45} parent=0 // pred_fallthru
    _

// kernel: forward.46
$region0: #{forward.46}
  #allocation0 [shape = 'u32[]', space=smem, size = 0x4, offset = 0x4, fixed_abs, tag = 'smem constant byte address 0x4 - core index']
  #allocation1 [shape = 'u32[144,128]{1,0:T(1,128)}', space=vmem, size = 0x12000, scoped, tag = 'internal scratch']
  %s0 = inlined_call_operand.vmem [shape: bf16[32,288], index: 0, kind: input, shape index: {}]
  %s1 = inlined_call_operand.vmem [shape: bf16[288,32], index: 1, kind: input, shape index: {}]
  %s2 = inlined_call_operand.vmem [shape: f32[32,1], index: 2, kind: input, shape index: {}]
  %s3 = inlined_call_operand.vmem [shape: f32[32,32], index: 3, kind: output, shape index: {}]
  %s4 = sld [smem:[#allocation0]]
  $region22: #{forward.46} parent=0
    _
  %s6 = ssub.s32 1, %s4
  %s7 = scalar_select 0, %s6, %s4
  // Predicated region
  $region2: #{forward.46} parent=0 // pred_check
    _
  $region3: #{forward.46} parent=0 // pred_check_branch
    %9 = sbr.rel (0) target = $region5
  $region4: #{forward.46} parent=0 // pred_region
    _
  $region5: #{forward.46} parent=0 // pred_fallthru
    _
  // Predicated region
  $region6: #{forward.46} parent=0 // pred_check
    _
  $region7: #{forward.46} parent=0 // pred_check_branch
    %11 = sbr.rel (0) target = $region9
  $region8: #{forward.46} parent=0 // pred_region
    _
  $region9: #{forward.46} parent=0 // pred_fallthru
    _
  // Predicated region
  $region10: #{forward.46} parent=0 // pred_check
    _
  $region11: #{forward.46} parent=0 // pred_check_branch
    %13 = sbr.rel (0) target = $region13
  $region12: #{forward.46} parent=0 // pred_region
    _
  $region13: #{forward.46} parent=0 // pred_fallthru
    _
  %v15 = vld [vmem:[%s0] sm:$0xff]
  %v16 = vld [vmem:[%s0 + $0x8] sm:$0xf]
  %v17 = vld [vmem:[%s0 + $0xc] sm:$0xff]
  %v18 = vld [vmem:[%s0 + $0x14] sm:$0xf]
  %v19 = vld [vmem:[%s0 + $0x18] sm:$0xff]
  %v20 = vld [vmem:[%s0 + $0x20] sm:$0xf]
  %v21 = vld [vmem:[%s0 + $0x24] sm:$0xff]
  %v22 = vld [vmem:[%s0 + $0x2c] sm:$0xf]
  %v23 = vld [vmem:[%s1] sm:$0xf]
  %v24 = vld [vmem:[%s1 + $0x4] sm:$0xf]
  %v25 = vld [vmem:[%s1 + $0x8] sm:$0xf]
  %v26 = vld [vmem:[%s1 + $0xc] sm:$0xf]
  %v27 = vld [vmem:[%s1 + $0x10] sm:$0xf]
  %v28 = vld [vmem:[%s1 + $0x14] sm:$0xf]
  %v29 = vld [vmem:[%s1 + $0x18] sm:$0xf]
  %v30 = vld [vmem:[%s1 + $0x1c] sm:$0xf]
  %v31 = vld [vmem:[%s1 + $0x20] sm:$0xf]
  %v32 = vld [vmem:[%s1 + $0x24] sm:$0xf]
  %v33 = vld [vmem:[%s1 + $0x28] sm:$0xf]
  %v34 = vld [vmem:[%s1 + $0x2c] sm:$0xf]
  %v35 = vld [vmem:[%s1 + $0x30] sm:$0xf]
  %v36 = vld [vmem:[%s1 + $0x34] sm:$0xf]
  %v37 = vld [vmem:[%s1 + $0x38] sm:$0xf]
  %v38 = vld [vmem:[%s1 + $0x3c] sm:$0xf]
  %v39 = vld [vmem:[%s1 + $0x40] sm:$0xf]
  %v40 = vld [vmem:[%s1 + $0x44] sm:$0xf]
  %v41 = vld [vmem:[%s1 + $0x48] sm:$0xf]
  %v42 = vld [vmem:[%s1 + $0x4c] sm:$0xf]
  %v43 = vld [vmem:[%s1 + $0x50] sm:$0xf]
  %v44 = vld [vmem:[%s1 + $0x54] sm:$0xf]
  %v45 = vld [vmem:[%s1 + $0x58] sm:$0xf]
  %v46 = vld [vmem:[%s1 + $0x5c] sm:$0xf]
  %v47 = vld [vmem:[%s1 + $0x60] sm:$0xf]
  %v48 = vld [vmem:[%s1 + $0x64] sm:$0xf]
  %v49 = vld [vmem:[%s1 + $0x68] sm:$0xf]
  %v50 = vld [vmem:[%s1 + $0x6c] sm:$0xf]
  %v51 = vld [vmem:[%s1 + $0x70] sm:$0xf]
  %v52 = vld [vmem:[%s1 + $0x74] sm:$0xf]
  %v53 = vld [vmem:[%s1 + $0x78] sm:$0xf]
  %v54 = vld [vmem:[%s1 + $0x7c] sm:$0xf]
  %v55 = vld [vmem:[%s1 + $0x80] sm:$0xf]
  %v56 = vld [vmem:[%s1 + $0x84] sm:$0xf]
  %v57 = vld [vmem:[%s1 + $0x88] sm:$0xf]
  %v58 = vld [vmem:[%s1 + $0x8c] sm:$0xf]
  %v59 = vld [vmem:[%s2] sm:$0xff]
  %v60 = vld [vmem:[%s2 + $0x8] sm:$0xff]
  %v61 = vld [vmem:[%s2 + $0x10] sm:$0xff]
  %v62 = vld [vmem:[%s2 + $0x18] sm:$0xff]
  %64 = vset.pattern.permute.xlu0 0
  %65 = vperm.xlu0 %64, %v59
  %v66 = vpop.permute.xlu0 %65
  %69 = vset.pattern.permute.xlu0 0
  %70 = vperm.xlu0 %69, %v60
  %v71 = vpop.permute.xlu0 %70
  %74 = vset.pattern.permute.xlu0 0
  %75 = vperm.xlu0 %74, %v61
  %v76 = vpop.permute.xlu0 %75
  %79 = vset.pattern.permute.xlu0 0
  %80 = vperm.xlu0 %79, %v62
  %v81 = vpop.permute.xlu0 %80
  %v91 = vunpack.c.l.b16 %v15
  %v92 = vunpack.c.h.b16 %v15
  %v93 = vunpack.c.l.b16 %v16
  %v94 = vunpack.c.l.b16 %v17
  %v95 = vunpack.c.h.b16 %v17
  %v96 = vunpack.c.l.b16 %v18
  %v97 = vunpack.c.l.b16 %v19
  %v98 = vunpack.c.h.b16 %v19
  %v99 = vunpack.c.l.b16 %v20
  %v100 = vunpack.c.l.b16 %v21
  %v101 = vunpack.c.h.b16 %v21
  %v102 = vunpack.c.l.b16 %v22
  %v103 = vpack.c.b16 %v94, %v91
  %v104 = vpack.c.b16 %v95, %v92
  %v105 = vpack.c.b16 %v96, %v93
  %v106 = vpack.c.b16 %v100, %v97
  %v107 = vpack.c.b16 %v101, %v98
  %v108 = vpack.c.b16 %v102, %v99
  %v149 = vunpack.c.l.b16 %v23
  %v150 = vunpack.c.l.b16 %v24
  %v151 = vunpack.c.l.b16 %v25
  %v152 = vunpack.c.l.b16 %v26
  %v153 = vunpack.c.l.b16 %v27
  %v154 = vunpack.c.l.b16 %v28
  %v155 = vunpack.c.l.b16 %v29
  %v156 = vunpack.c.l.b16 %v30
  %v157 = vunpack.c.l.b16 %v31
  %v158 = vunpack.c.l.b16 %v32
  %v159 = vunpack.c.l.b16 %v33
  %v160 = vunpack.c.l.b16 %v34
  %v161 = vunpack.c.l.b16 %v35
  %v162 = vunpack.c.l.b16 %v36
  %v163 = vunpack.c.l.b16 %v37
  %v164 = vunpack.c.l.b16 %v38
  %v165 = vunpack.c.l.b16 %v39
  %v166 = vunpack.c.l.b16 %v40
  %v167 = vunpack.c.l.b16 %v41
  %v168 = vunpack.c.l.b16 %v42
  %v169 = vunpack.c.l.b16 %v43
  %v170 = vunpack.c.l.b16 %v44
  %v171 = vunpack.c.l.b16 %v45
  %v172 = vunpack.c.l.b16 %v46
  %v173 = vunpack.c.l.b16 %v47
  %v174 = vunpack.c.l.b16 %v48
  %v175 = vunpack.c.l.b16 %v49
  %v176 = vunpack.c.l.b16 %v50
  %v177 = vunpack.c.l.b16 %v51
  %v178 = vunpack.c.l.b16 %v52
  %v179 = vunpack.c.l.b16 %v53
  %v180 = vunpack.c.l.b16 %v54
  %v181 = vunpack.c.l.b16 %v55
  %v182 = vunpack.c.l.b16 %v56
  %v183 = vunpack.c.l.b16 %v57
  %v184 = vunpack.c.l.b16 %v58
  %v185 = vpack.c.b16 %v150, %v149
  %v186 = vpack.c.b16 %v152, %v151
  %v187 = vpack.c.b16 %v154, %v153
  %v188 = vpack.c.b16 %v156, %v155
  %v189 = vpack.c.b16 %v158, %v157
  %v190 = vpack.c.b16 %v160, %v159
  %v191 = vpack.c.b16 %v162, %v161
  %v192 = vpack.c.b16 %v164, %v163
  %v193 = vpack.c.b16 %v166, %v165
  %v194 = vpack.c.b16 %v168, %v167
  %v195 = vpack.c.b16 %v170, %v169
  %v196 = vpack.c.b16 %v172, %v171
  %v197 = vpack.c.b16 %v174, %v173
  %v198 = vpack.c.b16 %v176, %v175
  %v199 = vpack.c.b16 %v178, %v177
  %v200 = vpack.c.b16 %v180, %v179
  %v201 = vpack.c.b16 %v182, %v181
  %v202 = vpack.c.b16 %v184, %v183
  %vm221 = vcmask 261120
  %v223 = vsel %vm221, %v105, 0
  %v226 = vsel %vm221, %v108, 0
  %228 = vmatprep.subr.bf16.mxu0 0
  %229 = vmatpush1.bf16.msra.mxu0 %v185
  %230 = vmatprep.subr.bf16.mxu0 0
  %231 = vmatpush1.bf16.msra.mxu0 %v186
  %232 = vmatprep.subr.bf16.mxu0 0
  %233 = vmatpush1.bf16.msra.mxu0 %v187
  %234 = vmatprep.subr.bf16.mxu0 0
  %235 = vmatpush1.bf16.msra.mxu0 %v188
  %236 = vmatprep.subr.bf16.mxu0 0
  %237 = vmatpush1.bf16.msra.mxu0 %v189
  %238 = vmatprep.subr.bf16.mxu0 0
  %239 = vmatpush1.bf16.msra.mxu0 %v190
  %240 = vmatprep.subr.bf16.mxu0 0
  %241 = vmatpush1.bf16.msra.mxu0 %v191
  %242 = vmatprep.subr.bf16.mxu0 0
  %243 = vmatpush1.bf16.msra.mxu0 %v192
  %244 = vmatprep.subr.bf16.mxu0 0
  %245 = vmatpush1.bf16.msra.mxu0 %v193
  %246 = vmatprep.subr.bf16.mxu0 0
  %247 = vmatpush1.bf16.msra.mxu0 %v194
  %248 = vmatprep.subr.bf16.mxu0 0
  %249 = vmatpush1.bf16.msra.mxu0 %v195
  %250 = vmatprep.subr.bf16.mxu0 0
  %251 = vmatpush1.bf16.msra.mxu0 %v196
  %252 = vmatprep.subr.bf16.mxu0 0
  %253 = vmatpush1.bf16.msra.mxu0 %v197
  %254 = vmatprep.subr.bf16.mxu0 0
  %255 = vmatpush1.bf16.msra.mxu0 %v198
  %256 = vmatprep.subr.bf16.mxu0 0
  %257 = vmatpush1.bf16.msra.mxu0 %v199
  %258 = vmatprep.subr.bf16.mxu0 0
  %259 = vmatpush1.bf16.msra.mxu0 %v200
  %260 = vmatprep.mubr.bf16.mxu0 %v104
  %261 = vmatmul.mubr.bf16.gmra.mrb[0].mxu0 %v103
  %v262 = vpop.f32.mrb[0].mxu0
  %v263 = vadd.f32 %v66, %v262
  %v264 = vpop.f32.mrb[0].mxu0
  %v265 = vpop.f32.mrb[0].mxu0
  %v266 = vadd.f32 %v71, %v265
  %v267 = vpop.f32.mrb[0].mxu0
  %268 = vmatprep.mubr.bf16.mxu0 %v107
  %269 = vmatmul.mubr.bf16.gmra.mrb[0].mxu0 %v106
  %v270 = vpop.f32.mrb[0].mxu0
  %v271 = vadd.f32 %v76, %v270
  %v272 = vpop.f32.mrb[0].mxu0
  %v273 = vpop.f32.mrb[0].mxu0
  %v274 = vadd.f32 %v81, %v273
  %v275 = vpop.f32.mrb[0].mxu0
  %276 = vdwg.mxu0
  %277 = vmatprep.subr.bf16.mxu0 0
  %278 = vmatpush1.bf16.msra.mxu0 %v201
  %279 = vmatprep.subr.bf16.mxu0 0
  %280 = vmatpush1.bf16.msra.mxu0 %v202
  %281 = vmatprep.subr.bf16.mxu0 0
  %282 = vmatpush1.bf16.msra.mxu0 0
  %283 = vmatprep.subr.bf16.mxu0 0
  %284 = vmatpush1.bf16.msra.mxu0 0
  %285 = vmatprep.subr.bf16.mxu0 0
  %286 = vmatpush1.bf16.msra.mxu0 0
  %287 = vmatprep.subr.bf16.mxu0 0
  %288 = vmatpush1.bf16.msra.mxu0 0
  %289 = vmatprep.subr.bf16.mxu0 0
  %290 = vmatpush1.bf16.msra.mxu0 0
  %291 = vmatprep.subr.bf16.mxu0 0
  %292 = vmatpush1.bf16.msra.mxu0 0
  %293 = vmatprep.subr.bf16.mxu0 0
  %294 = vmatpush1.bf16.msra.mxu0 0
  %295 = vmatprep.subr.bf16.mxu0 0
  %296 = vmatpush1.bf16.msra.mxu0 0
  %297 = vmatprep.subr.bf16.mxu0 0
  %298 = vmatpush1.bf16.msra.mxu0 0
  %299 = vmatprep.subr.bf16.mxu0 0
  %300 = vmatpush1.bf16.msra.mxu0 0
  %301 = vmatprep.subr.bf16.mxu0 0
  %302 = vmatpush1.bf16.msra.mxu0 0
  %303 = vmatprep.subr.bf16.mxu0 0
  %304 = vmatpush1.bf16.msra.mxu0 0
  %305 = vmatprep.subr.bf16.mxu0 0
  %306 = vmatpush1.bf16.msra.mxu0 0
  %307 = vmatprep.subr.bf16.mxu0 0
  %308 = vmatpush1.bf16.msra.mxu0 0
  %309 = vmatprep.mubr.bf16.mxu0 0
  %310 = vmatmul.mubr.bf16.gmra.mrb[0].mxu0 %v223
  %v311 = vpop.f32.mrb[0].mxu0
  %v312 = vadd.f32 %v263, %v311
  %v313 = vpop.f32.mrb[0].mxu0
  %v314 = vpop.f32.mrb[0].mxu0
  %v315 = vadd.f32 %v266, %v314
  %v316 = vpop.f32.mrb[0].mxu0
  %317 = vmatprep.mubr.bf16.mxu0 0
  %318 = vmatmul.mubr.bf16.gmra.mrb[0].mxu0 %v226
  %v319 = vpop.f32.mrb[0].mxu0
  %v320 = vadd.f32 %v271, %v319
  %v321 = vpop.f32.mrb[0].mxu0
  %v322 = vpop.f32.mrb[0].mxu0
  %v323 = vadd.f32 %v274, %v322
  %v324 = vpop.f32.mrb[0].mxu0
  %325 = vdwg.mxu0
  %v326 = vmax.f32 %v312, 0.0
  %v327 = vmax.f32 %v315, 0.0
  %v328 = vmax.f32 %v320, 0.0
  %v329 = vmax.f32 %v323, 0.0
  %330 = vst.msk [vmem:[%s3] sm:$0xff] %vm221, %v326
  %331 = vst.msk [vmem:[%s3 + $0x8] sm:$0xff] %vm221, %v327
  %332 = vst.msk [vmem:[%s3 + $0x10] sm:$0xff] %vm221, %v328
  %333 = vst.msk [vmem:[%s3 + $0x18] sm:$0xff] %vm221, %v329
  // Predicated region
  $region14: #{forward.46} parent=0 // pred_check
    _
  $region15: #{forward.46} parent=0 // pred_check_branch
    %335 = sbr.rel (0) target = $region17
  $region16: #{forward.46} parent=0 // pred_region
    _
  $region17: #{forward.46} parent=0 // pred_fallthru
    _
  // Predicated region
  $region18: #{forward.46} parent=0 // pred_check
    _
  $region19: #{forward.46} parent=0 // pred_check_branch
    %337 = sbr.rel (0) target = $region21
  $region20: #{forward.46} parent=0 // pred_region
    _
  $region21: #{forward.46} parent=0 // pred_fallthru
    _

// kernel: forward.50
$region0: #{forward.50}
  #allocation0 [shape = 'u32[]', space=smem, size = 0x4, offset = 0x4, fixed_abs, tag = 'smem constant byte address 0x4 - core index']
  #allocation1 [shape = 'u32[144,128]{1,0:T(1,128)}', space=vmem, size = 0x12000, scoped, tag = 'internal scratch']
  #allocation2 [shape = 'f32[1,1]{1,0:T(1,128)S(1)}', space=vmem, size = 0x200, scoped, tag = 'scoped memory for forward.50']
  %s0 = inlined_call_operand.vmem [shape: bf16[1,288], index: 0, kind: input, shape index: {}]
  %s1 = inlined_call_operand.vmem [shape: bf16[288,32], index: 1, kind: input, shape index: {}]
  %s2 = inlined_call_operand.<no memory space> [shape: f32[1,1], index: 2, kind: input, shape index: {}]
  %s3 = inlined_call_operand.vmem [shape: f32[1,32], index: 3, kind: output, shape index: {}]
  %s4 = sld [smem:[#allocation0]]
  $region22: #{forward.50} parent=0
    _
  %s6 = ssub.s32 1, %s4
  %s7 = scalar_select 0, %s6, %s4
  %v8 = vstv %s2
  %9 = vst [vmem:[#allocation2] sm:$0x1] %v8
  // Predicated region
  $region2: #{forward.50} parent=0 // pred_check
    _
  $region3: #{forward.50} parent=0 // pred_check_branch
    %11 = sbr.rel (0) target = $region5
  $region4: #{forward.50} parent=0 // pred_region
    _
  $region5: #{forward.50} parent=0 // pred_fallthru
    _
  // Predicated region
  $region6: #{forward.50} parent=0 // pred_check
    _
  $region7: #{forward.50} parent=0 // pred_check_branch
    %13 = sbr.rel (0) target = $region9
  $region8: #{forward.50} parent=0 // pred_region
    _
  $region9: #{forward.50} parent=0 // pred_fallthru
    _
  // Predicated region
  $region10: #{forward.50} parent=0 // pred_check
    _
  $region11: #{forward.50} parent=0 // pred_check_branch
    %15 = sbr.rel (0) target = $region13
  $region12: #{forward.50} parent=0 // pred_region
    _
  $region13: #{forward.50} parent=0 // pred_fallthru
    _
  %v17 = vld [vmem:[%s0] sm:$0x7]
  %v18 = vld [vmem:[%s1] sm:$0xf]
  %v19 = vld [vmem:[%s1 + $0x4] sm:$0xf]
  %v20 = vld [vmem:[%s1 + $0x8] sm:$0xf]
  %v21 = vld [vmem:[%s1 + $0xc] sm:$0xf]
  %v22 = vld [vmem:[%s1 + $0x10] sm:$0xf]
  %v23 = vld [vmem:[%s1 + $0x14] sm:$0xf]
  %v24 = vld [vmem:[%s1 + $0x18] sm:$0xf]
  %v25 = vld [vmem:[%s1 + $0x1c] sm:$0xf]
  %v26 = vld [vmem:[%s1 + $0x20] sm:$0xf]
  %v27 = vld [vmem:[%s1 + $0x24] sm:$0xf]
  %v28 = vld [vmem:[%s1 + $0x28] sm:$0xf]
  %v29 = vld [vmem:[%s1 + $0x2c] sm:$0xf]
  %v30 = vld [vmem:[%s1 + $0x30] sm:$0xf]
  %v31 = vld [vmem:[%s1 + $0x34] sm:$0xf]
  %v32 = vld [vmem:[%s1 + $0x38] sm:$0xf]
  %v33 = vld [vmem:[%s1 + $0x3c] sm:$0xf]
  %v34 = vld [vmem:[%s1 + $0x40] sm:$0xf]
  %v35 = vld [vmem:[%s1 + $0x44] sm:$0xf]
  %v36 = vld [vmem:[%s1 + $0x48] sm:$0xf]
  %v37 = vld [vmem:[%s1 + $0x4c] sm:$0xf]
  %v38 = vld [vmem:[%s1 + $0x50] sm:$0xf]
  %v39 = vld [vmem:[%s1 + $0x54] sm:$0xf]
  %v40 = vld [vmem:[%s1 + $0x58] sm:$0xf]
  %v41 = vld [vmem:[%s1 + $0x5c] sm:$0xf]
  %v42 = vld [vmem:[%s1 + $0x60] sm:$0xf]
  %v43 = vld [vmem:[%s1 + $0x64] sm:$0xf]
  %v44 = vld [vmem:[%s1 + $0x68] sm:$0xf]
  %v45 = vld [vmem:[%s1 + $0x6c] sm:$0xf]
  %v46 = vld [vmem:[%s1 + $0x70] sm:$0xf]
  %v47 = vld [vmem:[%s1 + $0x74] sm:$0xf]
  %v48 = vld [vmem:[%s1 + $0x78] sm:$0xf]
  %v49 = vld [vmem:[%s1 + $0x7c] sm:$0xf]
  %v50 = vld [vmem:[%s1 + $0x80] sm:$0xf]
  %v51 = vld [vmem:[%s1 + $0x84] sm:$0xf]
  %v52 = vld [vmem:[%s1 + $0x88] sm:$0xf]
  %v53 = vld [vmem:[%s1 + $0x8c] sm:$0xf]
  %v54 = vld [vmem:[#allocation2] sm:$0x1]
  %56 = vset.pattern.permute.xlu0 0
  %57 = vperm.xlu0 %56, %v54
  %v58 = vpop.permute.xlu0 %57
  %v60 = vlaneseq
  %v61 = vshrl.u32 %v60, 7
  %v62 = vsub.s32 0, %v61
  %v63 = vrot.slane %v58, %v62
  %v66 = vunpack.c.l.s4 1966171168
  %v67 = vunpack.c.0.s8 %v66
  %v68 = vlaneseq
  %v69 = vshrl.u32 %v68, 7
  %v70 = vsub.s32 %v67, %v69
  %v71 = vrot.slane %v17, %v70
  %v72 = vcombine.high %v71, %v71
  %v74 = vunpack.c.l.s4 1966171168
  %v75 = vunpack.c.0.s8 %v74
  %v76 = vlaneseq
  %v77 = vshrl.u32 %v76, 7
  %v78 = vsub.s32 %v75, %v77
  %v79 = vrot.slane %v71, %v78
  %v81 = vunpack.c.l.s4 1966171168
  %v82 = vunpack.c.0.s8 %v81
  %v83 = vlaneseq
  %v84 = vshrl.u32 %v83, 7
  %v85 = vsub.s32 %v82, %v84
  %v86 = vrot.slane %v72, %v85
  %v87 = vcombine.high %v79, %v79
  %v126 = vunpack.c.l.b16 %v18
  %v127 = vunpack.c.l.b16 %v19
  %v128 = vunpack.c.l.b16 %v20
  %v129 = vunpack.c.l.b16 %v21
  %v130 = vunpack.c.l.b16 %v22
  %v131 = vunpack.c.l.b16 %v23
  %v132 = vunpack.c.l.b16 %v24
  %v133 = vunpack.c.l.b16 %v25
  %v134 = vunpack.c.l.b16 %v26
  %v135 = vunpack.c.l.b16 %v27
  %v136 = vunpack.c.l.b16 %v28
  %v137 = vunpack.c.l.b16 %v29
  %v138 = vunpack.c.l.b16 %v30
  %v139 = vunpack.c.l.b16 %v31
  %v140 = vunpack.c.l.b16 %v32
  %v141 = vunpack.c.l.b16 %v33
  %v142 = vunpack.c.l.b16 %v34
  %v143 = vunpack.c.l.b16 %v35
  %v144 = vunpack.c.l.b16 %v36
  %v145 = vunpack.c.l.b16 %v37
  %v146 = vunpack.c.l.b16 %v38
  %v147 = vunpack.c.l.b16 %v39
  %v148 = vunpack.c.l.b16 %v40
  %v149 = vunpack.c.l.b16 %v41
  %v150 = vunpack.c.l.b16 %v42
  %v151 = vunpack.c.l.b16 %v43
  %v152 = vunpack.c.l.b16 %v44
  %v153 = vunpack.c.l.b16 %v45
  %v154 = vunpack.c.l.b16 %v46
  %v155 = vunpack.c.l.b16 %v47
  %v156 = vunpack.c.l.b16 %v48
  %v157 = vunpack.c.l.b16 %v49
  %v158 = vunpack.c.l.b16 %v50
  %v159 = vunpack.c.l.b16 %v51
  %v160 = vunpack.c.l.b16 %v52
  %v161 = vunpack.c.l.b16 %v53
  %v162 = vpack.c.b16 %v127, %v126
  %v163 = vpack.c.b16 %v129, %v128
  %v164 = vpack.c.b16 %v131, %v130
  %v165 = vpack.c.b16 %v133, %v132
  %v166 = vpack.c.b16 %v135, %v134
  %v167 = vpack.c.b16 %v137, %v136
  %v168 = vpack.c.b16 %v139, %v138
  %v169 = vpack.c.b16 %v141, %v140
  %v170 = vpack.c.b16 %v143, %v142
  %v171 = vpack.c.b16 %v145, %v144
  %v172 = vpack.c.b16 %v147, %v146
  %v173 = vpack.c.b16 %v149, %v148
  %v174 = vpack.c.b16 %v151, %v150
  %v175 = vpack.c.b16 %v153, %v152
  %v176 = vpack.c.b16 %v155, %v154
  %v177 = vpack.c.b16 %v157, %v156
  %v178 = vpack.c.b16 %v159, %v158
  %v179 = vpack.c.b16 %v161, %v160
  %vm198 = vcmask 261120
  %v200 = vsel %vm198, %v87, 0
  %202 = vmatprep.subr.bf16.mxu0 0
  %203 = vmatpush1.bf16.msra.mxu0 %v162
  %204 = vmatprep.subr.bf16.mxu0 0
  %205 = vmatpush1.bf16.msra.mxu0 %v163
  %206 = vmatprep.subr.bf16.mxu0 0
  %207 = vmatpush1.bf16.msra.mxu0 %v164
  %208 = vmatprep.subr.bf16.mxu0 0
  %209 = vmatpush1.bf16.msra.mxu0 %v165
  %210 = vmatprep.subr.bf16.mxu0 0
  %211 = vmatpush1.bf16.msra.mxu0 %v166
  %212 = vmatprep.subr.bf16.mxu0 0
  %213 = vmatpush1.bf16.msra.mxu0 %v167
  %214 = vmatprep.subr.bf16.mxu0 0
  %215 = vmatpush1.bf16.msra.mxu0 %v168
  %216 = vmatprep.subr.bf16.mxu0 0
  %217 = vmatpush1.bf16.msra.mxu0 %v169
  %218 = vmatprep.subr.bf16.mxu0 0
  %219 = vmatpush1.bf16.msra.mxu0 %v170
  %220 = vmatprep.subr.bf16.mxu0 0
  %221 = vmatpush1.bf16.msra.mxu0 %v171
  %222 = vmatprep.subr.bf16.mxu0 0
  %223 = vmatpush1.bf16.msra.mxu0 %v172
  %224 = vmatprep.subr.bf16.mxu0 0
  %225 = vmatpush1.bf16.msra.mxu0 %v173
  %226 = vmatprep.subr.bf16.mxu0 0
  %227 = vmatpush1.bf16.msra.mxu0 %v174
  %228 = vmatprep.subr.bf16.mxu0 0
  %229 = vmatpush1.bf16.msra.mxu0 %v175
  %230 = vmatprep.subr.bf16.mxu0 0
  %231 = vmatpush1.bf16.msra.mxu0 %v176
  %232 = vmatprep.subr.bf16.mxu0 0
  %233 = vmatpush1.bf16.msra.mxu0 %v177
  %234 = vmatprep.mubr.bf16.mxu0 %v86
  %235 = vmatmul.mubr.bf16.gmra.mrb[0].mxu0 %v79
  %v236 = vpop.f32.mrb[0].mxu0
  %v237 = vadd.f32 %v63, %v236
  %v238 = vpop.f32.mrb[0].mxu0
  %v239 = vpop.f32.mrb[0].mxu0
  %v240 = vpop.f32.mrb[0].mxu0
  %241 = vdwg.mxu0
  %242 = vmatprep.subr.bf16.mxu0 0
  %243 = vmatpush1.bf16.msra.mxu0 %v178
  %244 = vmatprep.subr.bf16.mxu0 0
  %245 = vmatpush1.bf16.msra.mxu0 %v179
  %246 = vmatprep.subr.bf16.mxu0 0
  %247 = vmatpush1.bf16.msra.mxu0 0
  %248 = vmatprep.subr.bf16.mxu0 0
  %249 = vmatpush1.bf16.msra.mxu0 0
  %250 = vmatprep.subr.bf16.mxu0 0
  %251 = vmatpush1.bf16.msra.mxu0 0
  %252 = vmatprep.subr.bf16.mxu0 0
  %253 = vmatpush1.bf16.msra.mxu0 0
  %254 = vmatprep.subr.bf16.mxu0 0
  %255 = vmatpush1.bf16.msra.mxu0 0
  %256 = vmatprep.subr.bf16.mxu0 0
  %257 = vmatpush1.bf16.msra.mxu0 0
  %258 = vmatprep.subr.bf16.mxu0 0
  %259 = vmatpush1.bf16.msra.mxu0 0
  %260 = vmatprep.subr.bf16.mxu0 0
  %261 = vmatpush1.bf16.msra.mxu0 0
  %262 = vmatprep.subr.bf16.mxu0 0
  %263 = vmatpush1.bf16.msra.mxu0 0
  %264 = vmatprep.subr.bf16.mxu0 0
  %265 = vmatpush1.bf16.msra.mxu0 0
  %266 = vmatprep.subr.bf16.mxu0 0
  %267 = vmatpush1.bf16.msra.mxu0 0
  %268 = vmatprep.subr.bf16.mxu0 0
  %269 = vmatpush1.bf16.msra.mxu0 0
  %270 = vmatprep.subr.bf16.mxu0 0
  %271 = vmatpush1.bf16.msra.mxu0 0
  %272 = vmatprep.subr.bf16.mxu0 0
  %273 = vmatpush1.bf16.msra.mxu0 0
  %274 = vmatprep.mubr.bf16.mxu0 0
  %275 = vmatmul.mubr.bf16.gmra.mrb[0].mxu0 %v200
  %v276 = vpop.f32.mrb[0].mxu0
  %v277 = vadd.f32 %v237, %v276
  %v278 = vpop.f32.mrb[0].mxu0
  %v279 = vpop.f32.mrb[0].mxu0
  %v280 = vpop.f32.mrb[0].mxu0
  %281 = vdwg.mxu0
  %vm282 = vcmask 253952
  %283 = vst.msk [vmem:[%s3] sm:$0x1] %vm282, %v277
  // Predicated region
  $region14: #{forward.50} parent=0 // pred_check
    _
  $region15: #{forward.50} parent=0 // pred_check_branch
    %285 = sbr.rel (0) target = $region17
  $region16: #{forward.50} parent=0 // pred_region
    _
  $region17: #{forward.50} parent=0 // pred_fallthru
    _
  // Predicated region
  $region18: #{forward.50} parent=0 // pred_check
    _
  $region19: #{forward.50} parent=0 // pred_check_branch
    %287 = sbr.rel (0) target = $region21
  $region20: #{forward.50} parent=0 // pred_region
    _
  $region21: #{forward.50} parent=0 // pred_fallthru
    _

// kernel: forward.51
$region0: #{forward.51}
  #allocation0 [shape = 'u32[]', space=smem, size = 0x4, offset = 0x4, fixed_abs, tag = 'smem constant byte address 0x4 - core index']
  #allocation1 [shape = 'u32[144,128]{1,0:T(1,128)}', space=vmem, size = 0x12000, scoped, tag = 'internal scratch']
  %s0 = inlined_call_operand.vmem [shape: bf16[2,16], index: 0, kind: input, shape index: {}]
  %s1 = inlined_call_operand.vmem [shape: bf16[16,1024], index: 1, kind: input, shape index: {}]
  %s2 = inlined_call_operand.vmem [shape: f32[2,1], index: 2, kind: input, shape index: {}]
  %s3 = inlined_call_operand.vmem [shape: f32[2,1024], index: 3, kind: output, shape index: {}]
  %s4 = sld [smem:[#allocation0]]
  $region22: #{forward.51} parent=0
    _
  %s6 = ssub.s32 1, %s4
  %s7 = scalar_select 0, %s6, %s4
  // Predicated region
  $region2: #{forward.51} parent=0 // pred_check
    _
  $region3: #{forward.51} parent=0 // pred_check_branch
    %9 = sbr.rel (0) target = $region5
  $region4: #{forward.51} parent=0 // pred_region
    _
  $region5: #{forward.51} parent=0 // pred_fallthru
    _
  // Predicated region
  $region6: #{forward.51} parent=0 // pred_check
    _
  $region7: #{forward.51} parent=0 // pred_check_branch
    %11 = sbr.rel (0) target = $region9
  $region8: #{forward.51} parent=0 // pred_region
    _
  $region9: #{forward.51} parent=0 // pred_fallthru
    _
  // Predicated region
  $region10: #{forward.51} parent=0 // pred_check
    _
  $region11: #{forward.51} parent=0 // pred_check_branch
    %13 = sbr.rel (0) target = $region13
  $region12: #{forward.51} parent=0 // pred_region
    _
  $region13: #{forward.51} parent=0 // pred_fallthru
    _
  %v15 = vld [vmem:[%s0] sm:$0x1]
  %v16 = vld [vmem:[%s1] sm:$0xff]
  %v17 = vld [vmem:[%s1 + $0x8] sm:$0xff]
  %v18 = vld [vmem:[%s1 + $0x10] sm:$0xff]
  %v19 = vld [vmem:[%s1 + $0x18] sm:$0xff]
  %v20 = vld [vmem:[%s1 + $0x20] sm:$0xff]
  %v21 = vld [vmem:[%s1 + $0x28] sm:$0xff]
  %v22 = vld [vmem:[%s1 + $0x30] sm:$0xff]
  %v23 = vld [vmem:[%s1 + $0x38] sm:$0xff]
  %v24 = vld [vmem:[%s2] sm:$0x3]
  %26 = vset.pattern.permute.xlu0 0
  %27 = vperm.xlu0 %26, %v24
  %v28 = vpop.permute.xlu0 %27
  %v38 = vunpack.c.l.b16 %v16
  %v39 = vunpack.c.h.b16 %v16
  %v40 = vunpack.c.l.b16 %v17
  %v41 = vunpack.c.h.b16 %v17
  %v42 = vunpack.c.l.b16 %v18
  %v43 = vunpack.c.h.b16 %v18
  %v44 = vunpack.c.l.b16 %v19
  %v45 = vunpack.c.h.b16 %v19
  %v46 = vunpack.c.l.b16 %v20
  %v47 = vunpack.c.h.b16 %v20
  %v48 = vunpack.c.l.b16 %v21
  %v49 = vunpack.c.h.b16 %v21
  %v50 = vunpack.c.l.b16 %v22
  %v51 = vunpack.c.h.b16 %v22
  %v52 = vunpack.c.l.b16 %v23
  %v53 = vunpack.c.h.b16 %v23
  %v54 = vpack.c.b16 %v46, %v38
  %v55 = vpack.c.b16 %v47, %v39
  %v56 = vpack.c.b16 %v48, %v40
  %v57 = vpack.c.b16 %v49, %v41
  %v58 = vpack.c.b16 %v50, %v42
  %v59 = vpack.c.b16 %v51, %v43
  %v60 = vpack.c.b16 %v52, %v44
  %v61 = vpack.c.b16 %v53, %v45
  %vm70 = vcmask 130048
  %v72 = vsel %vm70, %v15, 0
  %74 = vmatprep.subr.bf16.mxu0 %v55
  %75 = vmatpush1.bf16.msra.mxu0 %v54
  %76 = vmatprep.subr.bf16.mxu0 0
  %77 = vmatpush1.bf16.msra.mxu0 0
  %78 = vmatprep.subr.bf16.mxu0 0
  %79 = vmatpush1.bf16.msra.mxu0 0
  %80 = vmatprep.subr.bf16.mxu0 0
  %81 = vmatpush1.bf16.msra.mxu0 0
  %82 = vmatprep.subr.bf16.mxu0 0
  %83 = vmatpush1.bf16.msra.mxu0 0
  %84 = vmatprep.subr.bf16.mxu0 0
  %85 = vmatpush1.bf16.msra.mxu0 0
  %86 = vmatprep.subr.bf16.mxu0 0
  %87 = vmatpush1.bf16.msra.mxu0 0
  %88 = vmatprep.subr.bf16.mxu0 0
  %89 = vmatpush1.bf16.msra.mxu0 0
  %90 = vmatprep.subr.bf16.mxu0 0
  %91 = vmatpush1.bf16.msra.mxu0 0
  %92 = vmatprep.subr.bf16.mxu0 0
  %93 = vmatpush1.bf16.msra.mxu0 0
  %94 = vmatprep.subr.bf16.mxu0 0
  %95 = vmatpush1.bf16.msra.mxu0 0
  %96 = vmatprep.subr.bf16.mxu0 0
  %97 = vmatpush1.bf16.msra.mxu0 0
  %98 = vmatprep.subr.bf16.mxu0 0
  %99 = vmatpush1.bf16.msra.mxu0 0
  %100 = vmatprep.subr.bf16.mxu0 0
  %101 = vmatpush1.bf16.msra.mxu0 0
  %102 = vmatprep.subr.bf16.mxu0 0
  %103 = vmatpush1.bf16.msra.mxu0 0
  %104 = vmatprep.subr.bf16.mxu0 0
  %105 = vmatpush1.bf16.msra.mxu0 0
  %106 = vmatprep.mubr.bf16.mxu0 0
  %107 = vmatmul.mubr.bf16.gmra.mrb[0].mxu0 %v72
  %v108 = vpop.f32.mrb[0].mxu0
  %v109 = vadd.f32 %v28, %v108
  %v110 = vpop.f32.mrb[0].mxu0
  %v111 = vadd.f32 %v28, %v110
  %v112 = vpop.f32.mrb[0].mxu0
  %v113 = vpop.f32.mrb[0].mxu0
  %114 = vdwg.mxu0
  %115 = vmatprep.subr.bf16.mxu0 %v57
  %116 = vmatpush1.bf16.msra.mxu0 %v56
  %117 = vmatprep.subr.bf16.mxu0 0
  %118 = vmatpush1.bf16.msra.mxu0 0
  %119 = vmatprep.subr.bf16.mxu0 0
  %120 = vmatpush1.bf16.msra.mxu0 0
  %121 = vmatprep.subr.bf16.mxu0 0
  %122 = vmatpush1.bf16.msra.mxu0 0
  %123 = vmatprep.subr.bf16.mxu0 0
  %124 = vmatpush1.bf16.msra.mxu0 0
  %125 = vmatprep.subr.bf16.mxu0 0
  %126 = vmatpush1.bf16.msra.mxu0 0
  %127 = vmatprep.subr.bf16.mxu0 0
  %128 = vmatpush1.bf16.msra.mxu0 0
  %129 = vmatprep.subr.bf16.mxu0 0
  %130 = vmatpush1.bf16.msra.mxu0 0
  %131 = vmatprep.subr.bf16.mxu0 0
  %132 = vmatpush1.bf16.msra.mxu0 0
  %133 = vmatprep.subr.bf16.mxu0 0
  %134 = vmatpush1.bf16.msra.mxu0 0
  %135 = vmatprep.subr.bf16.mxu0 0
  %136 = vmatpush1.bf16.msra.mxu0 0
  %137 = vmatprep.subr.bf16.mxu0 0
  %138 = vmatpush1.bf16.msra.mxu0 0
  %139 = vmatprep.subr.bf16.mxu0 0
  %140 = vmatpush1.bf16.msra.mxu0 0
  %141 = vmatprep.subr.bf16.mxu0 0
  %142 = vmatpush1.bf16.msra.mxu0 0
  %143 = vmatprep.subr.bf16.mxu0 0
  %144 = vmatpush1.bf16.msra.mxu0 0
  %145 = vmatprep.subr.bf16.mxu0 0
  %146 = vmatpush1.bf16.msra.mxu0 0
  %147 = vmatprep.mubr.bf16.mxu0 0
  %148 = vmatmul.mubr.bf16.gmra.mrb[0].mxu0 %v72
  %v149 = vpop.f32.mrb[0].mxu0
  %v150 = vadd.f32 %v28, %v149
  %v151 = vpop.f32.mrb[0].mxu0
  %v152 = vadd.f32 %v28, %v151
  %v153 = vpop.f32.mrb[0].mxu0
  %v154 = vpop.f32.mrb[0].mxu0
  %155 = vdwg.mxu0
  %156 = vmatprep.subr.bf16.mxu0 %v59
  %157 = vmatpush1.bf16.msra.mxu0 %v58
  %158 = vmatprep.subr.bf16.mxu0 0
  %159 = vmatpush1.bf16.msra.mxu0 0
  %160 = vmatprep.subr.bf16.mxu0 0
  %161 = vmatpush1.bf16.msra.mxu0 0
  %162 = vmatprep.subr.bf16.mxu0 0
  %163 = vmatpush1.bf16.msra.mxu0 0
  %164 = vmatprep.subr.bf16.mxu0 0
  %165 = vmatpush1.bf16.msra.mxu0 0
  %166 = vmatprep.subr.bf16.mxu0 0
  %167 = vmatpush1.bf16.msra.mxu0 0
  %168 = vmatprep.subr.bf16.mxu0 0
  %169 = vmatpush1.bf16.msra.mxu0 0
  %170 = vmatprep.subr.bf16.mxu0 0
  %171 = vmatpush1.bf16.msra.mxu0 0
  %172 = vmatprep.subr.bf16.mxu0 0
  %173 = vmatpush1.bf16.msra.mxu0 0
  %174 = vmatprep.subr.bf16.mxu0 0
  %175 = vmatpush1.bf16.msra.mxu0 0
  %176 = vmatprep.subr.bf16.mxu0 0
  %177 = vmatpush1.bf16.msra.mxu0 0
  %178 = vmatprep.subr.bf16.mxu0 0
  %179 = vmatpush1.bf16.msra.mxu0 0
  %180 = vmatprep.subr.bf16.mxu0 0
  %181 = vmatpush1.bf16.msra.mxu0 0
  %182 = vmatprep.subr.bf16.mxu0 0
  %183 = vmatpush1.bf16.msra.mxu0 0
  %184 = vmatprep.subr.bf16.mxu0 0
  %185 = vmatpush1.bf16.msra.mxu0 0
  %186 = vmatprep.subr.bf16.mxu0 0
  %187 = vmatpush1.bf16.msra.mxu0 0
  %188 = vmatprep.mubr.bf16.mxu0 0
  %189 = vmatmul.mubr.bf16.gmra.mrb[0].mxu0 %v72
  %v190 = vpop.f32.mrb[0].mxu0
  %v191 = vadd.f32 %v28, %v190
  %v192 = vpop.f32.mrb[0].mxu0
  %v193 = vadd.f32 %v28, %v192
  %v194 = vpop.f32.mrb[0].mxu0
  %v195 = vpop.f32.mrb[0].mxu0
  %196 = vdwg.mxu0
  %197 = vmatprep.subr.bf16.mxu0 %v61
  %198 = vmatpush1.bf16.msra.mxu0 %v60
  %199 = vmatprep.subr.bf16.mxu0 0
  %200 = vmatpush1.bf16.msra.mxu0 0
  %201 = vmatprep.subr.bf16.mxu0 0
  %202 = vmatpush1.bf16.msra.mxu0 0
  %203 = vmatprep.subr.bf16.mxu0 0
  %204 = vmatpush1.bf16.msra.mxu0 0
  %205 = vmatprep.subr.bf16.mxu0 0
  %206 = vmatpush1.bf16.msra.mxu0 0
  %207 = vmatprep.subr.bf16.mxu0 0
  %208 = vmatpush1.bf16.msra.mxu0 0
  %209 = vmatprep.subr.bf16.mxu0 0
  %210 = vmatpush1.bf16.msra.mxu0 0
  %211 = vmatprep.subr.bf16.mxu0 0
  %212 = vmatpush1.bf16.msra.mxu0 0
  %213 = vmatprep.subr.bf16.mxu0 0
  %214 = vmatpush1.bf16.msra.mxu0 0
  %215 = vmatprep.subr.bf16.mxu0 0
  %216 = vmatpush1.bf16.msra.mxu0 0
  %217 = vmatprep.subr.bf16.mxu0 0
  %218 = vmatpush1.bf16.msra.mxu0 0
  %219 = vmatprep.subr.bf16.mxu0 0
  %220 = vmatpush1.bf16.msra.mxu0 0
  %221 = vmatprep.subr.bf16.mxu0 0
  %222 = vmatpush1.bf16.msra.mxu0 0
  %223 = vmatprep.subr.bf16.mxu0 0
  %224 = vmatpush1.bf16.msra.mxu0 0
  %225 = vmatprep.subr.bf16.mxu0 0
  %226 = vmatpush1.bf16.msra.mxu0 0
  %227 = vmatprep.subr.bf16.mxu0 0
  %228 = vmatpush1.bf16.msra.mxu0 0
  %229 = vmatprep.mubr.bf16.mxu0 0
  %230 = vmatmul.mubr.bf16.gmra.mrb[0].mxu0 %v72
  %v231 = vpop.f32.mrb[0].mxu0
  %v232 = vadd.f32 %v28, %v231
  %v233 = vpop.f32.mrb[0].mxu0
  %v234 = vadd.f32 %v28, %v233
  %v235 = vpop.f32.mrb[0].mxu0
  %v236 = vpop.f32.mrb[0].mxu0
  %237 = vdwg.mxu0
  %v246 = vcombine.low %v109, %v111
  %v247 = vcombine.low %v150, %v152
  %v249 = vunpack.c.l.s4 1983009808
  %v250 = vunpack.c.0.s8 %v249
  %v251 = vlaneseq
  %v252 = vshrl.u32 %v251, 7
  %v253 = vsub.s32 %v250, %v252
  %v254 = vrot.slane %v246, %v253
  %v256 = vunpack.c.l.s4 1983009808
  %v257 = vunpack.c.0.s8 %v256
  %v258 = vlaneseq
  %v259 = vshrl.u32 %v258, 7
  %v260 = vsub.s32 %v257, %v259
  %v261 = vrot.slane %v247, %v260
  %v262 = vcombine.low %v254, %v261
  %v263 = vcombine.low %v191, %v193
  %v264 = vcombine.low %v232, %v234
  %v266 = vunpack.c.l.s4 1983009808
  %v267 = vunpack.c.0.s8 %v266
  %v268 = vlaneseq
  %v269 = vshrl.u32 %v268, 7
  %v270 = vsub.s32 %v267, %v269
  %v271 = vrot.slane %v263, %v270
  %v273 = vunpack.c.l.s4 1983009808
  %v274 = vunpack.c.0.s8 %v273
  %v275 = vlaneseq
  %v276 = vshrl.u32 %v275, 7
  %v277 = vsub.s32 %v274, %v276
  %v278 = vrot.slane %v264, %v277
  %v279 = vcombine.low %v271, %v278
  %282 = vst [vmem:[%s3] sm:$0xff] %v262
  %283 = vst [vmem:[%s3 + $0x8] sm:$0xff] %v279
  // Predicated region
  $region14: #{forward.51} parent=0 // pred_check
    _
  $region15: #{forward.51} parent=0 // pred_check_branch
    %285 = sbr.rel (0) target = $region17
  $region16: #{forward.51} parent=0 // pred_region
    _
  $region17: #{forward.51} parent=0 // pred_fallthru
    _
  // Predicated region
  $region18: #{forward.51} parent=0 // pred_check
    _
  $region19: #{forward.51} parent=0 // pred_check_branch
    %287 = sbr.rel (0) target = $region21
  $region20: #{forward.51} parent=0 // pred_region
    _
  $region21: #{forward.51} parent=0 // pred_fallthru
    _

</llo_original>
